<compile_context>
chip_gen: v7x
topology: tpu7x:2x2x1
jax: 0.10.0
libtpu: 0.0.40
codegen_flags: <defaults>
</compile_context>

<pallas_src>
import functools

import jax
import jax.numpy as jnp
from jax import lax
from jax.experimental import pallas as pl
from jax.experimental.pallas import tpu as pltpu

EPS = 1e-5
LANE = 128


def _round_up(x, m):
    return (x + m - 1) // m * m


# ------------------------------- fused kernel ------------------------------- #

def _bottleneck_kernel(
    x_ref,                      # (1, H, W, Cp)  bf16  full image (reused across row tiles)
    w1_ref, s1_ref, b1_ref,     # (Cp, Pp) bf16 | (1, Pp) f32 | (1, Pp) f32
    w2_ref, s2_ref, b2_ref,     # (9*Pp, Pp) bf16 | (1, Pp) f32 | (1, Pp) f32
    w3_ref, s3_ref, b3_ref,     # (Pp, Cp) bf16 | (1, Cp) f32 | (1, Cp) f32
    o_ref,                      # (1, TH, W, Cp) f32   output row tile
    p1_ref,                     # VMEM (TH+2, W+2, Pp) f32  conv1 activations + 3x3 halo
    col_ref,                    # VMEM (TH*W, 9*Pp) bf16    im2col buffer for the 3x3 conv
    *, H, W, TH, Cp, Pp):
    t = pl.program_id(1)
    n_tiles = pl.num_programs(1)
    row0 = t * TH

    def conv1_rows(x_rows):
        # x_rows: (r, W, Cp) bf16 -> (r, W+2, Pp) f32 with zero side columns
        r = x_rows.shape[0]
        y = jnp.dot(x_rows.reshape(r * W, Cp), w1_ref[...],
                    preferred_element_type=jnp.float32)
        y = jnp.maximum(y * s1_ref[...] + b1_ref[...], 0.0).reshape(r, W, Pp)
        zcol = jnp.zeros((r, 1, Pp), jnp.float32)
        return jnp.concatenate([zcol, y, zcol], axis=1)

    # ---- stage 1: conv1(1x1) + bn1 + relu into the halo'd VMEM scratch ------
    x_rows = x_ref[0, pl.ds(row0, TH), :, :]                    # (TH, W, Cp)
    p1_ref[1:TH + 1, :, :] = conv1_rows(x_rows)

    zero_row = jnp.zeros((1, W + 2, Pp), jnp.float32)
    p1_ref[0:1, :, :] = zero_row                 # SAME-padding top row
    p1_ref[TH + 1:TH + 2, :, :] = zero_row       # SAME-padding bottom row

    @pl.when(t > 0)                              # top halo row exists -> recompute it
    def _():
        p1_ref[0:1, :, :] = conv1_rows(x_ref[0, pl.ds(row0 - 1, 1), :, :])

    @pl.when(t < n_tiles - 1)                    # bottom halo row exists
    def _():
        p1_ref[TH + 1:TH + 2, :, :] = conv1_rows(x_ref[0, pl.ds(row0 + TH, 1), :, :])

    # ---- stage 2: 3x3 conv as ONE im2col matmul (K = 9*Pp) + bn2 + relu -----
    for tap in range(9):
        dy, dx = tap // 3, tap % 3
        win = p1_ref[dy:dy + TH, dx:dx + W, :]                  # (TH, W, Pp) f32
        col_ref[:, tap * Pp:(tap + 1) * Pp] = (
            win.reshape(TH * W, Pp).astype(jnp.bfloat16))
    y2 = jnp.dot(col_ref[...], w2_ref[...], preferred_element_type=jnp.float32)
    y2 = jnp.maximum(y2 * s2_ref[...] + b2_ref[...], 0.0).astype(jnp.bfloat16)

    # ---- stage 3: conv3(1x1) + bn3 + identity residual + relu ---------------
    y3 = jnp.dot(y2, w3_ref[...], preferred_element_type=jnp.float32)
    resid = x_rows.reshape(TH * W, Cp).astype(jnp.float32)
    y3 = jnp.maximum(y3 * s3_ref[...] + b3_ref[...] + resid, 0.0)
    o_ref[0] = y3.reshape(TH, W, Cp)


# ------------------------------ host-side wrapper ---------------------------- #

def bottleneck_forward(x_nchw, p, tile_rows=None):
    N, C, H, W = x_nchw.shape
    Cp, Pp = p["Cp"], p["Pp"]
    assert C == p["cin"] and p["cout"] == C, "identity residual requires cin == cout"

    TH = tile_rows if tile_rows is not None else min(H, max(1, 512 // max(W, 1)))
    TH = max(1, min(TH, H))
    while H % TH:
        TH -= 1
    n_tiles = H // TH

    # NCHW -> NHWC, zero-pad channels to a lane multiple, cast to bf16.
    x_nhwc = jnp.transpose(x_nchw, (0, 2, 3, 1))
    xp = jnp.zeros((N, H, W, Cp), jnp.bfloat16).at[..., :C].set(
        x_nhwc.astype(jnp.bfloat16))

    kernel = functools.partial(_bottleneck_kernel, H=H, W=W, TH=TH, Cp=Cp, Pp=Pp)

    flops = 2 * N * H * W * (Cp * Pp + 9 * Pp * Pp + Pp * Cp)
    bytes_accessed = (xp.size * 2 + p["w1"].size * 2 + p["w2"].size * 2
                      + p["w3"].size * 2 + N * H * W * Cp * 4)

    const = lambda *_: (0, 0)  # weights / scales stay VMEM-resident

    out = pl.pallas_call(
        kernel,
        out_shape=jax.ShapeDtypeStruct((N, H, W, Cp), jnp.float32),
        grid_spec=pltpu.PrefetchScalarGridSpec(
            num_scalar_prefetch=0,
            grid=(N, n_tiles),
            in_specs=[
                pl.BlockSpec((1, H, W, Cp), lambda n, t: (n, 0, 0, 0)),  # x (full image)
                pl.BlockSpec((Cp, Pp), const),
                pl.BlockSpec((1, Pp), const),
                pl.BlockSpec((1, Pp), const),
                pl.BlockSpec((9 * Pp, Pp), const),
                pl.BlockSpec((1, Pp), const),
                pl.BlockSpec((1, Pp), const),
                pl.BlockSpec((Pp, Cp), const),
                pl.BlockSpec((1, Cp), const),
                pl.BlockSpec((1, Cp), const),
            ],
            out_specs=pl.BlockSpec((1, TH, W, Cp), lambda n, t: (n, t, 0, 0)),
            scratch_shapes=[
                pltpu.VMEM((TH + 2, W + 2, Pp), jnp.float32),   # halo'd conv1 acts
                pltpu.VMEM((TH * W, 9 * Pp), jnp.bfloat16),     # im2col buffer
            ],
        ),
        compiler_params=pltpu.CompilerParams(
            dimension_semantics=("parallel", "parallel"),       # megacore on v7x
            vmem_limit_bytes=32 * 1024 * 1024,                  # << 64 MiB (v7x-safe)
        ),
        cost_estimate=pl.CostEstimate(
            flops=flops, transcendentals=0, bytes_accessed=bytes_accessed),
    )(xp, p["w1"], p["s1"], p["b1"], p["w2"], p["s2"], p["b2"],
      p["w3"], p["s3"], p["b3"])

    y = out[..., :C]                       # drop lane-padding channels
    return jnp.transpose(y, (0, 3, 1, 2))  # NHWC -> NCHW


# ------------------------ params (torch layout) + packing --------------------- #

def init_raw_params(key, inplanes, planes, expansion=4):
    ks = jax.random.split(key, 6)
    w1 = 0.1 * jax.random.normal(ks[0], (planes, inplanes, 1, 1), jnp.float32)
    w2 = 0.1 * jax.random.normal(ks[1], (planes, planes, 3, 3), jnp.float32)
    w3 = 0.1 * jax.random.normal(ks[2], (planes * expansion, planes, 1, 1), jnp.float32)

    def bn(k, c):
        k1, k2, k3, k4 = jax.random.split(k, 4)
        return dict(
            gamma=1.0 + 0.1 * jax.random.normal(k1, (c,), jnp.float32),
            beta=0.1 * jax.random.normal(k2, (c,), jnp.float32),
            mean=0.1 * jax.random.normal(k3, (c,), jnp.float32),
            var=jnp.abs(jax.random.normal(k4, (c,), jnp.float32)) + 0.5)

    return dict(w1=w1, w2=w2, w3=w3,
                bn1=bn(ks[3], planes), bn2=bn(ks[4], planes),
                bn3=bn(ks[5], planes * expansion))


def _fold_bn(bn):
    s = bn["gamma"] / jnp.sqrt(bn["var"] + EPS)
    return s, bn["beta"] - bn["mean"] * s


def fold_and_pack(raw, lane=LANE):
    planes, cin = raw["w1"].shape[:2]
    cout = raw["w3"].shape[0]
    Cp, Pp = _round_up(cin, lane), _round_up(planes, lane)
    assert _round_up(cout, lane) == Cp

    def pad_sb(s, b, c, cp):
        return (jnp.zeros((1, cp), jnp.float32).at[0, :c].set(s),
                jnp.zeros((1, cp), jnp.float32).at[0, :c].set(b))

    s1, b1 = pad_sb(*_fold_bn(raw["bn1"]), planes, Pp)
    s2, b2 = pad_sb(*_fold_bn(raw["bn2"]), planes, Pp)
    s3, b3 = pad_sb(*_fold_bn(raw["bn3"]), cout, Cp)

    w1 = jnp.zeros((Cp, Pp), jnp.float32).at[:cin, :planes].set(
        jnp.transpose(raw["w1"][:, :, 0, 0], (1, 0)))
    w2hwio = jnp.transpose(raw["w2"], (2, 3, 1, 0))            # (3,3,Cin,Cout)
    w2 = jnp.zeros((3, 3, Pp, Pp), jnp.float32).at[:, :, :planes, :planes].set(
        w2hwio).reshape(9 * Pp, Pp)                            # im2col layout
    w3 = jnp.zeros((Pp, Cp), jnp.float32).at[:planes, :cout].set(
        jnp.transpose(raw["w3"][:, :, 0, 0], (1, 0)))

    return dict(w1=w1.astype(jnp.bfloat16), w2=w2.astype(jnp.bfloat16),
                w3=w3.astype(jnp.bfloat16),
                s1=s1, b1=b1, s2=s2, b2=b2, s3=s3, b3=b3,
                cin=cin, planes=planes, cout=cout, Cp=Cp, Pp=Pp)


# ------------------------------ pure-JAX reference ---------------------------- #

def bottleneck_reference(x_nchw, raw):
    # Mirrors the kernel's precision: bf16-rounded matmul operands, f32 math.
    f32 = jnp.float32
    bf = lambda a: a.astype(jnp.bfloat16).astype(f32)
    hi = lax.Precision.HIGHEST

    x = bf(jnp.transpose(x_nchw, (0, 2, 3, 1)))
    s1, b1 = _fold_bn(raw["bn1"])
    s2, b2 = _fold_bn(raw["bn2"])
    s3, b3 = _fold_bn(raw["bn3"])
    w1 = jnp.transpose(raw["w1"][:, :, 0, 0], (1, 0))
    w2 = jnp.transpose(raw["w2"], (2, 3, 1, 0))                # HWIO
    w3 = jnp.transpose(raw["w3"][:, :, 0, 0], (1, 0))

    out = jnp.einsum("nhwc,cd->nhwd", x, bf(w1), precision=hi)
    out = jnp.maximum(out * s1 + b1, 0.0)
    out = lax.conv_general_dilated(
        bf(out), bf(w2), (1, 1), "SAME",
        dimension_numbers=("NHWC", "HWIO", "NHWC"), precision=hi)
    out = jnp.maximum(out * s2 + b2, 0.0)
    out = jnp.einsum("nhwc,cd->nhwd", bf(out), bf(w3), precision=hi)
    out = jnp.maximum(out * s3 + b3 + x, 0.0)
    return jnp.transpose(out, (0, 3, 1, 2))


# ------------------------------------ main ------------------------------------ #

if __name__ == "__main__":
    planes = 4
    inplanes = planes * 4       # downsample=None requires inplanes == planes * expansion
    N, H, W = 2, 16, 16

    key = jax.random.PRNGKey(0)
    kx, kp = jax.random.split(key)
    x = jax.random.normal(kx, (N, inplanes, H, W), jnp.float32)

    raw = init_raw_params(kp, inplanes, planes)
    packed = fold_and_pack(raw)

    # tile_rows=8 -> 2 row tiles per image: exercises both halo branches.
    y = bottleneck_forward(x, packed, tile_rows=8)
    y = jax.block_until_ready(y)

    y_ref = bottleneck_reference(x, raw)
    assert y.shape == (N, inplanes, H, W), y.shape
    max_err = float(jnp.max(jnp.abs(y - y_ref)))
    assert jnp.allclose(y, y_ref, atol=2e-2, rtol=2e-2), max_err

    print("KERNEL_OK")
</pallas_src>

<mosaic_0001>
module attributes {stable_mosaic.version = 11 : i64} {
  func.func @_bottleneck_kernel(%arg0: i32, %arg1: i32, %arg2: memref<1x16x16x128xbf16, #tpu.memory_space<vmem>>, %arg3: memref<128x128xbf16, #tpu.memory_space<vmem>>, %arg4: memref<1x128xf32, #tpu.memory_space<vmem>>, %arg5: memref<1x128xf32, #tpu.memory_space<vmem>>, %arg6: memref<1152x128xbf16, #tpu.memory_space<vmem>>, %arg7: memref<1x128xf32, #tpu.memory_space<vmem>>, %arg8: memref<1x128xf32, #tpu.memory_space<vmem>>, %arg9: memref<128x128xbf16, #tpu.memory_space<vmem>>, %arg10: memref<1x128xf32, #tpu.memory_space<vmem>>, %arg11: memref<1x128xf32, #tpu.memory_space<vmem>>, %arg12: memref<1x8x16x128xf32, #tpu.memory_space<vmem>>, %arg13: memref<10x18x128xf32, #tpu.memory_space<vmem>>, %arg14: memref<128x1152xbf16, #tpu.memory_space<vmem>>) attributes {dimension_semantics = [#tpu.dimension_semantics<parallel>, #tpu.dimension_semantics<parallel>], iteration_bounds = array<i64: 2, 2>, scalar_prefetch = 0 : i64, scratch_operands = 2 : i64, tpu.core_type = #tpu.core_type<tc>, window_params = [{transform_indices = @transform_0, window_bounds = array<i64: 1, 16, 16, 128>}, {pipeline_mode = #tpu.pipeline_mode<synchronous>, transform_indices = @transform_1, window_bounds = array<i64: 128, 128>}, {pipeline_mode = #tpu.pipeline_mode<synchronous>, transform_indices = @transform_2, window_bounds = array<i64: 1, 128>}, {pipeline_mode = #tpu.pipeline_mode<synchronous>, transform_indices = @transform_3, window_bounds = array<i64: 1, 128>}, {pipeline_mode = #tpu.pipeline_mode<synchronous>, transform_indices = @transform_4, window_bounds = array<i64: 1152, 128>}, {pipeline_mode = #tpu.pipeline_mode<synchronous>, transform_indices = @transform_5, window_bounds = array<i64: 1, 128>}, {pipeline_mode = #tpu.pipeline_mode<synchronous>, transform_indices = @transform_6, window_bounds = array<i64: 1, 128>}, {pipeline_mode = #tpu.pipeline_mode<synchronous>, transform_indices = @transform_7, window_bounds = array<i64: 128, 128>}, {pipeline_mode = #tpu.pipeline_mode<synchronous>, transform_indices = @transform_8, window_bounds = array<i64: 1, 128>}, {pipeline_mode = #tpu.pipeline_mode<synchronous>, transform_indices = @transform_9, window_bounds = array<i64: 1, 128>}, {transform_indices = @transform_10, window_bounds = array<i64: 1, 8, 16, 128>}]} {
    %c8_i32 = arith.constant 8 : i32
    %0 = arith.muli %arg1, %c8_i32 : i32
    %c0 = arith.constant 0 : index
    %1 = arith.index_cast %0 : i32 to index
    %c0_0 = arith.constant 0 : index
    %c0_1 = arith.constant 0 : index
    %2 = vector.load %arg2[%c0, %1, %c0_0, %c0_1] : memref<1x16x16x128xbf16, #tpu.memory_space<vmem>>, vector<1x8x16x128xbf16>
    %3 = vector.shape_cast %2 : vector<1x8x16x128xbf16> to vector<8x16x128xbf16>
    %4 = vector.shape_cast %3 : vector<8x16x128xbf16> to vector<128x128xbf16>
    %c0_2 = arith.constant 0 : index
    %c0_3 = arith.constant 0 : index
    %5 = vector.load %arg3[%c0_2, %c0_3] : memref<128x128xbf16, #tpu.memory_space<vmem>>, vector<128x128xbf16>
    %cst = arith.constant dense<0.000000e+00> : vector<128x128xf32>
    %6 = tpu.matmul %4, %5, %cst {dimension_numbers = #tpu.dot_dimension_numbers<[1], [0], [0], [1], [0, 0, 1, 1], [], []>} : vector<128x128xbf16>, vector<128x128xbf16>, vector<128x128xf32> -> vector<128x128xf32>
    %c0_4 = arith.constant 0 : index
    %c0_5 = arith.constant 0 : index
    %7 = vector.load %arg4[%c0_4, %c0_5] : memref<1x128xf32, #tpu.memory_space<vmem>>, vector<1x128xf32>
    %8 = vector.broadcast %7 : vector<1x128xf32> to vector<128x128xf32>
    %9 = arith.mulf %6, %8 : vector<128x128xf32>
    %c0_6 = arith.constant 0 : index
    %c0_7 = arith.constant 0 : index
    %10 = vector.load %arg5[%c0_6, %c0_7] : memref<1x128xf32, #tpu.memory_space<vmem>>, vector<1x128xf32>
    %11 = vector.broadcast %10 : vector<1x128xf32> to vector<128x128xf32>
    %12 = arith.addf %9, %11 : vector<128x128xf32>
    %cst_8 = arith.constant 0.000000e+00 : f32
    %13 = vector.broadcast %cst_8 : f32 to vector<128x128xf32>
    %14 = arith.maximumf %12, %13 : vector<128x128xf32>
    %15 = vector.shape_cast %14 : vector<128x128xf32> to vector<8x16x128xf32>
    %cst_9 = arith.constant 0.000000e+00 : f32
    %16 = vector.broadcast %cst_9 : f32 to vector<8x1x128xf32>
    %17 = tpu.concatenate %16, %15, %16 in 1 : vector<8x1x128xf32>, vector<8x16x128xf32>, vector<8x1x128xf32> -> vector<8x18x128xf32>
    %c1 = arith.constant 1 : index
    %c0_10 = arith.constant 0 : index
    %c0_11 = arith.constant 0 : index
    %18 = vector.load %arg13[%c1, %c0_10, %c0_11] : memref<10x18x128xf32, #tpu.memory_space<vmem>>, vector<8x18x128xf32>
    tpu.vector_store %arg13[%c1, %c0_10, %c0_11], %17 {strides = array<i32>} : memref<10x18x128xf32, #tpu.memory_space<vmem>>, vector<8x18x128xf32>,
    %cst_12 = arith.constant 0.000000e+00 : f32
    %19 = vector.broadcast %cst_12 : f32 to vector<1x18x128xf32>
    %c0_13 = arith.constant 0 : index
    %c0_14 = arith.constant 0 : index
    %c0_15 = arith.constant 0 : index
    %20 = vector.load %arg13[%c0_13, %c0_14, %c0_15] : memref<10x18x128xf32, #tpu.memory_space<vmem>>, vector<1x18x128xf32>
    tpu.vector_store %arg13[%c0_13, %c0_14, %c0_15], %19 {strides = array<i32>} : memref<10x18x128xf32, #tpu.memory_space<vmem>>, vector<1x18x128xf32>,
    %c9 = arith.constant 9 : index
    %c0_16 = arith.constant 0 : index
    %c0_17 = arith.constant 0 : index
    %21 = vector.load %arg13[%c9, %c0_16, %c0_17] : memref<10x18x128xf32, #tpu.memory_space<vmem>>, vector<1x18x128xf32>
    tpu.vector_store %arg13[%c9, %c0_16, %c0_17], %19 {strides = array<i32>} : memref<10x18x128xf32, #tpu.memory_space<vmem>>, vector<1x18x128xf32>,
    %c0_i32 = arith.constant 0 : i32
    %22 = arith.cmpi sgt, %arg1, %c0_i32 : i32
    %23 = arith.extui %22 : i1 to i32
    %c0_i32_18 = arith.constant 0 : i32
    %24 = arith.cmpi ne, %23, %c0_i32_18 : i32
    scf.if %24 {
      %c1_i32_78 = arith.constant 1 : i32
      %93 = arith.subi %0, %c1_i32_78 : i32
      %c0_79 = arith.constant 0 : index
      %94 = arith.index_cast %93 : i32 to index
      %c0_80 = arith.constant 0 : index
      %c0_81 = arith.constant 0 : index
      %95 = vector.load %arg2[%c0_79, %94, %c0_80, %c0_81] : memref<1x16x16x128xbf16, #tpu.memory_space<vmem>>, vector<1x1x16x128xbf16>
      %96 = vector.shape_cast %95 : vector<1x1x16x128xbf16> to vector<1x16x128xbf16>
      %97 = vector.shape_cast %96 : vector<1x16x128xbf16> to vector<16x128xbf16>
      %c0_82 = arith.constant 0 : index
      %c0_83 = arith.constant 0 : index
      %98 = vector.load %arg3[%c0_82, %c0_83] : memref<128x128xbf16, #tpu.memory_space<vmem>>, vector<128x128xbf16>
      %cst_84 = arith.constant dense<0.000000e+00> : vector<16x128xf32>
      %99 = tpu.matmul %97, %98, %cst_84 {dimension_numbers = #tpu.dot_dimension_numbers<[1], [0], [0], [1], [0, 0, 1, 1], [], []>} : vector<16x128xbf16>, vector<128x128xbf16>, vector<16x128xf32> -> vector<16x128xf32>
      %c0_85 = arith.constant 0 : index
      %c0_86 = arith.constant 0 : index
      %100 = vector.load %arg4[%c0_85, %c0_86] : memref<1x128xf32, #tpu.memory_space<vmem>>, vector<1x128xf32>
      %101 = vector.broadcast %100 : vector<1x128xf32> to vector<16x128xf32>
      %102 = arith.mulf %99, %101 : vector<16x128xf32>
      %c0_87 = arith.constant 0 : index
      %c0_88 = arith.constant 0 : index
      %103 = vector.load %arg5[%c0_87, %c0_88] : memref<1x128xf32, #tpu.memory_space<vmem>>, vector<1x128xf32>
      %104 = vector.broadcast %103 : vector<1x128xf32> to vector<16x128xf32>
      %105 = arith.addf %102, %104 : vector<16x128xf32>
      %cst_89 = arith.constant 0.000000e+00 : f32
      %106 = vector.broadcast %cst_89 : f32 to vector<16x128xf32>
      %107 = arith.maximumf %105, %106 : vector<16x128xf32>
      %108 = vector.shape_cast %107 : vector<16x128xf32> to vector<1x16x128xf32>
      %cst_90 = arith.constant 0.000000e+00 : f32
      %109 = vector.broadcast %cst_90 : f32 to vector<1x1x128xf32>
      %110 = tpu.concatenate %109, %108, %109 in 1 : vector<1x1x128xf32>, vector<1x16x128xf32>, vector<1x1x128xf32> -> vector<1x18x128xf32>
      %c0_91 = arith.constant 0 : index
      %c0_92 = arith.constant 0 : index
      %c0_93 = arith.constant 0 : index
      %111 = vector.load %arg13[%c0_91, %c0_92, %c0_93] : memref<10x18x128xf32, #tpu.memory_space<vmem>>, vector<1x18x128xf32>
      tpu.vector_store %arg13[%c0_91, %c0_92, %c0_93], %110 {strides = array<i32>} : memref<10x18x128xf32, #tpu.memory_space<vmem>>, vector<1x18x128xf32>,
    } else {
    }
    %c1_i32 = arith.constant 1 : i32
    %25 = arith.cmpi slt, %arg1, %c1_i32 : i32
    %26 = arith.extui %25 : i1 to i32
    %c0_i32_19 = arith.constant 0 : i32
    %27 = arith.cmpi ne, %26, %c0_i32_19 : i32
    scf.if %27 {
      %c8_i32_78 = arith.constant 8 : i32
      %93 = arith.addi %0, %c8_i32_78 : i32
      %c0_79 = arith.constant 0 : index
      %94 = arith.index_cast %93 : i32 to index
      %c0_80 = arith.constant 0 : index
      %c0_81 = arith.constant 0 : index
      %95 = vector.load %arg2[%c0_79, %94, %c0_80, %c0_81] : memref<1x16x16x128xbf16, #tpu.memory_space<vmem>>, vector<1x1x16x128xbf16>
      %96 = vector.shape_cast %95 : vector<1x1x16x128xbf16> to vector<1x16x128xbf16>
      %97 = vector.shape_cast %96 : vector<1x16x128xbf16> to vector<16x128xbf16>
      %c0_82 = arith.constant 0 : index
      %c0_83 = arith.constant 0 : index
      %98 = vector.load %arg3[%c0_82, %c0_83] : memref<128x128xbf16, #tpu.memory_space<vmem>>, vector<128x128xbf16>
      %cst_84 = arith.constant dense<0.000000e+00> : vector<16x128xf32>
      %99 = tpu.matmul %97, %98, %cst_84 {dimension_numbers = #tpu.dot_dimension_numbers<[1], [0], [0], [1], [0, 0, 1, 1], [], []>} : vector<16x128xbf16>, vector<128x128xbf16>, vector<16x128xf32> -> vector<16x128xf32>
      %c0_85 = arith.constant 0 : index
      %c0_86 = arith.constant 0 : index
      %100 = vector.load %arg4[%c0_85, %c0_86] : memref<1x128xf32, #tpu.memory_space<vmem>>, vector<1x128xf32>
      %101 = vector.broadcast %100 : vector<1x128xf32> to vector<16x128xf32>
      %102 = arith.mulf %99, %101 : vector<16x128xf32>
      %c0_87 = arith.constant 0 : index
      %c0_88 = arith.constant 0 : index
      %103 = vector.load %arg5[%c0_87, %c0_88] : memref<1x128xf32, #tpu.memory_space<vmem>>, vector<1x128xf32>
      %104 = vector.broadcast %103 : vector<1x128xf32> to vector<16x128xf32>
      %105 = arith.addf %102, %104 : vector<16x128xf32>
      %cst_89 = arith.constant 0.000000e+00 : f32
      %106 = vector.broadcast %cst_89 : f32 to vector<16x128xf32>
      %107 = arith.maximumf %105, %106 : vector<16x128xf32>
      %108 = vector.shape_cast %107 : vector<16x128xf32> to vector<1x16x128xf32>
      %cst_90 = arith.constant 0.000000e+00 : f32
      %109 = vector.broadcast %cst_90 : f32 to vector<1x1x128xf32>
      %110 = tpu.concatenate %109, %108, %109 in 1 : vector<1x1x128xf32>, vector<1x16x128xf32>, vector<1x1x128xf32> -> vector<1x18x128xf32>
      %c9_91 = arith.constant 9 : index
      %c0_92 = arith.constant 0 : index
      %c0_93 = arith.constant 0 : index
      %111 = vector.load %arg13[%c9_91, %c0_92, %c0_93] : memref<10x18x128xf32, #tpu.memory_space<vmem>>, vector<1x18x128xf32>
      tpu.vector_store %arg13[%c9_91, %c0_92, %c0_93], %110 {strides = array<i32>} : memref<10x18x128xf32, #tpu.memory_space<vmem>>, vector<1x18x128xf32>,
    } else {
    }
    %c0_20 = arith.constant 0 : index
    %c0_21 = arith.constant 0 : index
    %c0_22 = arith.constant 0 : index
    %28 = vector.load %arg13[%c0_20, %c0_21, %c0_22] : memref<10x18x128xf32, #tpu.memory_space<vmem>>, vector<8x16x128xf32>
    %29 = vector.shape_cast %28 : vector<8x16x128xf32> to vector<128x128xf32>
    %30 = arith.truncf %29 : vector<128x128xf32> to vector<128x128xbf16>
    %c0_23 = arith.constant 0 : index
    %c0_24 = arith.constant 0 : index
    %31 = vector.load %arg14[%c0_23, %c0_24] : memref<128x1152xbf16, #tpu.memory_space<vmem>>, vector<128x128xbf16>
    tpu.vector_store %arg14[%c0_23, %c0_24], %30 {strides = array<i32>} : memref<128x1152xbf16, #tpu.memory_space<vmem>>, vector<128x128xbf16>,
    %c0_25 = arith.constant 0 : index
    %c1_26 = arith.constant 1 : index
    %c0_27 = arith.constant 0 : index
    %32 = vector.load %arg13[%c0_25, %c1_26, %c0_27] : memref<10x18x128xf32, #tpu.memory_space<vmem>>, vector<8x16x128xf32>
    %33 = vector.shape_cast %32 : vector<8x16x128xf32> to vector<128x128xf32>
    %34 = arith.truncf %33 : vector<128x128xf32> to vector<128x128xbf16>
    %c0_28 = arith.constant 0 : index
    %c128 = arith.constant 128 : index
    %35 = vector.load %arg14[%c0_28, %c128] : memref<128x1152xbf16, #tpu.memory_space<vmem>>, vector<128x128xbf16>
    tpu.vector_store %arg14[%c0_28, %c128], %34 {strides = array<i32>} : memref<128x1152xbf16, #tpu.memory_space<vmem>>, vector<128x128xbf16>,
    %c0_29 = arith.constant 0 : index
    %c2 = arith.constant 2 : index
    %c0_30 = arith.constant 0 : index
    %36 = vector.load %arg13[%c0_29, %c2, %c0_30] : memref<10x18x128xf32, #tpu.memory_space<vmem>>, vector<8x16x128xf32>
    %37 = vector.shape_cast %36 : vector<8x16x128xf32> to vector<128x128xf32>
    %38 = arith.truncf %37 : vector<128x128xf32> to vector<128x128xbf16>
    %c0_31 = arith.constant 0 : index
    %c256 = arith.constant 256 : index
    %39 = vector.load %arg14[%c0_31, %c256] : memref<128x1152xbf16, #tpu.memory_space<vmem>>, vector<128x128xbf16>
    tpu.vector_store %arg14[%c0_31, %c256], %38 {strides = array<i32>} : memref<128x1152xbf16, #tpu.memory_space<vmem>>, vector<128x128xbf16>,
    %c1_32 = arith.constant 1 : index
    %c0_33 = arith.constant 0 : index
    %c0_34 = arith.constant 0 : index
    %40 = vector.load %arg13[%c1_32, %c0_33, %c0_34] : memref<10x18x128xf32, #tpu.memory_space<vmem>>, vector<8x16x128xf32>
    %41 = vector.shape_cast %40 : vector<8x16x128xf32> to vector<128x128xf32>
    %42 = arith.truncf %41 : vector<128x128xf32> to vector<128x128xbf16>
    %c0_35 = arith.constant 0 : index
    %c384 = arith.constant 384 : index
    %43 = vector.load %arg14[%c0_35, %c384] : memref<128x1152xbf16, #tpu.memory_space<vmem>>, vector<128x128xbf16>
    tpu.vector_store %arg14[%c0_35, %c384], %42 {strides = array<i32>} : memref<128x1152xbf16, #tpu.memory_space<vmem>>, vector<128x128xbf16>,
    %c1_36 = arith.constant 1 : index
    %c1_37 = arith.constant 1 : index
    %c0_38 = arith.constant 0 : index
    %44 = vector.load %arg13[%c1_36, %c1_37, %c0_38] : memref<10x18x128xf32, #tpu.memory_space<vmem>>, vector<8x16x128xf32>
    %45 = vector.shape_cast %44 : vector<8x16x128xf32> to vector<128x128xf32>
    %46 = arith.truncf %45 : vector<128x128xf32> to vector<128x128xbf16>
    %c0_39 = arith.constant 0 : index
    %c512 = arith.constant 512 : index
    %47 = vector.load %arg14[%c0_39, %c512] : memref<128x1152xbf16, #tpu.memory_space<vmem>>, vector<128x128xbf16>
    tpu.vector_store %arg14[%c0_39, %c512], %46 {strides = array<i32>} : memref<128x1152xbf16, #tpu.memory_space<vmem>>, vector<128x128xbf16>,
    %c1_40 = arith.constant 1 : index
    %c2_41 = arith.constant 2 : index
    %c0_42 = arith.constant 0 : index
    %48 = vector.load %arg13[%c1_40, %c2_41, %c0_42] : memref<10x18x128xf32, #tpu.memory_space<vmem>>, vector<8x16x128xf32>
    %49 = vector.shape_cast %48 : vector<8x16x128xf32> to vector<128x128xf32>
    %50 = arith.truncf %49 : vector<128x128xf32> to vector<128x128xbf16>
    %c0_43 = arith.constant 0 : index
    %c640 = arith.constant 640 : index
    %51 = vector.load %arg14[%c0_43, %c640] : memref<128x1152xbf16, #tpu.memory_space<vmem>>, vector<128x128xbf16>
    tpu.vector_store %arg14[%c0_43, %c640], %50 {strides = array<i32>} : memref<128x1152xbf16, #tpu.memory_space<vmem>>, vector<128x128xbf16>,
    %c2_44 = arith.constant 2 : index
    %c0_45 = arith.constant 0 : index
    %c0_46 = arith.constant 0 : index
    %52 = vector.load %arg13[%c2_44, %c0_45, %c0_46] : memref<10x18x128xf32, #tpu.memory_space<vmem>>, vector<8x16x128xf32>
    %53 = vector.shape_cast %52 : vector<8x16x128xf32> to vector<128x128xf32>
    %54 = arith.truncf %53 : vector<128x128xf32> to vector<128x128xbf16>
    %c0_47 = arith.constant 0 : index
    %c768 = arith.constant 768 : index
    %55 = vector.load %arg14[%c0_47, %c768] : memref<128x1152xbf16, #tpu.memory_space<vmem>>, vector<128x128xbf16>
    tpu.vector_store %arg14[%c0_47, %c768], %54 {strides = array<i32>} : memref<128x1152xbf16, #tpu.memory_space<vmem>>, vector<128x128xbf16>,
    %c2_48 = arith.constant 2 : index
    %c1_49 = arith.constant 1 : index
    %c0_50 = arith.constant 0 : index
    %56 = vector.load %arg13[%c2_48, %c1_49, %c0_50] : memref<10x18x128xf32, #tpu.memory_space<vmem>>, vector<8x16x128xf32>
    %57 = vector.shape_cast %56 : vector<8x16x128xf32> to vector<128x128xf32>
    %58 = arith.truncf %57 : vector<128x128xf32> to vector<128x128xbf16>
    %c0_51 = arith.constant 0 : index
    %c896 = arith.constant 896 : index
    %59 = vector.load %arg14[%c0_51, %c896] : memref<128x1152xbf16, #tpu.memory_space<vmem>>, vector<128x128xbf16>
    tpu.vector_store %arg14[%c0_51, %c896], %58 {strides = array<i32>} : memref<128x1152xbf16, #tpu.memory_space<vmem>>, vector<128x128xbf16>,
    %c2_52 = arith.constant 2 : index
    %c2_53 = arith.constant 2 : index
    %c0_54 = arith.constant 0 : index
    %60 = vector.load %arg13[%c2_52, %c2_53, %c0_54] : memref<10x18x128xf32, #tpu.memory_space<vmem>>, vector<8x16x128xf32>
    %61 = vector.shape_cast %60 : vector<8x16x128xf32> to vector<128x128xf32>
    %62 = arith.truncf %61 : vector<128x128xf32> to vector<128x128xbf16>
    %c0_55 = arith.constant 0 : index
    %c1024 = arith.constant 1024 : index
    %63 = vector.load %arg14[%c0_55, %c1024] : memref<128x1152xbf16, #tpu.memory_space<vmem>>, vector<128x128xbf16>
    tpu.vector_store %arg14[%c0_55, %c1024], %62 {strides = array<i32>} : memref<128x1152xbf16, #tpu.memory_space<vmem>>, vector<128x128xbf16>,
    %c0_56 = arith.constant 0 : index
    %c0_57 = arith.constant 0 : index
    %64 = vector.load %arg14[%c0_56, %c0_57] : memref<128x1152xbf16, #tpu.memory_space<vmem>>, vector<128x1152xbf16>
    %c0_58 = arith.constant 0 : index
    %c0_59 = arith.constant 0 : index
    %65 = vector.load %arg6[%c0_58, %c0_59] : memref<1152x128xbf16, #tpu.memory_space<vmem>>, vector<1152x128xbf16>
    %cst_60 = arith.constant dense<0.000000e+00> : vector<128x128xf32>
    %66 = tpu.matmul %64, %65, %cst_60 {dimension_numbers = #tpu.dot_dimension_numbers<[1], [0], [0], [1], [0, 0, 1, 1], [], []>} : vector<128x1152xbf16>, vector<1152x128xbf16>, vector<128x128xf32> -> vector<128x128xf32>
    %c0_61 = arith.constant 0 : index
    %c0_62 = arith.constant 0 : index
    %67 = vector.load %arg7[%c0_61, %c0_62] : memref<1x128xf32, #tpu.memory_space<vmem>>, vector<1x128xf32>
    %68 = vector.broadcast %67 : vector<1x128xf32> to vector<128x128xf32>
    %69 = arith.mulf %66, %68 : vector<128x128xf32>
    %c0_63 = arith.constant 0 : index
    %c0_64 = arith.constant 0 : index
    %70 = vector.load %arg8[%c0_63, %c0_64] : memref<1x128xf32, #tpu.memory_space<vmem>>, vector<1x128xf32>
    %71 = vector.broadcast %70 : vector<1x128xf32> to vector<128x128xf32>
    %72 = arith.addf %69, %71 : vector<128x128xf32>
    %cst_65 = arith.constant 0.000000e+00 : f32
    %73 = vector.broadcast %cst_65 : f32 to vector<128x128xf32>
    %74 = arith.maximumf %72, %73 : vector<128x128xf32>
    %75 = arith.truncf %74 : vector<128x128xf32> to vector<128x128xbf16>
    %c0_66 = arith.constant 0 : index
    %c0_67 = arith.constant 0 : index
    %76 = vector.load %arg9[%c0_66, %c0_67] : memref<128x128xbf16, #tpu.memory_space<vmem>>, vector<128x128xbf16>
    %cst_68 = arith.constant dense<0.000000e+00> : vector<128x128xf32>
    %77 = tpu.matmul %75, %76, %cst_68 {dimension_numbers = #tpu.dot_dimension_numbers<[1], [0], [0], [1], [0, 0, 1, 1], [], []>} : vector<128x128xbf16>, vector<128x128xbf16>, vector<128x128xf32> -> vector<128x128xf32>
    %78 = vector.shape_cast %3 : vector<8x16x128xbf16> to vector<128x128xbf16>
    %79 = arith.extf %78 : vector<128x128xbf16> to vector<128x128xf32>
    %c0_69 = arith.constant 0 : index
    %c0_70 = arith.constant 0 : index
    %80 = vector.load %arg10[%c0_69, %c0_70] : memref<1x128xf32, #tpu.memory_space<vmem>>, vector<1x128xf32>
    %81 = vector.broadcast %80 : vector<1x128xf32> to vector<128x128xf32>
    %82 = arith.mulf %77, %81 : vector<128x128xf32>
    %c0_71 = arith.constant 0 : index
    %c0_72 = arith.constant 0 : index
    %83 = vector.load %arg11[%c0_71, %c0_72] : memref<1x128xf32, #tpu.memory_space<vmem>>, vector<1x128xf32>
    %84 = vector.broadcast %83 : vector<1x128xf32> to vector<128x128xf32>
    %85 = arith.addf %82, %84 : vector<128x128xf32>
    %86 = arith.addf %85, %79 : vector<128x128xf32>
    %cst_73 = arith.constant 0.000000e+00 : f32
    %87 = vector.broadcast %cst_73 : f32 to vector<128x128xf32>
    %88 = arith.maximumf %86, %87 : vector<128x128xf32>
    %89 = vector.shape_cast %88 : vector<128x128xf32> to vector<8x16x128xf32>
    %c0_74 = arith.constant 0 : index
    %c0_75 = arith.constant 0 : index
    %c0_76 = arith.constant 0 : index
    %c0_77 = arith.constant 0 : index
    %90 = vector.load %arg12[%c0_74, %c0_75, %c0_76, %c0_77] : memref<1x8x16x128xf32, #tpu.memory_space<vmem>>, vector<1x8x16x128xf32>
    %91 = vector.shape_cast %90 : vector<1x8x16x128xf32> to vector<8x16x128xf32>
    %92 = vector.shape_cast %89 : vector<8x16x128xf32> to vector<1x8x16x128xf32>
    tpu.vector_store %arg12[%c0_74, %c0_75, %c0_76, %c0_77], %92 {strides = array<i32>} : memref<1x8x16x128xf32, #tpu.memory_space<vmem>>, vector<1x8x16x128xf32>,
    return
  }
  func.func @transform_0(%arg0: i32, %arg1: i32) -> (i32, i32, i32, i32) {
    %c0_i32 = arith.constant 0 : i32
    %c0_i32_0 = arith.constant 0 : i32
    %c0_i32_1 = arith.constant 0 : i32
    %c0_i32_2 = arith.constant 0 : i32
    return %arg0, %c0_i32, %c0_i32_0, %c0_i32_1 : i32, i32, i32, i32
  }
  func.func @transform_1(%arg0: i32, %arg1: i32) -> (i32, i32) {
    %c0_i32 = arith.constant 0 : i32
    %c0_i32_0 = arith.constant 0 : i32
    %c0_i32_1 = arith.constant 0 : i32
    return %c0_i32, %c0_i32_0 : i32, i32
  }
  func.func @transform_2(%arg0: i32, %arg1: i32) -> (i32, i32) {
    %c0_i32 = arith.constant 0 : i32
    %c0_i32_0 = arith.constant 0 : i32
    %c0_i32_1 = arith.constant 0 : i32
    return %c0_i32, %c0_i32_0 : i32, i32
  }
  func.func @transform_3(%arg0: i32, %arg1: i32) -> (i32, i32) {
    %c0_i32 = arith.constant 0 : i32
    %c0_i32_0 = arith.constant 0 : i32
    %c0_i32_1 = arith.constant 0 : i32
    return %c0_i32, %c0_i32_0 : i32, i32
  }
  func.func @transform_4(%arg0: i32, %arg1: i32) -> (i32, i32) {
    %c0_i32 = arith.constant 0 : i32
    %c0_i32_0 = arith.constant 0 : i32
    %c0_i32_1 = arith.constant 0 : i32
    return %c0_i32, %c0_i32_0 : i32, i32
  }
  func.func @transform_5(%arg0: i32, %arg1: i32) -> (i32, i32) {
    %c0_i32 = arith.constant 0 : i32
    %c0_i32_0 = arith.constant 0 : i32
    %c0_i32_1 = arith.constant 0 : i32
    return %c0_i32, %c0_i32_0 : i32, i32
  }
  func.func @transform_6(%arg0: i32, %arg1: i32) -> (i32, i32) {
    %c0_i32 = arith.constant 0 : i32
    %c0_i32_0 = arith.constant 0 : i32
    %c0_i32_1 = arith.constant 0 : i32
    return %c0_i32, %c0_i32_0 : i32, i32
  }
  func.func @transform_7(%arg0: i32, %arg1: i32) -> (i32, i32) {
    %c0_i32 = arith.constant 0 : i32
    %c0_i32_0 = arith.constant 0 : i32
    %c0_i32_1 = arith.constant 0 : i32
    return %c0_i32, %c0_i32_0 : i32, i32
  }
  func.func @transform_8(%arg0: i32, %arg1: i32) -> (i32, i32) {
    %c0_i32 = arith.constant 0 : i32
    %c0_i32_0 = arith.constant 0 : i32
    %c0_i32_1 = arith.constant 0 : i32
    return %c0_i32, %c0_i32_0 : i32, i32
  }
  func.func @transform_9(%arg0: i32, %arg1: i32) -> (i32, i32) {
    %c0_i32 = arith.constant 0 : i32
    %c0_i32_0 = arith.constant 0 : i32
    %c0_i32_1 = arith.constant 0 : i32
    return %c0_i32, %c0_i32_0 : i32, i32
  }
  func.func @transform_10(%arg0: i32, %arg1: i32) -> (i32, i32, i32, i32) {
    %c0_i32 = arith.constant 0 : i32
    %c0_i32_0 = arith.constant 0 : i32
    %c0_i32_1 = arith.constant 0 : i32
    return %arg0, %arg1, %c0_i32, %c0_i32_0 : i32, i32, i32, i32
  }
}

</mosaic_0001>

<llo_original>
// kernel: tpu_custom_call.1
$region0: #{tpu_custom_call.1}
  #allocation0 [shape = 'u32[]', space=smem, size = 0x4, offset = 0x4, fixed_abs, tag = 'smem constant byte address 0x4 - core index']
  #allocation1 [shape = 'u32[144,128]{1,0:T(1,128)}', space=vmem, size = 0x12000, scoped, tag = 'internal scratch']
  #allocation2 [shape = 'f32[10,18,128]{2,1,0:T(8,128)}', space=vmem, size = 0x1e000, scoped, tag = 'scratch operand']
  #allocation3 [shape = 'bf16[128,1152]{1,0:T(16,128)(2,1)}', space=vmem, size = 0x48000, scoped, tag = 'scratch operand']
  %s0 = inlined_call_operand.hbm [shape: bf16[2,16,16,128], index: 0, kind: input, shape index: {}]
  %s1 = inlined_call_operand.hbm [shape: bf16[128,128], index: 1, kind: input, shape index: {}]
  %s2 = inlined_call_operand.vmem [shape: f32[1,128], index: 2, kind: input, shape index: {}]
  %s3 = inlined_call_operand.vmem [shape: f32[1,128], index: 3, kind: input, shape index: {}]
  %s4 = inlined_call_operand.hbm [shape: bf16[1152,128], index: 4, kind: input, shape index: {}]
  %s5 = inlined_call_operand.vmem [shape: f32[1,128], index: 5, kind: input, shape index: {}]
  %s6 = inlined_call_operand.vmem [shape: f32[1,128], index: 6, kind: input, shape index: {}]
  %s7 = inlined_call_operand.hbm [shape: bf16[128,128], index: 7, kind: input, shape index: {}]
  %s8 = inlined_call_operand.vmem [shape: f32[1,128], index: 8, kind: input, shape index: {}]
  %s9 = inlined_call_operand.vmem [shape: f32[1,128], index: 9, kind: input, shape index: {}]
  %s10 = inlined_call_operand.hbm [shape: f32[2,16,16,128], index: 10, kind: output, shape index: {}]
  %s11 = sld [smem:[#allocation0]]
  $region97: #{tpu_custom_call.1} parent=0
    _
  %s13 = ssub.s32 1, %s11
  %s14 = scalar_select 0, %s13, %s11
  $region1: #{tpu_custom_call.1} parent=0
    #allocation4 [shape = 'u8[131072]{0}', space=vmem, size = 0x20000, scoped, tag = 'input window, operand 0']
    #allocation5 [shape = 's32[2]{0}', space=sflag, size = 0x8, scoped, tag = 'scoped memory for tpu_custom_call.1']
    #allocation6 [shape = 's32[2]{0}', space=sflag, size = 0x8, scoped, tag = 'scoped memory for tpu_custom_call.1']
    #allocation7 [shape = 'u8[32768]{0}', space=vmem, size = 0x8000, scoped, tag = 'input window, operand 1, single buffered']
    #allocation8 [shape = 's32[1]{0}', space=sflag, size = 0x4, scoped, tag = 'scoped memory for tpu_custom_call.1']
    #allocation9 [shape = 'u8[294912]{0}', space=vmem, size = 0x48000, scoped, tag = 'input window, operand 4, single buffered']
    #allocation10 [shape = 'u8[32768]{0}', space=vmem, size = 0x8000, scoped, tag = 'input window, operand 7, single buffered']
    #allocation11 [shape = 's32[1]{0}', space=sflag, size = 0x4, scoped, tag = 'scoped memory for tpu_custom_call.1']
    #allocation12 [shape = 'u8[131072]{0}', space=vmem, size = 0x20000, scoped, tag = 'output window, operand 0']
    %15 = vsyncpa [#allocation5], 0
    %s16 = scalar_lea.sflag [#allocation5], 1
    %17 = vsyncpa %s16, 0
    %18 = vsyncpa [#allocation8], 0
    %19 = vsyncpa [#allocation11], 0
    %20 = vsyncpa [#allocation6], 0
    %s21 = scalar_lea.sflag [#allocation6], 1
    %22 = vsyncpa %s21, 0
    loop: start=0, step=1, limit=6
    $region2: #{tpu_custom_call.1} parent=1 // loop_pre_header
      _
    $region3: #{tpu_custom_call.1} parent=1 // loop_header
      %s24 = sphi 0, %s28
      %p25 = scmp.ge.s32.totalorder %s24, 6
      %s31 = sphi 0, %s43
      %s32 = sphi 0, %s39
      %s33 = sphi 0, %s31
      %s34 = sphi 0, %s32
      %s35 = sphi 0, %s33
      %s36 = sphi 0, %s34
      %s46 = sphi 0, %s48
      %s49 = sphi 0, %s46
      %s50 = sphi 0, %s49
      %s66 = sphi 0, %s50
      %s70 = sphi 0, %s70
      %s72 = sphi 0, %s70
      %s73 = sphi 0, %s72
      %s87 = sphi 0, %s73
      %s91 = sphi 0, %s91
      %s93 = sphi 0, %s91
      %s94 = sphi 0, %s93
      %s108 = sphi 0, %s94
      %s112 = sphi 0, %s112
      %s114 = sphi 0, %s112
      %s115 = sphi 0, %s114
      %s129 = sphi 0, %s115
      %s133 = sphi 0, %s133
      %s135 = sphi 0, %s133
      %s136 = sphi 0, %s135
      %s150 = sphi 0, %s136
      %s154 = sphi 0, %s154
      %s156 = sphi 0, %s154
      %s157 = sphi 0, %s156
      %s171 = sphi 0, %s157
      %s175 = sphi 0, %s175
      %s177 = sphi 0, %s175
      %s178 = sphi 0, %s177
      %s192 = sphi 0, %s178
      %s196 = sphi 0, %s196
      %s198 = sphi 0, %s196
      %s199 = sphi 0, %s198
      %s213 = sphi 0, %s199
      %s217 = sphi 0, %s217
      %s219 = sphi 0, %s217
      %s220 = sphi 0, %s219
      %s234 = sphi 0, %s220
      %s238 = sphi 0, %s238
      %s240 = sphi 0, %s238
      %s241 = sphi 0, %s240
      %s255 = sphi 0, %s241
      %s263 = sphi 0, %s265
      %s266 = sphi 0, %s263
      %s267 = sphi 0, %s266
      %s283 = sphi 0, %s267
    $region4: #{tpu_custom_call.1} parent=1 // loop_header_branch
      %27 = sbr.rel (%p25) target = $region8
    $region5: #{tpu_custom_call.1} parent=1 // loop_body
      %s29 = ssub.s32 %s24, 1
      %s30 = ssub.s32 %s24, 2
      %s37 = sadd.s32 1, %s32
      %p38 = scmp.ge.s32.totalorder %s37, 2
      %s39 = scalar_select %p38, 0, %s37
      %s40 = sadd.s32 1, %s31
      %s41 = scalar_select %p38, %s40, %s31
      %p42 = scmp.ge.s32.totalorder %s41, 2
      %s43 = scalar_select %p42, 0, %s41
      %s44 = ssub.s32 %s31, %s43
      %p45 = scmp.eq.s32.totalorder %s44, 0
      %s47 = sadd.s32 %s46, 1
      %s48 = scalar_select %p45, %s46, %s47
      %p51 = pneg %p45
      %p52 = scmp.eq.s32.totalorder %s24, 3
      %p53 = por %p51, %p52
      %p54 = scmp.ne.s32.totalorder %s46, %s49
      %p55 = scmp.eq.s32.totalorder %s24, 0
      %p56 = por %p54, %p55
      %p57 = scmp.ne.s32.totalorder %s46, %s49
      %p58 = scmp.eq.s32.totalorder %s29, 3
      %p59 = por %p57, %p58
      %p60 = scmp.ne.s32.totalorder %s49, %s50
      %p61 = scmp.eq.s32.totalorder %s29, 0
      %p62 = por %p60, %p61
      %p63 = scmp.ne.s32.totalorder %s49, %s50
      %p64 = scmp.eq.s32.totalorder %s30, 3
      %p65 = por %p63, %p64
      %p67 = scmp.ne.s32.totalorder %s50, %s66
      %p68 = scmp.eq.s32.totalorder %s30, 0
      %p69 = por %p67, %p68
      %s71 = sadd.s32 %s70, 1
      %p74 = scmp.eq.s32.totalorder %s24, 3
      %p75 = scmp.ne.s32.totalorder %s70, %s72
      %p76 = scmp.eq.s32.totalorder %s24, 0
      %p77 = por %p75, %p76
      %p78 = scmp.ne.s32.totalorder %s70, %s72
      %p79 = scmp.eq.s32.totalorder %s29, 3
      %p80 = por %p78, %p79
      %p81 = scmp.ne.s32.totalorder %s72, %s73
      %p82 = scmp.eq.s32.totalorder %s29, 0
      %p83 = por %p81, %p82
      %p84 = scmp.ne.s32.totalorder %s72, %s73
      %p85 = scmp.eq.s32.totalorder %s30, 3
      %p86 = por %p84, %p85
      %p88 = scmp.ne.s32.totalorder %s73, %s87
      %p89 = scmp.eq.s32.totalorder %s30, 0
      %p90 = por %p88, %p89
      %s92 = sadd.s32 %s91, 1
      %p95 = scmp.eq.s32.totalorder %s24, 3
      %p96 = scmp.ne.s32.totalorder %s91, %s93
      %p97 = scmp.eq.s32.totalorder %s24, 0
      %p98 = por %p96, %p97
      %p99 = scmp.ne.s32.totalorder %s91, %s93
      %p100 = scmp.eq.s32.totalorder %s29, 3
      %p101 = por %p99, %p100
      %p102 = scmp.ne.s32.totalorder %s93, %s94
      %p103 = scmp.eq.s32.totalorder %s29, 0
      %p104 = por %p102, %p103
      %p105 = scmp.ne.s32.totalorder %s93, %s94
      %p106 = scmp.eq.s32.totalorder %s30, 3
      %p107 = por %p105, %p106
      %p109 = scmp.ne.s32.totalorder %s94, %s108
      %p110 = scmp.eq.s32.totalorder %s30, 0
      %p111 = por %p109, %p110
      %s113 = sadd.s32 %s112, 1
      %p116 = scmp.eq.s32.totalorder %s24, 3
      %p117 = scmp.ne.s32.totalorder %s112, %s114
      %p118 = scmp.eq.s32.totalorder %s24, 0
      %p119 = por %p117, %p118
      %p120 = scmp.ne.s32.totalorder %s112, %s114
      %p121 = scmp.eq.s32.totalorder %s29, 3
      %p122 = por %p120, %p121
      %p123 = scmp.ne.s32.totalorder %s114, %s115
      %p124 = scmp.eq.s32.totalorder %s29, 0
      %p125 = por %p123, %p124
      %p126 = scmp.ne.s32.totalorder %s114, %s115
      %p127 = scmp.eq.s32.totalorder %s30, 3
      %p128 = por %p126, %p127
      %p130 = scmp.ne.s32.totalorder %s115, %s129
      %p131 = scmp.eq.s32.totalorder %s30, 0
      %p132 = por %p130, %p131
      %s134 = sadd.s32 %s133, 1
      %p137 = scmp.eq.s32.totalorder %s24, 3
      %p138 = scmp.ne.s32.totalorder %s133, %s135
      %p139 = scmp.eq.s32.totalorder %s24, 0
      %p140 = por %p138, %p139
      %p141 = scmp.ne.s32.totalorder %s133, %s135
      %p142 = scmp.eq.s32.totalorder %s29, 3
      %p143 = por %p141, %p142
      %p144 = scmp.ne.s32.totalorder %s135, %s136
      %p145 = scmp.eq.s32.totalorder %s29, 0
      %p146 = por %p144, %p145
      %p147 = scmp.ne.s32.totalorder %s135, %s136
      %p148 = scmp.eq.s32.totalorder %s30, 3
      %p149 = por %p147, %p148
      %p151 = scmp.ne.s32.totalorder %s136, %s150
      %p152 = scmp.eq.s32.totalorder %s30, 0
      %p153 = por %p151, %p152
      %s155 = sadd.s32 %s154, 1
      %p158 = scmp.eq.s32.totalorder %s24, 3
      %p159 = scmp.ne.s32.totalorder %s154, %s156
      %p160 = scmp.eq.s32.totalorder %s24, 0
      %p161 = por %p159, %p160
      %p162 = scmp.ne.s32.totalorder %s154, %s156
      %p163 = scmp.eq.s32.totalorder %s29, 3
      %p164 = por %p162, %p163
      %p165 = scmp.ne.s32.totalorder %s156, %s157
      %p166 = scmp.eq.s32.totalorder %s29, 0
      %p167 = por %p165, %p166
      %p168 = scmp.ne.s32.totalorder %s156, %s157
      %p169 = scmp.eq.s32.totalorder %s30, 3
      %p170 = por %p168, %p169
      %p172 = scmp.ne.s32.totalorder %s157, %s171
      %p173 = scmp.eq.s32.totalorder %s30, 0
      %p174 = por %p172, %p173
      %s176 = sadd.s32 %s175, 1
      %p179 = scmp.eq.s32.totalorder %s24, 3
      %p180 = scmp.ne.s32.totalorder %s175, %s177
      %p181 = scmp.eq.s32.totalorder %s24, 0
      %p182 = por %p180, %p181
      %p183 = scmp.ne.s32.totalorder %s175, %s177
      %p184 = scmp.eq.s32.totalorder %s29, 3
      %p185 = por %p183, %p184
      %p186 = scmp.ne.s32.totalorder %s177, %s178
      %p187 = scmp.eq.s32.totalorder %s29, 0
      %p188 = por %p186, %p187
      %p189 = scmp.ne.s32.totalorder %s177, %s178
      %p190 = scmp.eq.s32.totalorder %s30, 3
      %p191 = por %p189, %p190
      %p193 = scmp.ne.s32.totalorder %s178, %s192
      %p194 = scmp.eq.s32.totalorder %s30, 0
      %p195 = por %p193, %p194
      %s197 = sadd.s32 %s196, 1
      %p200 = scmp.eq.s32.totalorder %s24, 3
      %p201 = scmp.ne.s32.totalorder %s196, %s198
      %p202 = scmp.eq.s32.totalorder %s24, 0
      %p203 = por %p201, %p202
      %p204 = scmp.ne.s32.totalorder %s196, %s198
      %p205 = scmp.eq.s32.totalorder %s29, 3
      %p206 = por %p204, %p205
      %p207 = scmp.ne.s32.totalorder %s198, %s199
      %p208 = scmp.eq.s32.totalorder %s29, 0
      %p209 = por %p207, %p208
      %p210 = scmp.ne.s32.totalorder %s198, %s199
      %p211 = scmp.eq.s32.totalorder %s30, 3
      %p212 = por %p210, %p211
      %p214 = scmp.ne.s32.totalorder %s199, %s213
      %p215 = scmp.eq.s32.totalorder %s30, 0
      %p216 = por %p214, %p215
      %s218 = sadd.s32 %s217, 1
      %p221 = scmp.eq.s32.totalorder %s24, 3
      %p222 = scmp.ne.s32.totalorder %s217, %s219
      %p223 = scmp.eq.s32.totalorder %s24, 0
      %p224 = por %p222, %p223
      %p225 = scmp.ne.s32.totalorder %s217, %s219
      %p226 = scmp.eq.s32.totalorder %s29, 3
      %p227 = por %p225, %p226
      %p228 = scmp.ne.s32.totalorder %s219, %s220
      %p229 = scmp.eq.s32.totalorder %s29, 0
      %p230 = por %p228, %p229
      %p231 = scmp.ne.s32.totalorder %s219, %s220
      %p232 = scmp.eq.s32.totalorder %s30, 3
      %p233 = por %p231, %p232
      %p235 = scmp.ne.s32.totalorder %s220, %s234
      %p236 = scmp.eq.s32.totalorder %s30, 0
      %p237 = por %p235, %p236
      %s239 = sadd.s32 %s238, 1
      %p242 = scmp.eq.s32.totalorder %s24, 3
      %p243 = scmp.ne.s32.totalorder %s238, %s240
      %p244 = scmp.eq.s32.totalorder %s24, 0
      %p245 = por %p243, %p244
      %p246 = scmp.ne.s32.totalorder %s238, %s240
      %p247 = scmp.eq.s32.totalorder %s29, 3
      %p248 = por %p246, %p247
      %p249 = scmp.ne.s32.totalorder %s240, %s241
      %p250 = scmp.eq.s32.totalorder %s29, 0
      %p251 = por %p249, %p250
      %p252 = scmp.ne.s32.totalorder %s240, %s241
      %p253 = scmp.eq.s32.totalorder %s30, 3
      %p254 = por %p252, %p253
      %p256 = scmp.ne.s32.totalorder %s241, %s255
      %p257 = scmp.eq.s32.totalorder %s30, 0
      %p258 = por %p256, %p257
      %s259 = ssub.s32 %s31, %s43
      %s260 = ssub.s32 %s32, %s39
      %s261 = sor.u32 %s259, %s260
      %p262 = scmp.eq.s32.totalorder %s261, 0
      %s264 = sadd.s32 %s263, 1
      %s265 = scalar_select %p262, %s263, %s264
      %p268 = pneg %p262
      %p269 = scmp.eq.s32.totalorder %s24, 3
      %p270 = por %p268, %p269
      %p271 = scmp.ne.s32.totalorder %s263, %s266
      %p272 = scmp.eq.s32.totalorder %s24, 0
      %p273 = por %p271, %p272
      %p274 = scmp.ne.s32.totalorder %s263, %s266
      %p275 = scmp.eq.s32.totalorder %s29, 3
      %p276 = por %p274, %p275
      %p277 = scmp.ne.s32.totalorder %s266, %s267
      %p278 = scmp.eq.s32.totalorder %s29, 0
      %p279 = por %p277, %p278
      %p280 = scmp.ne.s32.totalorder %s266, %s267
      %p281 = scmp.eq.s32.totalorder %s30, 3
      %p282 = por %p280, %p281
      %p284 = scmp.ne.s32.totalorder %s267, %s283
      %p285 = scmp.eq.s32.totalorder %s30, 0
      %p286 = por %p284, %p285
      %p287 = scmp.le.s32.totalorder 1, %s24
      %p288 = scmp.lt.s32.totalorder %s24, 5
      %p289 = pnand %p287, %p288
      %p290 = pneg %p289
      // Predicated region
      $region9: #{tpu_custom_call.1} parent=5 // pred_check
        _
      $region10: #{tpu_custom_call.1} parent=5 // pred_check_branch
        %292 = sbr.rel (%p289) target = $region12
      $region11: #{tpu_custom_call.1} parent=5 // pred_region
        %s293 = ssub.s32 %s24, 1
        // Predicated region
        $region13: #{tpu_custom_call.1} parent=11 // pred_check
          %p294 = pneg %p83
        $region14: #{tpu_custom_call.1} parent=11 // pred_check_branch
          %296 = sbr.rel (%p294) target = $region16
        $region15: #{tpu_custom_call.1} parent=11 // pred_region
          %s298 = ssub.s32 1024, 1024
          %299 = vsyncadd [#allocation8], %s298
          %s300 = sshll.u32 [#allocation7], 4
          %s301 = int_to_ptr.vmem [resolvable:$true] %s300
          %306 = dma.hbm_to_vmem [thread:$0]  %s1, 1024, %s301, [#allocation8], 64, 64, 4
        $region16: #{tpu_custom_call.1} parent=11 // pred_fallthru
          _
        // Predicated region
        $region17: #{tpu_custom_call.1} parent=11 // pred_check
          %p307 = pneg %p104
        $region18: #{tpu_custom_call.1} parent=11 // pred_check_branch
          %309 = sbr.rel (%p307) target = $region20
        $region19: #{tpu_custom_call.1} parent=11 // pred_region
          _
        $region20: #{tpu_custom_call.1} parent=11 // pred_fallthru
          _
        // Predicated region
        $region21: #{tpu_custom_call.1} parent=11 // pred_check
          %p310 = pneg %p125
        $region22: #{tpu_custom_call.1} parent=11 // pred_check_branch
          %312 = sbr.rel (%p310) target = $region24
        $region23: #{tpu_custom_call.1} parent=11 // pred_region
          _
        $region24: #{tpu_custom_call.1} parent=11 // pred_fallthru
          _
        // Predicated region
        $region25: #{tpu_custom_call.1} parent=11 // pred_check
          %p313 = pneg %p146
        $region26: #{tpu_custom_call.1} parent=11 // pred_check_branch
          %315 = sbr.rel (%p313) target = $region28
        $region27: #{tpu_custom_call.1} parent=11 // pred_region
          %s317 = ssub.s32 9216, 9216
          %318 = vsyncadd [#allocation8], %s317
          %s319 = sshll.u32 [#allocation9], 4
          %s320 = int_to_ptr.vmem [resolvable:$true] %s319
          %325 = dma.hbm_to_vmem [thread:$0]  %s4, 9216, %s320, [#allocation8], 64, 64, 4
        $region28: #{tpu_custom_call.1} parent=11 // pred_fallthru
          _
        // Predicated region
        $region29: #{tpu_custom_call.1} parent=11 // pred_check
          %p326 = pneg %p167
        $region30: #{tpu_custom_call.1} parent=11 // pred_check_branch
          %328 = sbr.rel (%p326) target = $region32
        $region31: #{tpu_custom_call.1} parent=11 // pred_region
          _
        $region32: #{tpu_custom_call.1} parent=11 // pred_fallthru
          _
        // Predicated region
        $region33: #{tpu_custom_call.1} parent=11 // pred_check
          %p329 = pneg %p188
        $region34: #{tpu_custom_call.1} parent=11 // pred_check_branch
          %331 = sbr.rel (%p329) target = $region36
        $region35: #{tpu_custom_call.1} parent=11 // pred_region
          _
        $region36: #{tpu_custom_call.1} parent=11 // pred_fallthru
          _
        // Predicated region
        $region37: #{tpu_custom_call.1} parent=11 // pred_check
          %p332 = pneg %p209
        $region38: #{tpu_custom_call.1} parent=11 // pred_check_branch
          %334 = sbr.rel (%p332) target = $region40
        $region39: #{tpu_custom_call.1} parent=11 // pred_region
          %s336 = ssub.s32 1024, 1024
          %337 = vsyncadd [#allocation11], %s336
          %s338 = sshll.u32 [#allocation10], 4
          %s339 = int_to_ptr.vmem [resolvable:$true] %s338
          %344 = dma.hbm_to_vmem [thread:$0]  %s7, 1024, %s339, [#allocation11], 64, 64, 4
        $region40: #{tpu_custom_call.1} parent=11 // pred_fallthru
          _
        // Predicated region
        $region41: #{tpu_custom_call.1} parent=11 // pred_check
          %p345 = pneg %p230
        $region42: #{tpu_custom_call.1} parent=11 // pred_check_branch
          %347 = sbr.rel (%p345) target = $region44
        $region43: #{tpu_custom_call.1} parent=11 // pred_region
          _
        $region44: #{tpu_custom_call.1} parent=11 // pred_fallthru
          _
        // Predicated region
        $region45: #{tpu_custom_call.1} parent=11 // pred_check
          %p348 = pneg %p251
        $region46: #{tpu_custom_call.1} parent=11 // pred_check_branch
          %350 = sbr.rel (%p348) target = $region48
        $region47: #{tpu_custom_call.1} parent=11 // pred_region
          _
        $region48: #{tpu_custom_call.1} parent=11 // pred_fallthru
          _
      $region12: #{tpu_custom_call.1} parent=5 // pred_fallthru
        _
      %p351 = scmp.lt.s32.totalorder %s24, 4
      // Predicated region
      $region49: #{tpu_custom_call.1} parent=5 // pred_check
        %p352 = pneg %p351
      $region50: #{tpu_custom_call.1} parent=5 // pred_check_branch
        %354 = sbr.rel (%p352) target = $region52
      $region51: #{tpu_custom_call.1} parent=5 // pred_region
        // Predicated region
        $region53: #{tpu_custom_call.1} parent=51 // pred_check
          %p355 = pneg %p56
        $region54: #{tpu_custom_call.1} parent=51 // pred_check_branch
          %357 = sbr.rel (%p355) target = $region56
        $region55: #{tpu_custom_call.1} parent=51 // pred_region
          %s358 = sand.u32 %s46, 1
          %s359 = scalar_lea.sflag [#allocation5], %s358
          %s360 = sand.u32 %s46, 1
          %s361 = smul.addr %s360, 128
          %s362 = scalar_lea.vmem [#allocation4], %s361
          %s364 = ssub.s32 2048, 2048
          %365 = vsyncadd %s359, %s364
          %s366 = smul.addr %s31, 32
          %s367 = smul.addr %s366, 64
          %s368 = scalar_lea.hbm %s0, %s367
          %s369 = sshll.u32 %s362, 4
          %s370 = int_to_ptr.vmem [resolvable:$true] %s369
          %375 = dma.hbm_to_vmem [thread:$0]  %s368, 2048, %s370, %s359, 64, 64, 4
        $region56: #{tpu_custom_call.1} parent=51 // pred_fallthru
          _
      $region52: #{tpu_custom_call.1} parent=5 // pred_fallthru
        _
      %p376 = scmp.le.s32.totalorder 1, %s24
      %p377 = scmp.lt.s32.totalorder %s24, 5
      %p378 = pnand %p376, %p377
      %p379 = pneg %p378
      // Predicated region
      $region57: #{tpu_custom_call.1} parent=5 // pred_check
        _
      $region58: #{tpu_custom_call.1} parent=5 // pred_check_branch
        %381 = sbr.rel (%p378) target = $region60
      $region59: #{tpu_custom_call.1} parent=5 // pred_region
        %s382 = ssub.s32 %s24, 1
        %s383 = sand.u32 %s49, 1
        %s384 = scalar_lea.sflag [#allocation5], %s383
        %s385 = sand.u32 %s49, 1
        %s386 = smul.addr %s385, 128
        %s387 = scalar_lea.vmem [#allocation4], %s386
        // Predicated region
        $region61: #{tpu_custom_call.1} parent=59 // pred_check
          %p388 = pneg %p62
        $region62: #{tpu_custom_call.1} parent=59 // pred_check_branch
          %390 = sbr.rel (%p388) target = $region64
        $region63: #{tpu_custom_call.1} parent=59 // pred_region
          %391 = dma.done %s384, 2048
        $region64: #{tpu_custom_call.1} parent=59 // pred_fallthru
          _
        // Predicated region
        $region65: #{tpu_custom_call.1} parent=59 // pred_check
          %p392 = pneg %p83
        $region66: #{tpu_custom_call.1} parent=59 // pred_check_branch
          %394 = sbr.rel (%p392) target = $region68
        $region67: #{tpu_custom_call.1} parent=59 // pred_region
          %395 = dma.done [#allocation8], 1024
        $region68: #{tpu_custom_call.1} parent=59 // pred_fallthru
          _
        // Predicated region
        $region69: #{tpu_custom_call.1} parent=59 // pred_check
          %p396 = pneg %p146
        $region70: #{tpu_custom_call.1} parent=59 // pred_check_branch
          %398 = sbr.rel (%p396) target = $region72
        $region71: #{tpu_custom_call.1} parent=59 // pred_region
          %399 = dma.done [#allocation8], 9216
        $region72: #{tpu_custom_call.1} parent=59 // pred_fallthru
          _
        // Predicated region
        $region73: #{tpu_custom_call.1} parent=59 // pred_check
          %p400 = pneg %p209
        $region74: #{tpu_custom_call.1} parent=59 // pred_check_branch
          %402 = sbr.rel (%p400) target = $region76
        $region75: #{tpu_custom_call.1} parent=59 // pred_region
          %403 = dma.done [#allocation11], 1024
        $region76: #{tpu_custom_call.1} parent=59 // pred_fallthru
          _
        %s404 = sand.u32 %s49, 1
        %s405 = scalar_lea.sflag [#allocation5], %s404
        %s406 = sand.u32 %s49, 1
        %s407 = smul.addr %s406, 128
        %s408 = scalar_lea.vmem [#allocation4], %s407
        %p409 = pneg %p62
        %p410 = pneg %p59
        %p411 = pneg %p83
        %p412 = pneg %p80
        %p413 = pneg %p104
        %p414 = pneg %p101
        %p415 = pneg %p125
        %p416 = pneg %p122
        %p417 = pneg %p146
        %p418 = pneg %p143
        %p419 = pneg %p167
        %p420 = pneg %p164
        %p421 = pneg %p188
        %p422 = pneg %p185
        %p423 = pneg %p209
        %p424 = pneg %p206
        %p425 = pneg %p230
        %p426 = pneg %p227
        %p427 = pneg %p251
        %p428 = pneg %p248
        %p429 = pneg %p279
        %p430 = pneg %p276
        %s431 = sand.u32 %s266, 1
        %s432 = scalar_lea.sflag [#allocation6], %s431
        %s433 = sand.u32 %s266, 1
        %s434 = smul.addr %s433, 128
        %s435 = scalar_lea.vmem [#allocation12], %s434
        %s436 = smul.u32 8, %s34
        %s438 = smul.u32 %s34, 8
        %s439 = smul.u32 %s438, 2
        %s440 = smul.addr %s439, 4
        %s441 = scalar_lea.vmem %s387, %s440 [#allocation4]
        %v442 = vld [vmem:[%s441] sm:$0xf]
        %v443 = vld [vmem:[%s441 + $0x4] sm:$0xf]
        %v444 = vld [vmem:[%s441 + $0x8] sm:$0xf]
        %v445 = vld [vmem:[%s441 + $0xc] sm:$0xf]
        %v446 = vld [vmem:[%s441 + $0x10] sm:$0xf]
        %v447 = vld [vmem:[%s441 + $0x14] sm:$0xf]
        %v448 = vld [vmem:[%s441 + $0x18] sm:$0xf]
        %v449 = vld [vmem:[%s441 + $0x1c] sm:$0xf]
        %v450 = vld [vmem:[%s441 + $0x20] sm:$0xf]
        %v451 = vld [vmem:[%s441 + $0x24] sm:$0xf]
        %v452 = vld [vmem:[%s441 + $0x28] sm:$0xf]
        %v453 = vld [vmem:[%s441 + $0x2c] sm:$0xf]
        %v454 = vld [vmem:[%s441 + $0x30] sm:$0xf]
        %v455 = vld [vmem:[%s441 + $0x34] sm:$0xf]
        %v456 = vld [vmem:[%s441 + $0x38] sm:$0xf]
        %v457 = vld [vmem:[%s441 + $0x3c] sm:$0xf]
        %v458 = vld [vmem:[#allocation7] sm:$0xf]
        %v459 = vld [vmem:[#allocation7 + $0x4] sm:$0xf]
        %v460 = vld [vmem:[#allocation7 + $0x8] sm:$0xf]
        %v461 = vld [vmem:[#allocation7 + $0xc] sm:$0xf]
        %v462 = vld [vmem:[#allocation7 + $0x10] sm:$0xf]
        %v463 = vld [vmem:[#allocation7 + $0x14] sm:$0xf]
        %v464 = vld [vmem:[#allocation7 + $0x18] sm:$0xf]
        %v465 = vld [vmem:[#allocation7 + $0x1c] sm:$0xf]
        %v466 = vld [vmem:[#allocation7 + $0x20] sm:$0xf]
        %v467 = vld [vmem:[#allocation7 + $0x24] sm:$0xf]
        %v468 = vld [vmem:[#allocation7 + $0x28] sm:$0xf]
        %v469 = vld [vmem:[#allocation7 + $0x2c] sm:$0xf]
        %v470 = vld [vmem:[#allocation7 + $0x30] sm:$0xf]
        %v471 = vld [vmem:[#allocation7 + $0x34] sm:$0xf]
        %v472 = vld [vmem:[#allocation7 + $0x38] sm:$0xf]
        %v473 = vld [vmem:[#allocation7 + $0x3c] sm:$0xf]
        %v490 = vunpack.c.l.b16 %v442
        %v491 = vunpack.c.l.b16 %v443
        %v492 = vunpack.c.l.b16 %v444
        %v493 = vunpack.c.l.b16 %v445
        %v494 = vunpack.c.l.b16 %v446
        %v495 = vunpack.c.l.b16 %v447
        %v496 = vunpack.c.l.b16 %v448
        %v497 = vunpack.c.l.b16 %v449
        %v498 = vunpack.c.l.b16 %v450
        %v499 = vunpack.c.l.b16 %v451
        %v500 = vunpack.c.l.b16 %v452
        %v501 = vunpack.c.l.b16 %v453
        %v502 = vunpack.c.l.b16 %v454
        %v503 = vunpack.c.l.b16 %v455
        %v504 = vunpack.c.l.b16 %v456
        %v505 = vunpack.c.l.b16 %v457
        %v506 = vpack.c.b16 %v491, %v490
        %v507 = vpack.c.b16 %v493, %v492
        %v508 = vpack.c.b16 %v495, %v494
        %v509 = vpack.c.b16 %v497, %v496
        %v510 = vpack.c.b16 %v499, %v498
        %v511 = vpack.c.b16 %v501, %v500
        %v512 = vpack.c.b16 %v503, %v502
        %v513 = vpack.c.b16 %v505, %v504
        %v538 = vunpack.c.l.b16 %v458
        %v539 = vunpack.c.l.b16 %v459
        %v540 = vunpack.c.l.b16 %v460
        %v541 = vunpack.c.l.b16 %v461
        %v542 = vunpack.c.l.b16 %v462
        %v543 = vunpack.c.l.b16 %v463
        %v544 = vunpack.c.l.b16 %v464
        %v545 = vunpack.c.l.b16 %v465
        %v546 = vunpack.c.l.b16 %v466
        %v547 = vunpack.c.l.b16 %v467
        %v548 = vunpack.c.l.b16 %v468
        %v549 = vunpack.c.l.b16 %v469
        %v550 = vunpack.c.l.b16 %v470
        %v551 = vunpack.c.l.b16 %v471
        %v552 = vunpack.c.l.b16 %v472
        %v553 = vunpack.c.l.b16 %v473
        %v554 = vpack.c.b16 %v539, %v538
        %v555 = vpack.c.b16 %v541, %v540
        %v556 = vpack.c.b16 %v543, %v542
        %v557 = vpack.c.b16 %v545, %v544
        %v558 = vpack.c.b16 %v547, %v546
        %v559 = vpack.c.b16 %v549, %v548
        %v560 = vpack.c.b16 %v551, %v550
        %v561 = vpack.c.b16 %v553, %v552
        %570 = vmatprep.subr.bf16.mxu0 0
        %571 = vmatpush1.bf16.msra.mxu0 %v554
        %572 = vmatprep.subr.bf16.mxu0 0
        %573 = vmatpush1.bf16.msra.mxu0 %v555
        %574 = vmatprep.subr.bf16.mxu0 0
        %575 = vmatpush1.bf16.msra.mxu0 %v556
        %576 = vmatprep.subr.bf16.mxu0 0
        %577 = vmatpush1.bf16.msra.mxu0 %v557
        %578 = vmatprep.subr.bf16.mxu0 0
        %579 = vmatpush1.bf16.msra.mxu0 %v558
        %580 = vmatprep.subr.bf16.mxu0 0
        %581 = vmatpush1.bf16.msra.mxu0 %v559
        %582 = vmatprep.subr.bf16.mxu0 0
        %583 = vmatpush1.bf16.msra.mxu0 %v560
        %584 = vmatprep.subr.bf16.mxu0 0
        %585 = vmatpush1.bf16.msra.mxu0 %v561
        %586 = vmatprep.subr.bf16.mxu0 0
        %587 = vmatpush1.bf16.msra.mxu0 0
        %588 = vmatprep.subr.bf16.mxu0 0
        %589 = vmatpush1.bf16.msra.mxu0 0
        %590 = vmatprep.subr.bf16.mxu0 0
        %591 = vmatpush1.bf16.msra.mxu0 0
        %592 = vmatprep.subr.bf16.mxu0 0
        %593 = vmatpush1.bf16.msra.mxu0 0
        %594 = vmatprep.subr.bf16.mxu0 0
        %595 = vmatpush1.bf16.msra.mxu0 0
        %596 = vmatprep.subr.bf16.mxu0 0
        %597 = vmatpush1.bf16.msra.mxu0 0
        %598 = vmatprep.subr.bf16.mxu0 0
        %599 = vmatpush1.bf16.msra.mxu0 0
        %600 = vmatprep.subr.bf16.mxu0 0
        %601 = vmatpush1.bf16.msra.mxu0 0
        %602 = vmatprep.mubr.bf16.mxu0 0
        %603 = vmatmul.mubr.bf16.gmra.mrb[0].mxu0 %v506
        %v604 = vpop.f32.mrb[0].mxu0
        %v605 = vadd.f32 0.0, %v604
        %v606 = vpop.f32.mrb[0].mxu0
        %v607 = vpop.f32.mrb[0].mxu0
        %v608 = vadd.f32 0.0, %v607
        %v609 = vpop.f32.mrb[0].mxu0
        %610 = vmatprep.mubr.bf16.mxu0 0
        %611 = vmatmul.mubr.bf16.gmra.mrb[0].mxu0 %v507
        %v612 = vpop.f32.mrb[0].mxu0
        %v613 = vadd.f32 0.0, %v612
        %v614 = vpop.f32.mrb[0].mxu0
        %v615 = vpop.f32.mrb[0].mxu0
        %v616 = vadd.f32 0.0, %v615
        %v617 = vpop.f32.mrb[0].mxu0
        %618 = vmatprep.mubr.bf16.mxu0 0
        %619 = vmatmul.mubr.bf16.gmra.mrb[0].mxu0 %v508
        %v620 = vpop.f32.mrb[0].mxu0
        %v621 = vadd.f32 0.0, %v620
        %v622 = vpop.f32.mrb[0].mxu0
        %v623 = vpop.f32.mrb[0].mxu0
        %v624 = vadd.f32 0.0, %v623
        %v625 = vpop.f32.mrb[0].mxu0
        %626 = vmatprep.mubr.bf16.mxu0 0
        %627 = vmatmul.mubr.bf16.gmra.mrb[0].mxu0 %v509
        %v628 = vpop.f32.mrb[0].mxu0
        %v629 = vadd.f32 0.0, %v628
        %v630 = vpop.f32.mrb[0].mxu0
        %v631 = vpop.f32.mrb[0].mxu0
        %v632 = vadd.f32 0.0, %v631
        %v633 = vpop.f32.mrb[0].mxu0
        %634 = vmatprep.mubr.bf16.mxu0 0
        %635 = vmatmul.mubr.bf16.gmra.mrb[0].mxu0 %v510
        %v636 = vpop.f32.mrb[0].mxu0
        %v637 = vadd.f32 0.0, %v636
        %v638 = vpop.f32.mrb[0].mxu0
        %v639 = vpop.f32.mrb[0].mxu0
        %v640 = vadd.f32 0.0, %v639
        %v641 = vpop.f32.mrb[0].mxu0
        %642 = vmatprep.mubr.bf16.mxu0 0
        %643 = vmatmul.mubr.bf16.gmra.mrb[0].mxu0 %v511
        %v644 = vpop.f32.mrb[0].mxu0
        %v645 = vadd.f32 0.0, %v644
        %v646 = vpop.f32.mrb[0].mxu0
        %v647 = vpop.f32.mrb[0].mxu0
        %v648 = vadd.f32 0.0, %v647
        %v649 = vpop.f32.mrb[0].mxu0
        %650 = vmatprep.mubr.bf16.mxu0 0
        %651 = vmatmul.mubr.bf16.gmra.mrb[0].mxu0 %v512
        %v652 = vpop.f32.mrb[0].mxu0
        %v653 = vadd.f32 0.0, %v652
        %v654 = vpop.f32.mrb[0].mxu0
        %v655 = vpop.f32.mrb[0].mxu0
        %v656 = vadd.f32 0.0, %v655
        %v657 = vpop.f32.mrb[0].mxu0
        %658 = vmatprep.mubr.bf16.mxu0 0
        %659 = vmatmul.mubr.bf16.gmra.mrb[0].mxu0 %v513
        %v660 = vpop.f32.mrb[0].mxu0
        %v661 = vadd.f32 0.0, %v660
        %v662 = vpop.f32.mrb[0].mxu0
        %v663 = vpop.f32.mrb[0].mxu0
        %v664 = vadd.f32 0.0, %v663
        %v665 = vpop.f32.mrb[0].mxu0
        %666 = vdwg.mxu0
        %v667 = vld [vmem:[%s2] sm:$0x1]
        %v669 = vlaneseq
        %v670 = vshrl.u32 %v669, 7
        %v671 = vsub.s32 0, %v670
        %v672 = vrot.slane %v667, %v671
        %v674 = vmul.f32 %v605, %v672
        %v675 = vmul.f32 %v608, %v672
        %v676 = vmul.f32 %v613, %v672
        %v677 = vmul.f32 %v616, %v672
        %v678 = vmul.f32 %v621, %v672
        %v679 = vmul.f32 %v624, %v672
        %v680 = vmul.f32 %v629, %v672
        %v681 = vmul.f32 %v632, %v672
        %v682 = vmul.f32 %v637, %v672
        %v683 = vmul.f32 %v640, %v672
        %v684 = vmul.f32 %v645, %v672
        %v685 = vmul.f32 %v648, %v672
        %v686 = vmul.f32 %v653, %v672
        %v687 = vmul.f32 %v656, %v672
        %v688 = vmul.f32 %v661, %v672
        %v689 = vmul.f32 %v664, %v672
        %v690 = vld [vmem:[%s3] sm:$0x1]
        %v692 = vlaneseq
        %v693 = vshrl.u32 %v692, 7
        %v694 = vsub.s32 0, %v693
        %v695 = vrot.slane %v690, %v694
        %v697 = vadd.f32 %v674, %v695
        %v698 = vadd.f32 %v675, %v695
        %v699 = vadd.f32 %v676, %v695
        %v700 = vadd.f32 %v677, %v695
        %v701 = vadd.f32 %v678, %v695
        %v702 = vadd.f32 %v679, %v695
        %v703 = vadd.f32 %v680, %v695
        %v704 = vadd.f32 %v681, %v695
        %v705 = vadd.f32 %v682, %v695
        %v706 = vadd.f32 %v683, %v695
        %v707 = vadd.f32 %v684, %v695
        %v708 = vadd.f32 %v685, %v695
        %v709 = vadd.f32 %v686, %v695
        %v710 = vadd.f32 %v687, %v695
        %v711 = vadd.f32 %v688, %v695
        %v712 = vadd.f32 %v689, %v695
        %v713 = vmax.f32 %v697, 0.0
        %v714 = vmax.f32 %v698, 0.0
        %v715 = vmax.f32 %v699, 0.0
        %v716 = vmax.f32 %v700, 0.0
        %v717 = vmax.f32 %v701, 0.0
        %v718 = vmax.f32 %v702, 0.0
        %v719 = vmax.f32 %v703, 0.0
        %v720 = vmax.f32 %v704, 0.0
        %v721 = vmax.f32 %v705, 0.0
        %v722 = vmax.f32 %v706, 0.0
        %v723 = vmax.f32 %v707, 0.0
        %v724 = vmax.f32 %v708, 0.0
        %v725 = vmax.f32 %v709, 0.0
        %v726 = vmax.f32 %v710, 0.0
        %v727 = vmax.f32 %v711, 0.0
        %v728 = vmax.f32 %v712, 0.0
        %vm745 = vcmask 1040384
        %v746 = vrot.slane %v713, 7
        %v747 = vrot.slane %v714, 7
        %v748 = vsel %vm745, %v746, %v747
        %v749 = vrot.slane %v715, 7
        %v750 = vrot.slane %v716, 7
        %v751 = vsel %vm745, %v749, %v750
        %v752 = vrot.slane %v717, 7
        %v753 = vrot.slane %v718, 7
        %v754 = vsel %vm745, %v752, %v753
        %v755 = vrot.slane %v719, 7
        %v756 = vrot.slane %v720, 7
        %v757 = vsel %vm745, %v755, %v756
        %v758 = vrot.slane %v721, 7
        %v759 = vrot.slane %v722, 7
        %v760 = vsel %vm745, %v758, %v759
        %v761 = vrot.slane %v723, 7
        %v762 = vrot.slane %v724, 7
        %v763 = vsel %vm745, %v761, %v762
        %v764 = vrot.slane %v725, 7
        %v765 = vrot.slane %v726, 7
        %v766 = vsel %vm745, %v764, %v765
        %v767 = vrot.slane %v727, 7
        %v768 = vrot.slane %v728, 7
        %v769 = vsel %vm745, %v767, %v768
        %v794 = vsel %vm745, 0.0, %v746
        %v795 = vsel %vm745, 0.0, %v749
        %v796 = vsel %vm745, 0.0, %v752
        %v797 = vsel %vm745, 0.0, %v755
        %v798 = vsel %vm745, 0.0, %v758
        %v799 = vsel %vm745, 0.0, %v761
        %v800 = vsel %vm745, 0.0, %v764
        %v801 = vsel %vm745, 0.0, %v767
        %v802 = vsel %vm745, %v747, 0.0
        %v803 = vsel %vm745, %v750, 0.0
        %v804 = vsel %vm745, %v753, 0.0
        %v805 = vsel %vm745, %v756, 0.0
        %v806 = vsel %vm745, %v759, 0.0
        %v807 = vsel %vm745, %v762, 0.0
        %v808 = vsel %vm745, %v765, 0.0
        %v809 = vsel %vm745, %v768, 0.0
        %s810 = scalar_lea.vmem [#allocation2], 24
        %811 = vst [vmem:[%s810] sm:$0xff] %v794
        %812 = vst [vmem:[%s810 + $0x8] sm:$0xff] %v748
        %813 = vst [vmem:[%s810 + $0x10] sm:$0x3] %v802
        %814 = vst [vmem:[%s810 + $0x18] sm:$0xff] %v795
        %815 = vst [vmem:[%s810 + $0x20] sm:$0xff] %v751
        %816 = vst [vmem:[%s810 + $0x28] sm:$0x3] %v803
        %817 = vst [vmem:[%s810 + $0x30] sm:$0xff] %v796
        %818 = vst [vmem:[%s810 + $0x38] sm:$0xff] %v754
        %819 = vst [vmem:[%s810 + $0x40] sm:$0x3] %v804
        %820 = vst [vmem:[%s810 + $0x48] sm:$0xff] %v797
        %821 = vst [vmem:[%s810 + $0x50] sm:$0xff] %v757
        %822 = vst [vmem:[%s810 + $0x58] sm:$0x3] %v805
        %823 = vst [vmem:[%s810 + $0x60] sm:$0xff] %v798
        %824 = vst [vmem:[%s810 + $0x68] sm:$0xff] %v760
        %825 = vst [vmem:[%s810 + $0x70] sm:$0x3] %v806
        %826 = vst [vmem:[%s810 + $0x78] sm:$0xff] %v799
        %827 = vst [vmem:[%s810 + $0x80] sm:$0xff] %v763
        %828 = vst [vmem:[%s810 + $0x88] sm:$0x3] %v807
        %829 = vst [vmem:[%s810 + $0x90] sm:$0xff] %v800
        %830 = vst [vmem:[%s810 + $0x98] sm:$0xff] %v766
        %831 = vst [vmem:[%s810 + $0xa0] sm:$0x3] %v808
        %832 = vst [vmem:[%s810 + $0xa8] sm:$0xff] %v801
        %833 = vst [vmem:[%s810 + $0xb0] sm:$0xff] %v769
        %834 = vst [vmem:[%s810 + $0xb8] sm:$0x3] %v809
        %835 = vst [vmem:[#allocation2] sm:$0xff] 0.0
        %836 = vst [vmem:[#allocation2 + $0x8] sm:$0xff] 0.0
        %837 = vst [vmem:[#allocation2 + $0x10] sm:$0x3] 0.0
        %s838 = scalar_lea.vmem [#allocation2], 216
        %839 = vst [vmem:[%s838] sm:$0xff] 0.0
        %840 = vst [vmem:[%s838 + $0x8] sm:$0xff] 0.0
        %841 = vst [vmem:[%s838 + $0x10] sm:$0x3] 0.0
        %p842 = scmp.gt.s32.totalorder %s34, 0
        // Predicated region
        $region77: #{tpu_custom_call.1} parent=59 // pred_check
          %p843 = pneg %p842
        $region78: #{tpu_custom_call.1} parent=59 // pred_check_branch
          %845 = sbr.rel (%p843) target = $region80
        $region79: #{tpu_custom_call.1} parent=59 // pred_region
          %s846 = ssub.s32 %s438, 1
          %s847 = smul.u32 %s846, 2
          %s848 = smul.addr %s847, 4
          %s849 = scalar_lea.vmem %s387, %s848 [#allocation4]
          %v850 = vld [vmem:[%s849] sm:$0xf]
          %v851 = vld [vmem:[%s849 + $0x4] sm:$0xf]
          %v852 = vld [vmem:[#allocation7] sm:$0xf]
          %v853 = vld [vmem:[#allocation7 + $0x4] sm:$0xf]
          %v854 = vld [vmem:[#allocation7 + $0x8] sm:$0xf]
          %v855 = vld [vmem:[#allocation7 + $0xc] sm:$0xf]
          %v856 = vld [vmem:[#allocation7 + $0x10] sm:$0xf]
          %v857 = vld [vmem:[#allocation7 + $0x14] sm:$0xf]
          %v858 = vld [vmem:[#allocation7 + $0x18] sm:$0xf]
          %v859 = vld [vmem:[#allocation7 + $0x1c] sm:$0xf]
          %v860 = vld [vmem:[#allocation7 + $0x20] sm:$0xf]
          %v861 = vld [vmem:[#allocation7 + $0x24] sm:$0xf]
          %v862 = vld [vmem:[#allocation7 + $0x28] sm:$0xf]
          %v863 = vld [vmem:[#allocation7 + $0x2c] sm:$0xf]
          %v864 = vld [vmem:[#allocation7 + $0x30] sm:$0xf]
          %v865 = vld [vmem:[#allocation7 + $0x34] sm:$0xf]
          %v866 = vld [vmem:[#allocation7 + $0x38] sm:$0xf]
          %v867 = vld [vmem:[#allocation7 + $0x3c] sm:$0xf]
          %v870 = vunpack.c.l.b16 %v850
          %v871 = vunpack.c.l.b16 %v851
          %v872 = vpack.c.b16 %v871, %v870
          %v890 = vunpack.c.l.b16 %v852
          %v891 = vunpack.c.l.b16 %v853
          %v892 = vunpack.c.l.b16 %v854
          %v893 = vunpack.c.l.b16 %v855
          %v894 = vunpack.c.l.b16 %v856
          %v895 = vunpack.c.l.b16 %v857
          %v896 = vunpack.c.l.b16 %v858
          %v897 = vunpack.c.l.b16 %v859
          %v898 = vunpack.c.l.b16 %v860
          %v899 = vunpack.c.l.b16 %v861
          %v900 = vunpack.c.l.b16 %v862
          %v901 = vunpack.c.l.b16 %v863
          %v902 = vunpack.c.l.b16 %v864
          %v903 = vunpack.c.l.b16 %v865
          %v904 = vunpack.c.l.b16 %v866
          %v905 = vunpack.c.l.b16 %v867
          %v906 = vpack.c.b16 %v891, %v890
          %v907 = vpack.c.b16 %v893, %v892
          %v908 = vpack.c.b16 %v895, %v894
          %v909 = vpack.c.b16 %v897, %v896
          %v910 = vpack.c.b16 %v899, %v898
          %v911 = vpack.c.b16 %v901, %v900
          %v912 = vpack.c.b16 %v903, %v902
          %v913 = vpack.c.b16 %v905, %v904
          %922 = vmatprep.subr.bf16.mxu0 0
          %923 = vmatpush1.bf16.msra.mxu0 %v906
          %924 = vmatprep.subr.bf16.mxu0 0
          %925 = vmatpush1.bf16.msra.mxu0 %v907
          %926 = vmatprep.subr.bf16.mxu0 0
          %927 = vmatpush1.bf16.msra.mxu0 %v908
          %928 = vmatprep.subr.bf16.mxu0 0
          %929 = vmatpush1.bf16.msra.mxu0 %v909
          %930 = vmatprep.subr.bf16.mxu0 0
          %931 = vmatpush1.bf16.msra.mxu0 %v910
          %932 = vmatprep.subr.bf16.mxu0 0
          %933 = vmatpush1.bf16.msra.mxu0 %v911
          %934 = vmatprep.subr.bf16.mxu0 0
          %935 = vmatpush1.bf16.msra.mxu0 %v912
          %936 = vmatprep.subr.bf16.mxu0 0
          %937 = vmatpush1.bf16.msra.mxu0 %v913
          %938 = vmatprep.subr.bf16.mxu0 0
          %939 = vmatpush1.bf16.msra.mxu0 0
          %940 = vmatprep.subr.bf16.mxu0 0
          %941 = vmatpush1.bf16.msra.mxu0 0
          %942 = vmatprep.subr.bf16.mxu0 0
          %943 = vmatpush1.bf16.msra.mxu0 0
          %944 = vmatprep.subr.bf16.mxu0 0
          %945 = vmatpush1.bf16.msra.mxu0 0
          %946 = vmatprep.subr.bf16.mxu0 0
          %947 = vmatpush1.bf16.msra.mxu0 0
          %948 = vmatprep.subr.bf16.mxu0 0
          %949 = vmatpush1.bf16.msra.mxu0 0
          %950 = vmatprep.subr.bf16.mxu0 0
          %951 = vmatpush1.bf16.msra.mxu0 0
          %952 = vmatprep.subr.bf16.mxu0 0
          %953 = vmatpush1.bf16.msra.mxu0 0
          %954 = vmatprep.mubr.bf16.mxu0 0
          %955 = vmatmul.mubr.bf16.gmra.mrb[0].mxu0 %v872
          %v956 = vpop.f32.mrb[0].mxu0
          %v957 = vadd.f32 0.0, %v956
          %v958 = vpop.f32.mrb[0].mxu0
          %v959 = vpop.f32.mrb[0].mxu0
          %v960 = vadd.f32 0.0, %v959
          %v961 = vpop.f32.mrb[0].mxu0
          %962 = vdwg.mxu0
          %v963 = vld [vmem:[%s2] sm:$0x1]
          %v965 = vlaneseq
          %v966 = vshrl.u32 %v965, 7
          %v967 = vsub.s32 0, %v966
          %v968 = vrot.slane %v963, %v967
          %v970 = vmul.f32 %v957, %v968
          %v971 = vmul.f32 %v960, %v968
          %v972 = vld [vmem:[%s3] sm:$0x1]
          %v974 = vlaneseq
          %v975 = vshrl.u32 %v974, 7
          %v976 = vsub.s32 0, %v975
          %v977 = vrot.slane %v972, %v976
          %v979 = vadd.f32 %v970, %v977
          %v980 = vadd.f32 %v971, %v977
          %v981 = vmax.f32 %v979, 0.0
          %v982 = vmax.f32 %v980, 0.0
          %v985 = vrot.slane %v981, 7
          %v986 = vrot.slane %v982, 7
          %v987 = vsel %vm745, %v985, %v986
          %v991 = vsel %vm745, 0.0, %v985
          %v992 = vsel %vm745, %v986, 0.0
          %993 = vst [vmem:[#allocation2] sm:$0xff] %v991
          %994 = vst [vmem:[#allocation2 + $0x8] sm:$0xff] %v987
          %995 = vst [vmem:[#allocation2 + $0x10] sm:$0x3] %v992
        $region80: #{tpu_custom_call.1} parent=59 // pred_fallthru
          _
        %p996 = scmp.lt.s32.totalorder %s34, 1
        // Predicated region
        $region81: #{tpu_custom_call.1} parent=59 // pred_check
          %p997 = pneg %p996
        $region82: #{tpu_custom_call.1} parent=59 // pred_check_branch
          %999 = sbr.rel (%p997) target = $region84
        $region83: #{tpu_custom_call.1} parent=59 // pred_region
          %s1000 = sadd.s32 %s438, 8
          %s1001 = smul.u32 %s1000, 2
          %s1002 = smul.addr %s1001, 4
          %s1003 = scalar_lea.vmem %s387, %s1002 [#allocation4]
          %v1004 = vld [vmem:[%s1003] sm:$0xf]
          %v1005 = vld [vmem:[%s1003 + $0x4] sm:$0xf]
          %v1006 = vld [vmem:[#allocation7] sm:$0xf]
          %v1007 = vld [vmem:[#allocation7 + $0x4] sm:$0xf]
          %v1008 = vld [vmem:[#allocation7 + $0x8] sm:$0xf]
          %v1009 = vld [vmem:[#allocation7 + $0xc] sm:$0xf]
          %v1010 = vld [vmem:[#allocation7 + $0x10] sm:$0xf]
          %v1011 = vld [vmem:[#allocation7 + $0x14] sm:$0xf]
          %v1012 = vld [vmem:[#allocation7 + $0x18] sm:$0xf]
          %v1013 = vld [vmem:[#allocation7 + $0x1c] sm:$0xf]
          %v1014 = vld [vmem:[#allocation7 + $0x20] sm:$0xf]
          %v1015 = vld [vmem:[#allocation7 + $0x24] sm:$0xf]
          %v1016 = vld [vmem:[#allocation7 + $0x28] sm:$0xf]
          %v1017 = vld [vmem:[#allocation7 + $0x2c] sm:$0xf]
          %v1018 = vld [vmem:[#allocation7 + $0x30] sm:$0xf]
          %v1019 = vld [vmem:[#allocation7 + $0x34] sm:$0xf]
          %v1020 = vld [vmem:[#allocation7 + $0x38] sm:$0xf]
          %v1021 = vld [vmem:[#allocation7 + $0x3c] sm:$0xf]
          %v1024 = vunpack.c.l.b16 %v1004
          %v1025 = vunpack.c.l.b16 %v1005
          %v1026 = vpack.c.b16 %v1025, %v1024
          %v1044 = vunpack.c.l.b16 %v1006
          %v1045 = vunpack.c.l.b16 %v1007
          %v1046 = vunpack.c.l.b16 %v1008
          %v1047 = vunpack.c.l.b16 %v1009
          %v1048 = vunpack.c.l.b16 %v1010
          %v1049 = vunpack.c.l.b16 %v1011
          %v1050 = vunpack.c.l.b16 %v1012
          %v1051 = vunpack.c.l.b16 %v1013
          %v1052 = vunpack.c.l.b16 %v1014
          %v1053 = vunpack.c.l.b16 %v1015
          %v1054 = vunpack.c.l.b16 %v1016
          %v1055 = vunpack.c.l.b16 %v1017
          %v1056 = vunpack.c.l.b16 %v1018
          %v1057 = vunpack.c.l.b16 %v1019
          %v1058 = vunpack.c.l.b16 %v1020
          %v1059 = vunpack.c.l.b16 %v1021
          %v1060 = vpack.c.b16 %v1045, %v1044
          %v1061 = vpack.c.b16 %v1047, %v1046
          %v1062 = vpack.c.b16 %v1049, %v1048
          %v1063 = vpack.c.b16 %v1051, %v1050
          %v1064 = vpack.c.b16 %v1053, %v1052
          %v1065 = vpack.c.b16 %v1055, %v1054
          %v1066 = vpack.c.b16 %v1057, %v1056
          %v1067 = vpack.c.b16 %v1059, %v1058
          %1076 = vmatprep.subr.bf16.mxu0 0
          %1077 = vmatpush1.bf16.msra.mxu0 %v1060
          %1078 = vmatprep.subr.bf16.mxu0 0
          %1079 = vmatpush1.bf16.msra.mxu0 %v1061
          %1080 = vmatprep.subr.bf16.mxu0 0
          %1081 = vmatpush1.bf16.msra.mxu0 %v1062
          %1082 = vmatprep.subr.bf16.mxu0 0
          %1083 = vmatpush1.bf16.msra.mxu0 %v1063
          %1084 = vmatprep.subr.bf16.mxu0 0
          %1085 = vmatpush1.bf16.msra.mxu0 %v1064
          %1086 = vmatprep.subr.bf16.mxu0 0
          %1087 = vmatpush1.bf16.msra.mxu0 %v1065
          %1088 = vmatprep.subr.bf16.mxu0 0
          %1089 = vmatpush1.bf16.msra.mxu0 %v1066
          %1090 = vmatprep.subr.bf16.mxu0 0
          %1091 = vmatpush1.bf16.msra.mxu0 %v1067
          %1092 = vmatprep.subr.bf16.mxu0 0
          %1093 = vmatpush1.bf16.msra.mxu0 0
          %1094 = vmatprep.subr.bf16.mxu0 0
          %1095 = vmatpush1.bf16.msra.mxu0 0
          %1096 = vmatprep.subr.bf16.mxu0 0
          %1097 = vmatpush1.bf16.msra.mxu0 0
          %1098 = vmatprep.subr.bf16.mxu0 0
          %1099 = vmatpush1.bf16.msra.mxu0 0
          %1100 = vmatprep.subr.bf16.mxu0 0
          %1101 = vmatpush1.bf16.msra.mxu0 0
          %1102 = vmatprep.subr.bf16.mxu0 0
          %1103 = vmatpush1.bf16.msra.mxu0 0
          %1104 = vmatprep.subr.bf16.mxu0 0
          %1105 = vmatpush1.bf16.msra.mxu0 0
          %1106 = vmatprep.subr.bf16.mxu0 0
          %1107 = vmatpush1.bf16.msra.mxu0 0
          %1108 = vmatprep.mubr.bf16.mxu0 0
          %1109 = vmatmul.mubr.bf16.gmra.mrb[0].mxu0 %v1026
          %v1110 = vpop.f32.mrb[0].mxu0
          %v1111 = vadd.f32 0.0, %v1110
          %v1112 = vpop.f32.mrb[0].mxu0
          %v1113 = vpop.f32.mrb[0].mxu0
          %v1114 = vadd.f32 0.0, %v1113
          %v1115 = vpop.f32.mrb[0].mxu0
          %1116 = vdwg.mxu0
          %v1117 = vld [vmem:[%s2] sm:$0x1]
          %v1119 = vlaneseq
          %v1120 = vshrl.u32 %v1119, 7
          %v1121 = vsub.s32 0, %v1120
          %v1122 = vrot.slane %v1117, %v1121
          %v1124 = vmul.f32 %v1111, %v1122
          %v1125 = vmul.f32 %v1114, %v1122
          %v1126 = vld [vmem:[%s3] sm:$0x1]
          %v1128 = vlaneseq
          %v1129 = vshrl.u32 %v1128, 7
          %v1130 = vsub.s32 0, %v1129
          %v1131 = vrot.slane %v1126, %v1130
          %v1133 = vadd.f32 %v1124, %v1131
          %v1134 = vadd.f32 %v1125, %v1131
          %v1135 = vmax.f32 %v1133, 0.0
          %v1136 = vmax.f32 %v1134, 0.0
          %v1139 = vrot.slane %v1135, 7
          %v1140 = vrot.slane %v1136, 7
          %v1141 = vsel %vm745, %v1139, %v1140
          %v1145 = vsel %vm745, 0.0, %v1139
          %v1146 = vsel %vm745, %v1140, 0.0
          %1147 = vst [vmem:[%s838] sm:$0xff] %v1145
          %1148 = vst [vmem:[%s838 + $0x8] sm:$0xff] %v1141
          %1149 = vst [vmem:[%s838 + $0x10] sm:$0x3] %v1146
        $region84: #{tpu_custom_call.1} parent=59 // pred_fallthru
          _
        %v1150 = vld [vmem:[#allocation2] sm:$0xff]
        %v1151 = vld [vmem:[#allocation2 + $0x8] sm:$0xff]
        %v1152 = vld [vmem:[#allocation2 + $0x18] sm:$0xff]
        %v1153 = vld [vmem:[#allocation2 + $0x20] sm:$0xff]
        %v1154 = vld [vmem:[#allocation2 + $0x30] sm:$0xff]
        %v1155 = vld [vmem:[#allocation2 + $0x38] sm:$0xff]
        %v1156 = vld [vmem:[#allocation2 + $0x48] sm:$0xff]
        %v1157 = vld [vmem:[#allocation2 + $0x50] sm:$0xff]
        %v1158 = vld [vmem:[#allocation2 + $0x60] sm:$0xff]
        %v1159 = vld [vmem:[#allocation2 + $0x68] sm:$0xff]
        %v1160 = vld [vmem:[#allocation2 + $0x78] sm:$0xff]
        %v1161 = vld [vmem:[#allocation2 + $0x80] sm:$0xff]
        %v1162 = vld [vmem:[#allocation2 + $0x90] sm:$0xff]
        %v1163 = vld [vmem:[#allocation2 + $0x98] sm:$0xff]
        %v1164 = vld [vmem:[#allocation2 + $0xa8] sm:$0xff]
        %v1165 = vld [vmem:[#allocation2 + $0xb0] sm:$0xff]
        %v1166 = vpack.c.bf16 %v1151, %v1150
        %v1167 = vpack.c.bf16 %v1153, %v1152
        %v1168 = vpack.c.bf16 %v1155, %v1154
        %v1169 = vpack.c.bf16 %v1157, %v1156
        %v1170 = vpack.c.bf16 %v1159, %v1158
        %v1171 = vpack.c.bf16 %v1161, %v1160
        %v1172 = vpack.c.bf16 %v1163, %v1162
        %v1173 = vpack.c.bf16 %v1165, %v1164
        %1174 = vst [vmem:[#allocation3] sm:$0xff] %v1166
        %1175 = vst [vmem:[#allocation3 + $0x48] sm:$0xff] %v1167
        %1176 = vst [vmem:[#allocation3 + $0x90] sm:$0xff] %v1168
        %1177 = vst [vmem:[#allocation3 + $0xd8] sm:$0xff] %v1169
        %1178 = vst [vmem:[#allocation3 + $0x120] sm:$0xff] %v1170
        %1179 = vst [vmem:[#allocation3 + $0x168] sm:$0xff] %v1171
        %1180 = vst [vmem:[#allocation3 + $0x1b0] sm:$0xff] %v1172
        %1181 = vst [vmem:[#allocation3 + $0x1f8] sm:$0xff] %v1173
        %v1182 = vld [vmem:[#allocation2 + $0x1] sm:$0xff]
        %v1183 = vld [vmem:[#allocation2 + $0x9] sm:$0xff]
        %v1184 = vld [vmem:[#allocation2 + $0x19] sm:$0xff]
        %v1185 = vld [vmem:[#allocation2 + $0x21] sm:$0xff]
        %v1186 = vld [vmem:[#allocation2 + $0x31] sm:$0xff]
        %v1187 = vld [vmem:[#allocation2 + $0x39] sm:$0xff]
        %v1188 = vld [vmem:[#allocation2 + $0x49] sm:$0xff]
        %v1189 = vld [vmem:[#allocation2 + $0x51] sm:$0xff]
        %v1190 = vld [vmem:[#allocation2 + $0x61] sm:$0xff]
        %v1191 = vld [vmem:[#allocation2 + $0x69] sm:$0xff]
        %v1192 = vld [vmem:[#allocation2 + $0x79] sm:$0xff]
        %v1193 = vld [vmem:[#allocation2 + $0x81] sm:$0xff]
        %v1194 = vld [vmem:[#allocation2 + $0x91] sm:$0xff]
        %v1195 = vld [vmem:[#allocation2 + $0x99] sm:$0xff]
        %v1196 = vld [vmem:[#allocation2 + $0xa9] sm:$0xff]
        %v1197 = vld [vmem:[#allocation2 + $0xb1] sm:$0xff]
        %v1198 = vpack.c.bf16 %v1183, %v1182
        %v1199 = vpack.c.bf16 %v1185, %v1184
        %v1200 = vpack.c.bf16 %v1187, %v1186
        %v1201 = vpack.c.bf16 %v1189, %v1188
        %v1202 = vpack.c.bf16 %v1191, %v1190
        %v1203 = vpack.c.bf16 %v1193, %v1192
        %v1204 = vpack.c.bf16 %v1195, %v1194
        %v1205 = vpack.c.bf16 %v1197, %v1196
        %1206 = vst [vmem:[#allocation3 + $0x8] sm:$0xff] %v1198
        %1207 = vst [vmem:[#allocation3 + $0x50] sm:$0xff] %v1199
        %1208 = vst [vmem:[#allocation3 + $0x98] sm:$0xff] %v1200
        %1209 = vst [vmem:[#allocation3 + $0xe0] sm:$0xff] %v1201
        %1210 = vst [vmem:[#allocation3 + $0x128] sm:$0xff] %v1202
        %1211 = vst [vmem:[#allocation3 + $0x170] sm:$0xff] %v1203
        %1212 = vst [vmem:[#allocation3 + $0x1b8] sm:$0xff] %v1204
        %1213 = vst [vmem:[#allocation3 + $0x200] sm:$0xff] %v1205
        %v1214 = vld [vmem:[#allocation2 + $0x2] sm:$0xff]
        %v1215 = vld [vmem:[#allocation2 + $0xa] sm:$0xff]
        %v1216 = vld [vmem:[#allocation2 + $0x1a] sm:$0xff]
        %v1217 = vld [vmem:[#allocation2 + $0x22] sm:$0xff]
        %v1218 = vld [vmem:[#allocation2 + $0x32] sm:$0xff]
        %v1219 = vld [vmem:[#allocation2 + $0x3a] sm:$0xff]
        %v1220 = vld [vmem:[#allocation2 + $0x4a] sm:$0xff]
        %v1221 = vld [vmem:[#allocation2 + $0x52] sm:$0xff]
        %v1222 = vld [vmem:[#allocation2 + $0x62] sm:$0xff]
        %v1223 = vld [vmem:[#allocation2 + $0x6a] sm:$0xff]
        %v1224 = vld [vmem:[#allocation2 + $0x7a] sm:$0xff]
        %v1225 = vld [vmem:[#allocation2 + $0x82] sm:$0xff]
        %v1226 = vld [vmem:[#allocation2 + $0x92] sm:$0xff]
        %v1227 = vld [vmem:[#allocation2 + $0x9a] sm:$0xff]
        %v1228 = vld [vmem:[#allocation2 + $0xaa] sm:$0xff]
        %v1229 = vld [vmem:[#allocation2 + $0xb2] sm:$0xff]
        %v1230 = vpack.c.bf16 %v1215, %v1214
        %v1231 = vpack.c.bf16 %v1217, %v1216
        %v1232 = vpack.c.bf16 %v1219, %v1218
        %v1233 = vpack.c.bf16 %v1221, %v1220
        %v1234 = vpack.c.bf16 %v1223, %v1222
        %v1235 = vpack.c.bf16 %v1225, %v1224
        %v1236 = vpack.c.bf16 %v1227, %v1226
        %v1237 = vpack.c.bf16 %v1229, %v1228
        %1238 = vst [vmem:[#allocation3 + $0x10] sm:$0xff] %v1230
        %1239 = vst [vmem:[#allocation3 + $0x58] sm:$0xff] %v1231
        %1240 = vst [vmem:[#allocation3 + $0xa0] sm:$0xff] %v1232
        %1241 = vst [vmem:[#allocation3 + $0xe8] sm:$0xff] %v1233
        %1242 = vst [vmem:[#allocation3 + $0x130] sm:$0xff] %v1234
        %1243 = vst [vmem:[#allocation3 + $0x178] sm:$0xff] %v1235
        %1244 = vst [vmem:[#allocation3 + $0x1c0] sm:$0xff] %v1236
        %1245 = vst [vmem:[#allocation3 + $0x208] sm:$0xff] %v1237
        %v1246 = vld [vmem:[%s810] sm:$0xff]
        %v1247 = vld [vmem:[%s810 + $0x8] sm:$0xff]
        %v1248 = vld [vmem:[%s810 + $0x18] sm:$0xff]
        %v1249 = vld [vmem:[%s810 + $0x20] sm:$0xff]
        %v1250 = vld [vmem:[%s810 + $0x30] sm:$0xff]
        %v1251 = vld [vmem:[%s810 + $0x38] sm:$0xff]
        %v1252 = vld [vmem:[%s810 + $0x48] sm:$0xff]
        %v1253 = vld [vmem:[%s810 + $0x50] sm:$0xff]
        %v1254 = vld [vmem:[%s810 + $0x60] sm:$0xff]
        %v1255 = vld [vmem:[%s810 + $0x68] sm:$0xff]
        %v1256 = vld [vmem:[%s810 + $0x78] sm:$0xff]
        %v1257 = vld [vmem:[%s810 + $0x80] sm:$0xff]
        %v1258 = vld [vmem:[%s810 + $0x90] sm:$0xff]
        %v1259 = vld [vmem:[%s810 + $0x98] sm:$0xff]
        %v1260 = vld [vmem:[%s810 + $0xa8] sm:$0xff]
        %v1261 = vld [vmem:[%s810 + $0xb0] sm:$0xff]
        %v1262 = vpack.c.bf16 %v1247, %v1246
        %v1263 = vpack.c.bf16 %v1249, %v1248
        %v1264 = vpack.c.bf16 %v1251, %v1250
        %v1265 = vpack.c.bf16 %v1253, %v1252
        %v1266 = vpack.c.bf16 %v1255, %v1254
        %v1267 = vpack.c.bf16 %v1257, %v1256
        %v1268 = vpack.c.bf16 %v1259, %v1258
        %v1269 = vpack.c.bf16 %v1261, %v1260
        %1270 = vst [vmem:[#allocation3 + $0x18] sm:$0xff] %v1262
        %1271 = vst [vmem:[#allocation3 + $0x60] sm:$0xff] %v1263
        %1272 = vst [vmem:[#allocation3 + $0xa8] sm:$0xff] %v1264
        %1273 = vst [vmem:[#allocation3 + $0xf0] sm:$0xff] %v1265
        %1274 = vst [vmem:[#allocation3 + $0x138] sm:$0xff] %v1266
        %1275 = vst [vmem:[#allocation3 + $0x180] sm:$0xff] %v1267
        %1276 = vst [vmem:[#allocation3 + $0x1c8] sm:$0xff] %v1268
        %1277 = vst [vmem:[#allocation3 + $0x210] sm:$0xff] %v1269
        %v1278 = vld [vmem:[%s810 + $0x1] sm:$0xff]
        %v1279 = vld [vmem:[%s810 + $0x9] sm:$0xff]
        %v1280 = vld [vmem:[%s810 + $0x19] sm:$0xff]
        %v1281 = vld [vmem:[%s810 + $0x21] sm:$0xff]
        %v1282 = vld [vmem:[%s810 + $0x31] sm:$0xff]
        %v1283 = vld [vmem:[%s810 + $0x39] sm:$0xff]
        %v1284 = vld [vmem:[%s810 + $0x49] sm:$0xff]
        %v1285 = vld [vmem:[%s810 + $0x51] sm:$0xff]
        %v1286 = vld [vmem:[%s810 + $0x61] sm:$0xff]
        %v1287 = vld [vmem:[%s810 + $0x69] sm:$0xff]
        %v1288 = vld [vmem:[%s810 + $0x79] sm:$0xff]
        %v1289 = vld [vmem:[%s810 + $0x81] sm:$0xff]
        %v1290 = vld [vmem:[%s810 + $0x91] sm:$0xff]
        %v1291 = vld [vmem:[%s810 + $0x99] sm:$0xff]
        %v1292 = vld [vmem:[%s810 + $0xa9] sm:$0xff]
        %v1293 = vld [vmem:[%s810 + $0xb1] sm:$0xff]
        %v1294 = vpack.c.bf16 %v1279, %v1278
        %v1295 = vpack.c.bf16 %v1281, %v1280
        %v1296 = vpack.c.bf16 %v1283, %v1282
        %v1297 = vpack.c.bf16 %v1285, %v1284
        %v1298 = vpack.c.bf16 %v1287, %v1286
        %v1299 = vpack.c.bf16 %v1289, %v1288
        %v1300 = vpack.c.bf16 %v1291, %v1290
        %v1301 = vpack.c.bf16 %v1293, %v1292
        %1302 = vst [vmem:[#allocation3 + $0x20] sm:$0xff] %v1294
        %1303 = vst [vmem:[#allocation3 + $0x68] sm:$0xff] %v1295
        %1304 = vst [vmem:[#allocation3 + $0xb0] sm:$0xff] %v1296
        %1305 = vst [vmem:[#allocation3 + $0xf8] sm:$0xff] %v1297
        %1306 = vst [vmem:[#allocation3 + $0x140] sm:$0xff] %v1298
        %1307 = vst [vmem:[#allocation3 + $0x188] sm:$0xff] %v1299
        %1308 = vst [vmem:[#allocation3 + $0x1d0] sm:$0xff] %v1300
        %1309 = vst [vmem:[#allocation3 + $0x218] sm:$0xff] %v1301
        %v1310 = vld [vmem:[%s810 + $0x2] sm:$0xff]
        %v1311 = vld [vmem:[%s810 + $0xa] sm:$0xff]
        %v1312 = vld [vmem:[%s810 + $0x1a] sm:$0xff]
        %v1313 = vld [vmem:[%s810 + $0x22] sm:$0xff]
        %v1314 = vld [vmem:[%s810 + $0x32] sm:$0xff]
        %v1315 = vld [vmem:[%s810 + $0x3a] sm:$0xff]
        %v1316 = vld [vmem:[%s810 + $0x4a] sm:$0xff]
        %v1317 = vld [vmem:[%s810 + $0x52] sm:$0xff]
        %v1318 = vld [vmem:[%s810 + $0x62] sm:$0xff]
        %v1319 = vld [vmem:[%s810 + $0x6a] sm:$0xff]
        %v1320 = vld [vmem:[%s810 + $0x7a] sm:$0xff]
        %v1321 = vld [vmem:[%s810 + $0x82] sm:$0xff]
        %v1322 = vld [vmem:[%s810 + $0x92] sm:$0xff]
        %v1323 = vld [vmem:[%s810 + $0x9a] sm:$0xff]
        %v1324 = vld [vmem:[%s810 + $0xaa] sm:$0xff]
        %v1325 = vld [vmem:[%s810 + $0xb2] sm:$0xff]
        %v1326 = vpack.c.bf16 %v1311, %v1310
        %v1327 = vpack.c.bf16 %v1313, %v1312
        %v1328 = vpack.c.bf16 %v1315, %v1314
        %v1329 = vpack.c.bf16 %v1317, %v1316
        %v1330 = vpack.c.bf16 %v1319, %v1318
        %v1331 = vpack.c.bf16 %v1321, %v1320
        %v1332 = vpack.c.bf16 %v1323, %v1322
        %v1333 = vpack.c.bf16 %v1325, %v1324
        %1334 = vst [vmem:[#allocation3 + $0x28] sm:$0xff] %v1326
        %1335 = vst [vmem:[#allocation3 + $0x70] sm:$0xff] %v1327
        %1336 = vst [vmem:[#allocation3 + $0xb8] sm:$0xff] %v1328
        %1337 = vst [vmem:[#allocation3 + $0x100] sm:$0xff] %v1329
        %1338 = vst [vmem:[#allocation3 + $0x148] sm:$0xff] %v1330
        %1339 = vst [vmem:[#allocation3 + $0x190] sm:$0xff] %v1331
        %1340 = vst [vmem:[#allocation3 + $0x1d8] sm:$0xff] %v1332
        %1341 = vst [vmem:[#allocation3 + $0x220] sm:$0xff] %v1333
        %s1342 = scalar_lea.vmem [#allocation2], 48
        %v1343 = vld [vmem:[%s1342] sm:$0xff]
        %v1344 = vld [vmem:[%s1342 + $0x8] sm:$0xff]
        %v1345 = vld [vmem:[%s1342 + $0x18] sm:$0xff]
        %v1346 = vld [vmem:[%s1342 + $0x20] sm:$0xff]
        %v1347 = vld [vmem:[%s1342 + $0x30] sm:$0xff]
        %v1348 = vld [vmem:[%s1342 + $0x38] sm:$0xff]
        %v1349 = vld [vmem:[%s1342 + $0x48] sm:$0xff]
        %v1350 = vld [vmem:[%s1342 + $0x50] sm:$0xff]
        %v1351 = vld [vmem:[%s1342 + $0x60] sm:$0xff]
        %v1352 = vld [vmem:[%s1342 + $0x68] sm:$0xff]
        %v1353 = vld [vmem:[%s1342 + $0x78] sm:$0xff]
        %v1354 = vld [vmem:[%s1342 + $0x80] sm:$0xff]
        %v1355 = vld [vmem:[%s1342 + $0x90] sm:$0xff]
        %v1356 = vld [vmem:[%s1342 + $0x98] sm:$0xff]
        %v1357 = vld [vmem:[%s1342 + $0xa8] sm:$0xff]
        %v1358 = vld [vmem:[%s1342 + $0xb0] sm:$0xff]
        %v1359 = vpack.c.bf16 %v1344, %v1343
        %v1360 = vpack.c.bf16 %v1346, %v1345
        %v1361 = vpack.c.bf16 %v1348, %v1347
        %v1362 = vpack.c.bf16 %v1350, %v1349
        %v1363 = vpack.c.bf16 %v1352, %v1351
        %v1364 = vpack.c.bf16 %v1354, %v1353
        %v1365 = vpack.c.bf16 %v1356, %v1355
        %v1366 = vpack.c.bf16 %v1358, %v1357
        %1367 = vst [vmem:[#allocation3 + $0x30] sm:$0xff] %v1359
        %1368 = vst [vmem:[#allocation3 + $0x78] sm:$0xff] %v1360
        %1369 = vst [vmem:[#allocation3 + $0xc0] sm:$0xff] %v1361
        %1370 = vst [vmem:[#allocation3 + $0x108] sm:$0xff] %v1362
        %1371 = vst [vmem:[#allocation3 + $0x150] sm:$0xff] %v1363
        %1372 = vst [vmem:[#allocation3 + $0x198] sm:$0xff] %v1364
        %1373 = vst [vmem:[#allocation3 + $0x1e0] sm:$0xff] %v1365
        %1374 = vst [vmem:[#allocation3 + $0x228] sm:$0xff] %v1366
        %v1375 = vld [vmem:[%s1342 + $0x1] sm:$0xff]
        %v1376 = vld [vmem:[%s1342 + $0x9] sm:$0xff]
        %v1377 = vld [vmem:[%s1342 + $0x19] sm:$0xff]
        %v1378 = vld [vmem:[%s1342 + $0x21] sm:$0xff]
        %v1379 = vld [vmem:[%s1342 + $0x31] sm:$0xff]
        %v1380 = vld [vmem:[%s1342 + $0x39] sm:$0xff]
        %v1381 = vld [vmem:[%s1342 + $0x49] sm:$0xff]
        %v1382 = vld [vmem:[%s1342 + $0x51] sm:$0xff]
        %v1383 = vld [vmem:[%s1342 + $0x61] sm:$0xff]
        %v1384 = vld [vmem:[%s1342 + $0x69] sm:$0xff]
        %v1385 = vld [vmem:[%s1342 + $0x79] sm:$0xff]
        %v1386 = vld [vmem:[%s1342 + $0x81] sm:$0xff]
        %v1387 = vld [vmem:[%s1342 + $0x91] sm:$0xff]
        %v1388 = vld [vmem:[%s1342 + $0x99] sm:$0xff]
        %v1389 = vld [vmem:[%s1342 + $0xa9] sm:$0xff]
        %v1390 = vld [vmem:[%s1342 + $0xb1] sm:$0xff]
        %v1391 = vpack.c.bf16 %v1376, %v1375
        %v1392 = vpack.c.bf16 %v1378, %v1377
        %v1393 = vpack.c.bf16 %v1380, %v1379
        %v1394 = vpack.c.bf16 %v1382, %v1381
        %v1395 = vpack.c.bf16 %v1384, %v1383
        %v1396 = vpack.c.bf16 %v1386, %v1385
        %v1397 = vpack.c.bf16 %v1388, %v1387
        %v1398 = vpack.c.bf16 %v1390, %v1389
        %1399 = vst [vmem:[#allocation3 + $0x38] sm:$0xff] %v1391
        %1400 = vst [vmem:[#allocation3 + $0x80] sm:$0xff] %v1392
        %1401 = vst [vmem:[#allocation3 + $0xc8] sm:$0xff] %v1393
        %1402 = vst [vmem:[#allocation3 + $0x110] sm:$0xff] %v1394
        %1403 = vst [vmem:[#allocation3 + $0x158] sm:$0xff] %v1395
        %1404 = vst [vmem:[#allocation3 + $0x1a0] sm:$0xff] %v1396
        %1405 = vst [vmem:[#allocation3 + $0x1e8] sm:$0xff] %v1397
        %1406 = vst [vmem:[#allocation3 + $0x230] sm:$0xff] %v1398
        %v1407 = vld [vmem:[%s1342 + $0x2] sm:$0xff]
        %v1408 = vld [vmem:[%s1342 + $0xa] sm:$0xff]
        %v1409 = vld [vmem:[%s1342 + $0x1a] sm:$0xff]
        %v1410 = vld [vmem:[%s1342 + $0x22] sm:$0xff]
        %v1411 = vld [vmem:[%s1342 + $0x32] sm:$0xff]
        %v1412 = vld [vmem:[%s1342 + $0x3a] sm:$0xff]
        %v1413 = vld [vmem:[%s1342 + $0x4a] sm:$0xff]
        %v1414 = vld [vmem:[%s1342 + $0x52] sm:$0xff]
        %v1415 = vld [vmem:[%s1342 + $0x62] sm:$0xff]
        %v1416 = vld [vmem:[%s1342 + $0x6a] sm:$0xff]
        %v1417 = vld [vmem:[%s1342 + $0x7a] sm:$0xff]
        %v1418 = vld [vmem:[%s1342 + $0x82] sm:$0xff]
        %v1419 = vld [vmem:[%s1342 + $0x92] sm:$0xff]
        %v1420 = vld [vmem:[%s1342 + $0x9a] sm:$0xff]
        %v1421 = vld [vmem:[%s1342 + $0xaa] sm:$0xff]
        %v1422 = vld [vmem:[%s1342 + $0xb2] sm:$0xff]
        %v1423 = vpack.c.bf16 %v1408, %v1407
        %v1424 = vpack.c.bf16 %v1410, %v1409
        %v1425 = vpack.c.bf16 %v1412, %v1411
        %v1426 = vpack.c.bf16 %v1414, %v1413
        %v1427 = vpack.c.bf16 %v1416, %v1415
        %v1428 = vpack.c.bf16 %v1418, %v1417
        %v1429 = vpack.c.bf16 %v1420, %v1419
        %v1430 = vpack.c.bf16 %v1422, %v1421
        %1431 = vst [vmem:[#allocation3 + $0x40] sm:$0xff] %v1423
        %1432 = vst [vmem:[#allocation3 + $0x88] sm:$0xff] %v1424
        %1433 = vst [vmem:[#allocation3 + $0xd0] sm:$0xff] %v1425
        %1434 = vst [vmem:[#allocation3 + $0x118] sm:$0xff] %v1426
        %1435 = vst [vmem:[#allocation3 + $0x160] sm:$0xff] %v1427
        %1436 = vst [vmem:[#allocation3 + $0x1a8] sm:$0xff] %v1428
        %1437 = vst [vmem:[#allocation3 + $0x1f0] sm:$0xff] %v1429
        %1438 = vst [vmem:[#allocation3 + $0x238] sm:$0xff] %v1430
        %v1439 = vld [vmem:[#allocation3] sm:$0xff]
        %v1440 = vld [vmem:[#allocation3 + $0x8] sm:$0xff]
        %v1441 = vld [vmem:[#allocation3 + $0x10] sm:$0xff]
        %v1442 = vld [vmem:[#allocation3 + $0x18] sm:$0xff]
        %v1443 = vld [vmem:[#allocation3 + $0x20] sm:$0xff]
        %v1444 = vld [vmem:[#allocation3 + $0x28] sm:$0xff]
        %v1445 = vld [vmem:[#allocation3 + $0x30] sm:$0xff]
        %v1446 = vld [vmem:[#allocation3 + $0x38] sm:$0xff]
        %v1447 = vld [vmem:[#allocation3 + $0x40] sm:$0xff]
        %v1448 = vld [vmem:[#allocation3 + $0x48] sm:$0xff]
        %v1449 = vld [vmem:[#allocation3 + $0x50] sm:$0xff]
        %v1450 = vld [vmem:[#allocation3 + $0x58] sm:$0xff]
        %v1451 = vld [vmem:[#allocation3 + $0x60] sm:$0xff]
        %v1452 = vld [vmem:[#allocation3 + $0x68] sm:$0xff]
        %v1453 = vld [vmem:[#allocation3 + $0x70] sm:$0xff]
        %v1454 = vld [vmem:[#allocation3 + $0x78] sm:$0xff]
        %v1455 = vld [vmem:[#allocation3 + $0x80] sm:$0xff]
        %v1456 = vld [vmem:[#allocation3 + $0x88] sm:$0xff]
        %v1457 = vld [vmem:[#allocation3 + $0x90] sm:$0xff]
        %v1458 = vld [vmem:[#allocation3 + $0x98] sm:$0xff]
        %v1459 = vld [vmem:[#allocation3 + $0xa0] sm:$0xff]
        %v1460 = vld [vmem:[#allocation3 + $0xa8] sm:$0xff]
        %v1461 = vld [vmem:[#allocation3 + $0xb0] sm:$0xff]
        %v1462 = vld [vmem:[#allocation3 + $0xb8] sm:$0xff]
        %v1463 = vld [vmem:[#allocation3 + $0xc0] sm:$0xff]
        %v1464 = vld [vmem:[#allocation3 + $0xc8] sm:$0xff]
        %v1465 = vld [vmem:[#allocation3 + $0xd0] sm:$0xff]
        %v1466 = vld [vmem:[#allocation3 + $0xd8] sm:$0xff]
        %v1467 = vld [vmem:[#allocation3 + $0xe0] sm:$0xff]
        %v1468 = vld [vmem:[#allocation3 + $0xe8] sm:$0xff]
        %v1469 = vld [vmem:[#allocation3 + $0xf0] sm:$0xff]
        %v1470 = vld [vmem:[#allocation3 + $0xf8] sm:$0xff]
        %v1471 = vld [vmem:[#allocation3 + $0x100] sm:$0xff]
        %v1472 = vld [vmem:[#allocation3 + $0x108] sm:$0xff]
        %v1473 = vld [vmem:[#allocation3 + $0x110] sm:$0xff]
        %v1474 = vld [vmem:[#allocation3 + $0x118] sm:$0xff]
        %v1475 = vld [vmem:[#allocation3 + $0x120] sm:$0xff]
        %v1476 = vld [vmem:[#allocation3 + $0x128] sm:$0xff]
        %v1477 = vld [vmem:[#allocation3 + $0x130] sm:$0xff]
        %v1478 = vld [vmem:[#allocation3 + $0x138] sm:$0xff]
        %v1479 = vld [vmem:[#allocation3 + $0x140] sm:$0xff]
        %v1480 = vld [vmem:[#allocation3 + $0x148] sm:$0xff]
        %v1481 = vld [vmem:[#allocation3 + $0x150] sm:$0xff]
        %v1482 = vld [vmem:[#allocation3 + $0x158] sm:$0xff]
        %v1483 = vld [vmem:[#allocation3 + $0x160] sm:$0xff]
        %v1484 = vld [vmem:[#allocation3 + $0x168] sm:$0xff]
        %v1485 = vld [vmem:[#allocation3 + $0x170] sm:$0xff]
        %v1486 = vld [vmem:[#allocation3 + $0x178] sm:$0xff]
        %v1487 = vld [vmem:[#allocation3 + $0x180] sm:$0xff]
        %v1488 = vld [vmem:[#allocation3 + $0x188] sm:$0xff]
        %v1489 = vld [vmem:[#allocation3 + $0x190] sm:$0xff]
        %v1490 = vld [vmem:[#allocation3 + $0x198] sm:$0xff]
        %v1491 = vld [vmem:[#allocation3 + $0x1a0] sm:$0xff]
        %v1492 = vld [vmem:[#allocation3 + $0x1a8] sm:$0xff]
        %v1493 = vld [vmem:[#allocation3 + $0x1b0] sm:$0xff]
        %v1494 = vld [vmem:[#allocation3 + $0x1b8] sm:$0xff]
        %v1495 = vld [vmem:[#allocation3 + $0x1c0] sm:$0xff]
        %v1496 = vld [vmem:[#allocation3 + $0x1c8] sm:$0xff]
        %v1497 = vld [vmem:[#allocation3 + $0x1d0] sm:$0xff]
        %v1498 = vld [vmem:[#allocation3 + $0x1d8] sm:$0xff]
        %v1499 = vld [vmem:[#allocation3 + $0x1e0] sm:$0xff]
        %v1500 = vld [vmem:[#allocation3 + $0x1e8] sm:$0xff]
        %v1501 = vld [vmem:[#allocation3 + $0x1f0] sm:$0xff]
        %v1502 = vld [vmem:[#allocation3 + $0x1f8] sm:$0xff]
        %v1503 = vld [vmem:[#allocation3 + $0x200] sm:$0xff]
        %v1504 = vld [vmem:[#allocation3 + $0x208] sm:$0xff]
        %v1505 = vld [vmem:[#allocation3 + $0x210] sm:$0xff]
        %v1506 = vld [vmem:[#allocation3 + $0x218] sm:$0xff]
        %v1507 = vld [vmem:[#allocation3 + $0x220] sm:$0xff]
        %v1508 = vld [vmem:[#allocation3 + $0x228] sm:$0xff]
        %v1509 = vld [vmem:[#allocation3 + $0x230] sm:$0xff]
        %v1510 = vld [vmem:[#allocation3 + $0x238] sm:$0xff]
        %v1511 = vld [vmem:[#allocation9] sm:$0xf]
        %v1512 = vld [vmem:[#allocation9 + $0x4] sm:$0xf]
        %v1513 = vld [vmem:[#allocation9 + $0x8] sm:$0xf]
        %v1514 = vld [vmem:[#allocation9 + $0xc] sm:$0xf]
        %v1515 = vld [vmem:[#allocation9 + $0x10] sm:$0xf]
        %v1516 = vld [vmem:[#allocation9 + $0x14] sm:$0xf]
        %v1517 = vld [vmem:[#allocation9 + $0x18] sm:$0xf]
        %v1518 = vld [vmem:[#allocation9 + $0x1c] sm:$0xf]
        %v1519 = vld [vmem:[#allocation9 + $0x20] sm:$0xf]
        %v1520 = vld [vmem:[#allocation9 + $0x24] sm:$0xf]
        %v1521 = vld [vmem:[#allocation9 + $0x28] sm:$0xf]
        %v1522 = vld [vmem:[#allocation9 + $0x2c] sm:$0xf]
        %v1523 = vld [vmem:[#allocation9 + $0x30] sm:$0xf]
        %v1524 = vld [vmem:[#allocation9 + $0x34] sm:$0xf]
        %v1525 = vld [vmem:[#allocation9 + $0x38] sm:$0xf]
        %v1526 = vld [vmem:[#allocation9 + $0x3c] sm:$0xf]
        %v1527 = vld [vmem:[#allocation9 + $0x40] sm:$0xf]
        %v1528 = vld [vmem:[#allocation9 + $0x44] sm:$0xf]
        %v1529 = vld [vmem:[#allocation9 + $0x48] sm:$0xf]
        %v1530 = vld [vmem:[#allocation9 + $0x4c] sm:$0xf]
        %v1531 = vld [vmem:[#allocation9 + $0x50] sm:$0xf]
        %v1532 = vld [vmem:[#allocation9 + $0x54] sm:$0xf]
        %v1533 = vld [vmem:[#allocation9 + $0x58] sm:$0xf]
        %v1534 = vld [vmem:[#allocation9 + $0x5c] sm:$0xf]
        %v1535 = vld [vmem:[#allocation9 + $0x60] sm:$0xf]
        %v1536 = vld [vmem:[#allocation9 + $0x64] sm:$0xf]
        %v1537 = vld [vmem:[#allocation9 + $0x68] sm:$0xf]
        %v1538 = vld [vmem:[#allocation9 + $0x6c] sm:$0xf]
        %v1539 = vld [vmem:[#allocation9 + $0x70] sm:$0xf]
        %v1540 = vld [vmem:[#allocation9 + $0x74] sm:$0xf]
        %v1541 = vld [vmem:[#allocation9 + $0x78] sm:$0xf]
        %v1542 = vld [vmem:[#allocation9 + $0x7c] sm:$0xf]
        %v1543 = vld [vmem:[#allocation9 + $0x80] sm:$0xf]
        %v1544 = vld [vmem:[#allocation9 + $0x84] sm:$0xf]
        %v1545 = vld [vmem:[#allocation9 + $0x88] sm:$0xf]
        %v1546 = vld [vmem:[#allocation9 + $0x8c] sm:$0xf]
        %v1547 = vld [vmem:[#allocation9 + $0x90] sm:$0xf]
        %v1548 = vld [vmem:[#allocation9 + $0x94] sm:$0xf]
        %v1549 = vld [vmem:[#allocation9 + $0x98] sm:$0xf]
        %v1550 = vld [vmem:[#allocation9 + $0x9c] sm:$0xf]
        %v1551 = vld [vmem:[#allocation9 + $0xa0] sm:$0xf]
        %v1552 = vld [vmem:[#allocation9 + $0xa4] sm:$0xf]
        %v1553 = vld [vmem:[#allocation9 + $0xa8] sm:$0xf]
        %v1554 = vld [vmem:[#allocation9 + $0xac] sm:$0xf]
        %v1555 = vld [vmem:[#allocation9 + $0xb0] sm:$0xf]
        %v1556 = vld [vmem:[#allocation9 + $0xb4] sm:$0xf]
        %v1557 = vld [vmem:[#allocation9 + $0xb8] sm:$0xf]
        %v1558 = vld [vmem:[#allocation9 + $0xbc] sm:$0xf]
        %v1559 = vld [vmem:[#allocation9 + $0xc0] sm:$0xf]
        %v1560 = vld [vmem:[#allocation9 + $0xc4] sm:$0xf]
        %v1561 = vld [vmem:[#allocation9 + $0xc8] sm:$0xf]
        %v1562 = vld [vmem:[#allocation9 + $0xcc] sm:$0xf]
        %v1563 = vld [vmem:[#allocation9 + $0xd0] sm:$0xf]
        %v1564 = vld [vmem:[#allocation9 + $0xd4] sm:$0xf]
        %v1565 = vld [vmem:[#allocation9 + $0xd8] sm:$0xf]
        %v1566 = vld [vmem:[#allocation9 + $0xdc] sm:$0xf]
        %v1567 = vld [vmem:[#allocation9 + $0xe0] sm:$0xf]
        %v1568 = vld [vmem:[#allocation9 + $0xe4] sm:$0xf]
        %v1569 = vld [vmem:[#allocation9 + $0xe8] sm:$0xf]
        %v1570 = vld [vmem:[#allocation9 + $0xec] sm:$0xf]
        %v1571 = vld [vmem:[#allocation9 + $0xf0] sm:$0xf]
        %v1572 = vld [vmem:[#allocation9 + $0xf4] sm:$0xf]
        %v1573 = vld [vmem:[#allocation9 + $0xf8] sm:$0xf]
        %v1574 = vld [vmem:[#allocation9 + $0xfc] sm:$0xf]
        %v1575 = vld [vmem:[#allocation9 + $0x100] sm:$0xf]
        %v1576 = vld [vmem:[#allocation9 + $0x104] sm:$0xf]
        %v1577 = vld [vmem:[#allocation9 + $0x108] sm:$0xf]
        %v1578 = vld [vmem:[#allocation9 + $0x10c] sm:$0xf]
        %v1579 = vld [vmem:[#allocation9 + $0x110] sm:$0xf]
        %v1580 = vld [vmem:[#allocation9 + $0x114] sm:$0xf]
        %v1581 = vld [vmem:[#allocation9 + $0x118] sm:$0xf]
        %v1582 = vld [vmem:[#allocation9 + $0x11c] sm:$0xf]
        %v1583 = vld [vmem:[#allocation9 + $0x120] sm:$0xf]
        %v1584 = vld [vmem:[#allocation9 + $0x124] sm:$0xf]
        %v1585 = vld [vmem:[#allocation9 + $0x128] sm:$0xf]
        %v1586 = vld [vmem:[#allocation9 + $0x12c] sm:$0xf]
        %v1587 = vld [vmem:[#allocation9 + $0x130] sm:$0xf]
        %v1588 = vld [vmem:[#allocation9 + $0x134] sm:$0xf]
        %v1589 = vld [vmem:[#allocation9 + $0x138] sm:$0xf]
        %v1590 = vld [vmem:[#allocation9 + $0x13c] sm:$0xf]
        %v1591 = vld [vmem:[#allocation9 + $0x140] sm:$0xf]
        %v1592 = vld [vmem:[#allocation9 + $0x144] sm:$0xf]
        %v1593 = vld [vmem:[#allocation9 + $0x148] sm:$0xf]
        %v1594 = vld [vmem:[#allocation9 + $0x14c] sm:$0xf]
        %v1595 = vld [vmem:[#allocation9 + $0x150] sm:$0xf]
        %v1596 = vld [vmem:[#allocation9 + $0x154] sm:$0xf]
        %v1597 = vld [vmem:[#allocation9 + $0x158] sm:$0xf]
        %v1598 = vld [vmem:[#allocation9 + $0x15c] sm:$0xf]
        %v1599 = vld [vmem:[#allocation9 + $0x160] sm:$0xf]
        %v1600 = vld [vmem:[#allocation9 + $0x164] sm:$0xf]
        %v1601 = vld [vmem:[#allocation9 + $0x168] sm:$0xf]
        %v1602 = vld [vmem:[#allocation9 + $0x16c] sm:$0xf]
        %v1603 = vld [vmem:[#allocation9 + $0x170] sm:$0xf]
        %v1604 = vld [vmem:[#allocation9 + $0x174] sm:$0xf]
        %v1605 = vld [vmem:[#allocation9 + $0x178] sm:$0xf]
        %v1606 = vld [vmem:[#allocation9 + $0x17c] sm:$0xf]
        %v1607 = vld [vmem:[#allocation9 + $0x180] sm:$0xf]
        %v1608 = vld [vmem:[#allocation9 + $0x184] sm:$0xf]
        %v1609 = vld [vmem:[#allocation9 + $0x188] sm:$0xf]
        %v1610 = vld [vmem:[#allocation9 + $0x18c] sm:$0xf]
        %v1611 = vld [vmem:[#allocation9 + $0x190] sm:$0xf]
        %v1612 = vld [vmem:[#allocation9 + $0x194] sm:$0xf]
        %v1613 = vld [vmem:[#allocation9 + $0x198] sm:$0xf]
        %v1614 = vld [vmem:[#allocation9 + $0x19c] sm:$0xf]
        %v1615 = vld [vmem:[#allocation9 + $0x1a0] sm:$0xf]
        %v1616 = vld [vmem:[#allocation9 + $0x1a4] sm:$0xf]
        %v1617 = vld [vmem:[#allocation9 + $0x1a8] sm:$0xf]
        %v1618 = vld [vmem:[#allocation9 + $0x1ac] sm:$0xf]
        %v1619 = vld [vmem:[#allocation9 + $0x1b0] sm:$0xf]
        %v1620 = vld [vmem:[#allocation9 + $0x1b4] sm:$0xf]
        %v1621 = vld [vmem:[#allocation9 + $0x1b8] sm:$0xf]
        %v1622 = vld [vmem:[#allocation9 + $0x1bc] sm:$0xf]
        %v1623 = vld [vmem:[#allocation9 + $0x1c0] sm:$0xf]
        %v1624 = vld [vmem:[#allocation9 + $0x1c4] sm:$0xf]
        %v1625 = vld [vmem:[#allocation9 + $0x1c8] sm:$0xf]
        %v1626 = vld [vmem:[#allocation9 + $0x1cc] sm:$0xf]
        %v1627 = vld [vmem:[#allocation9 + $0x1d0] sm:$0xf]
        %v1628 = vld [vmem:[#allocation9 + $0x1d4] sm:$0xf]
        %v1629 = vld [vmem:[#allocation9 + $0x1d8] sm:$0xf]
        %v1630 = vld [vmem:[#allocation9 + $0x1dc] sm:$0xf]
        %v1631 = vld [vmem:[#allocation9 + $0x1e0] sm:$0xf]
        %v1632 = vld [vmem:[#allocation9 + $0x1e4] sm:$0xf]
        %v1633 = vld [vmem:[#allocation9 + $0x1e8] sm:$0xf]
        %v1634 = vld [vmem:[#allocation9 + $0x1ec] sm:$0xf]
        %v1635 = vld [vmem:[#allocation9 + $0x1f0] sm:$0xf]
        %v1636 = vld [vmem:[#allocation9 + $0x1f4] sm:$0xf]
        %v1637 = vld [vmem:[#allocation9 + $0x1f8] sm:$0xf]
        %v1638 = vld [vmem:[#allocation9 + $0x1fc] sm:$0xf]
        %v1639 = vld [vmem:[#allocation9 + $0x200] sm:$0xf]
        %v1640 = vld [vmem:[#allocation9 + $0x204] sm:$0xf]
        %v1641 = vld [vmem:[#allocation9 + $0x208] sm:$0xf]
        %v1642 = vld [vmem:[#allocation9 + $0x20c] sm:$0xf]
        %v1643 = vld [vmem:[#allocation9 + $0x210] sm:$0xf]
        %v1644 = vld [vmem:[#allocation9 + $0x214] sm:$0xf]
        %v1645 = vld [vmem:[#allocation9 + $0x218] sm:$0xf]
        %v1646 = vld [vmem:[#allocation9 + $0x21c] sm:$0xf]
        %v1647 = vld [vmem:[#allocation9 + $0x220] sm:$0xf]
        %v1648 = vld [vmem:[#allocation9 + $0x224] sm:$0xf]
        %v1649 = vld [vmem:[#allocation9 + $0x228] sm:$0xf]
        %v1650 = vld [vmem:[#allocation9 + $0x22c] sm:$0xf]
        %v1651 = vld [vmem:[#allocation9 + $0x230] sm:$0xf]
        %v1652 = vld [vmem:[#allocation9 + $0x234] sm:$0xf]
        %v1653 = vld [vmem:[#allocation9 + $0x238] sm:$0xf]
        %v1654 = vld [vmem:[#allocation9 + $0x23c] sm:$0xf]
        %v1799 = vunpack.c.l.b16 %v1511
        %v1800 = vunpack.c.l.b16 %v1512
        %v1801 = vunpack.c.l.b16 %v1513
        %v1802 = vunpack.c.l.b16 %v1514
        %v1803 = vunpack.c.l.b16 %v1515
        %v1804 = vunpack.c.l.b16 %v1516
        %v1805 = vunpack.c.l.b16 %v1517
        %v1806 = vunpack.c.l.b16 %v1518
        %v1807 = vunpack.c.l.b16 %v1519
        %v1808 = vunpack.c.l.b16 %v1520
        %v1809 = vunpack.c.l.b16 %v1521
        %v1810 = vunpack.c.l.b16 %v1522
        %v1811 = vunpack.c.l.b16 %v1523
        %v1812 = vunpack.c.l.b16 %v1524
        %v1813 = vunpack.c.l.b16 %v1525
        %v1814 = vunpack.c.l.b16 %v1526
        %v1815 = vunpack.c.l.b16 %v1527
        %v1816 = vunpack.c.l.b16 %v1528
        %v1817 = vunpack.c.l.b16 %v1529
        %v1818 = vunpack.c.l.b16 %v1530
        %v1819 = vunpack.c.l.b16 %v1531
        %v1820 = vunpack.c.l.b16 %v1532
        %v1821 = vunpack.c.l.b16 %v1533
        %v1822 = vunpack.c.l.b16 %v1534
        %v1823 = vunpack.c.l.b16 %v1535
        %v1824 = vunpack.c.l.b16 %v1536
        %v1825 = vunpack.c.l.b16 %v1537
        %v1826 = vunpack.c.l.b16 %v1538
        %v1827 = vunpack.c.l.b16 %v1539
        %v1828 = vunpack.c.l.b16 %v1540
        %v1829 = vunpack.c.l.b16 %v1541
        %v1830 = vunpack.c.l.b16 %v1542
        %v1831 = vunpack.c.l.b16 %v1543
        %v1832 = vunpack.c.l.b16 %v1544
        %v1833 = vunpack.c.l.b16 %v1545
        %v1834 = vunpack.c.l.b16 %v1546
        %v1835 = vunpack.c.l.b16 %v1547
        %v1836 = vunpack.c.l.b16 %v1548
        %v1837 = vunpack.c.l.b16 %v1549
        %v1838 = vunpack.c.l.b16 %v1550
        %v1839 = vunpack.c.l.b16 %v1551
        %v1840 = vunpack.c.l.b16 %v1552
        %v1841 = vunpack.c.l.b16 %v1553
        %v1842 = vunpack.c.l.b16 %v1554
        %v1843 = vunpack.c.l.b16 %v1555
        %v1844 = vunpack.c.l.b16 %v1556
        %v1845 = vunpack.c.l.b16 %v1557
        %v1846 = vunpack.c.l.b16 %v1558
        %v1847 = vunpack.c.l.b16 %v1559
        %v1848 = vunpack.c.l.b16 %v1560
        %v1849 = vunpack.c.l.b16 %v1561
        %v1850 = vunpack.c.l.b16 %v1562
        %v1851 = vunpack.c.l.b16 %v1563
        %v1852 = vunpack.c.l.b16 %v1564
        %v1853 = vunpack.c.l.b16 %v1565
        %v1854 = vunpack.c.l.b16 %v1566
        %v1855 = vunpack.c.l.b16 %v1567
        %v1856 = vunpack.c.l.b16 %v1568
        %v1857 = vunpack.c.l.b16 %v1569
        %v1858 = vunpack.c.l.b16 %v1570
        %v1859 = vunpack.c.l.b16 %v1571
        %v1860 = vunpack.c.l.b16 %v1572
        %v1861 = vunpack.c.l.b16 %v1573
        %v1862 = vunpack.c.l.b16 %v1574
        %v1863 = vunpack.c.l.b16 %v1575
        %v1864 = vunpack.c.l.b16 %v1576
        %v1865 = vunpack.c.l.b16 %v1577
        %v1866 = vunpack.c.l.b16 %v1578
        %v1867 = vunpack.c.l.b16 %v1579
        %v1868 = vunpack.c.l.b16 %v1580
        %v1869 = vunpack.c.l.b16 %v1581
        %v1870 = vunpack.c.l.b16 %v1582
        %v1871 = vunpack.c.l.b16 %v1583
        %v1872 = vunpack.c.l.b16 %v1584
        %v1873 = vunpack.c.l.b16 %v1585
        %v1874 = vunpack.c.l.b16 %v1586
        %v1875 = vunpack.c.l.b16 %v1587
        %v1876 = vunpack.c.l.b16 %v1588
        %v1877 = vunpack.c.l.b16 %v1589
        %v1878 = vunpack.c.l.b16 %v1590
        %v1879 = vunpack.c.l.b16 %v1591
        %v1880 = vunpack.c.l.b16 %v1592
        %v1881 = vunpack.c.l.b16 %v1593
        %v1882 = vunpack.c.l.b16 %v1594
        %v1883 = vunpack.c.l.b16 %v1595
        %v1884 = vunpack.c.l.b16 %v1596
        %v1885 = vunpack.c.l.b16 %v1597
        %v1886 = vunpack.c.l.b16 %v1598
        %v1887 = vunpack.c.l.b16 %v1599
        %v1888 = vunpack.c.l.b16 %v1600
        %v1889 = vunpack.c.l.b16 %v1601
        %v1890 = vunpack.c.l.b16 %v1602
        %v1891 = vunpack.c.l.b16 %v1603
        %v1892 = vunpack.c.l.b16 %v1604
        %v1893 = vunpack.c.l.b16 %v1605
        %v1894 = vunpack.c.l.b16 %v1606
        %v1895 = vunpack.c.l.b16 %v1607
        %v1896 = vunpack.c.l.b16 %v1608
        %v1897 = vunpack.c.l.b16 %v1609
        %v1898 = vunpack.c.l.b16 %v1610
        %v1899 = vunpack.c.l.b16 %v1611
        %v1900 = vunpack.c.l.b16 %v1612
        %v1901 = vunpack.c.l.b16 %v1613
        %v1902 = vunpack.c.l.b16 %v1614
        %v1903 = vunpack.c.l.b16 %v1615
        %v1904 = vunpack.c.l.b16 %v1616
        %v1905 = vunpack.c.l.b16 %v1617
        %v1906 = vunpack.c.l.b16 %v1618
        %v1907 = vunpack.c.l.b16 %v1619
        %v1908 = vunpack.c.l.b16 %v1620
        %v1909 = vunpack.c.l.b16 %v1621
        %v1910 = vunpack.c.l.b16 %v1622
        %v1911 = vunpack.c.l.b16 %v1623
        %v1912 = vunpack.c.l.b16 %v1624
        %v1913 = vunpack.c.l.b16 %v1625
        %v1914 = vunpack.c.l.b16 %v1626
        %v1915 = vunpack.c.l.b16 %v1627
        %v1916 = vunpack.c.l.b16 %v1628
        %v1917 = vunpack.c.l.b16 %v1629
        %v1918 = vunpack.c.l.b16 %v1630
        %v1919 = vunpack.c.l.b16 %v1631
        %v1920 = vunpack.c.l.b16 %v1632
        %v1921 = vunpack.c.l.b16 %v1633
        %v1922 = vunpack.c.l.b16 %v1634
        %v1923 = vunpack.c.l.b16 %v1635
        %v1924 = vunpack.c.l.b16 %v1636
        %v1925 = vunpack.c.l.b16 %v1637
        %v1926 = vunpack.c.l.b16 %v1638
        %v1927 = vunpack.c.l.b16 %v1639
        %v1928 = vunpack.c.l.b16 %v1640
        %v1929 = vunpack.c.l.b16 %v1641
        %v1930 = vunpack.c.l.b16 %v1642
        %v1931 = vunpack.c.l.b16 %v1643
        %v1932 = vunpack.c.l.b16 %v1644
        %v1933 = vunpack.c.l.b16 %v1645
        %v1934 = vunpack.c.l.b16 %v1646
        %v1935 = vunpack.c.l.b16 %v1647
        %v1936 = vunpack.c.l.b16 %v1648
        %v1937 = vunpack.c.l.b16 %v1649
        %v1938 = vunpack.c.l.b16 %v1650
        %v1939 = vunpack.c.l.b16 %v1651
        %v1940 = vunpack.c.l.b16 %v1652
        %v1941 = vunpack.c.l.b16 %v1653
        %v1942 = vunpack.c.l.b16 %v1654
        %v1943 = vpack.c.b16 %v1800, %v1799
        %v1944 = vpack.c.b16 %v1802, %v1801
        %v1945 = vpack.c.b16 %v1804, %v1803
        %v1946 = vpack.c.b16 %v1806, %v1805
        %v1947 = vpack.c.b16 %v1808, %v1807
        %v1948 = vpack.c.b16 %v1810, %v1809
        %v1949 = vpack.c.b16 %v1812, %v1811
        %v1950 = vpack.c.b16 %v1814, %v1813
        %v1951 = vpack.c.b16 %v1816, %v1815
        %v1952 = vpack.c.b16 %v1818, %v1817
        %v1953 = vpack.c.b16 %v1820, %v1819
        %v1954 = vpack.c.b16 %v1822, %v1821
        %v1955 = vpack.c.b16 %v1824, %v1823
        %v1956 = vpack.c.b16 %v1826, %v1825
        %v1957 = vpack.c.b16 %v1828, %v1827
        %v1958 = vpack.c.b16 %v1830, %v1829
        %v1959 = vpack.c.b16 %v1832, %v1831
        %v1960 = vpack.c.b16 %v1834, %v1833
        %v1961 = vpack.c.b16 %v1836, %v1835
        %v1962 = vpack.c.b16 %v1838, %v1837
        %v1963 = vpack.c.b16 %v1840, %v1839
        %v1964 = vpack.c.b16 %v1842, %v1841
        %v1965 = vpack.c.b16 %v1844, %v1843
        %v1966 = vpack.c.b16 %v1846, %v1845
        %v1967 = vpack.c.b16 %v1848, %v1847
        %v1968 = vpack.c.b16 %v1850, %v1849
        %v1969 = vpack.c.b16 %v1852, %v1851
        %v1970 = vpack.c.b16 %v1854, %v1853
        %v1971 = vpack.c.b16 %v1856, %v1855
        %v1972 = vpack.c.b16 %v1858, %v1857
        %v1973 = vpack.c.b16 %v1860, %v1859
        %v1974 = vpack.c.b16 %v1862, %v1861
        %v1975 = vpack.c.b16 %v1864, %v1863
        %v1976 = vpack.c.b16 %v1866, %v1865
        %v1977 = vpack.c.b16 %v1868, %v1867
        %v1978 = vpack.c.b16 %v1870, %v1869
        %v1979 = vpack.c.b16 %v1872, %v1871
        %v1980 = vpack.c.b16 %v1874, %v1873
        %v1981 = vpack.c.b16 %v1876, %v1875
        %v1982 = vpack.c.b16 %v1878, %v1877
        %v1983 = vpack.c.b16 %v1880, %v1879
        %v1984 = vpack.c.b16 %v1882, %v1881
        %v1985 = vpack.c.b16 %v1884, %v1883
        %v1986 = vpack.c.b16 %v1886, %v1885
        %v1987 = vpack.c.b16 %v1888, %v1887
        %v1988 = vpack.c.b16 %v1890, %v1889
        %v1989 = vpack.c.b16 %v1892, %v1891
        %v1990 = vpack.c.b16 %v1894, %v1893
        %v1991 = vpack.c.b16 %v1896, %v1895
        %v1992 = vpack.c.b16 %v1898, %v1897
        %v1993 = vpack.c.b16 %v1900, %v1899
        %v1994 = vpack.c.b16 %v1902, %v1901
        %v1995 = vpack.c.b16 %v1904, %v1903
        %v1996 = vpack.c.b16 %v1906, %v1905
        %v1997 = vpack.c.b16 %v1908, %v1907
        %v1998 = vpack.c.b16 %v1910, %v1909
        %v1999 = vpack.c.b16 %v1912, %v1911
        %v2000 = vpack.c.b16 %v1914, %v1913
        %v2001 = vpack.c.b16 %v1916, %v1915
        %v2002 = vpack.c.b16 %v1918, %v1917
        %v2003 = vpack.c.b16 %v1920, %v1919
        %v2004 = vpack.c.b16 %v1922, %v1921
        %v2005 = vpack.c.b16 %v1924, %v1923
        %v2006 = vpack.c.b16 %v1926, %v1925
        %v2007 = vpack.c.b16 %v1928, %v1927
        %v2008 = vpack.c.b16 %v1930, %v1929
        %v2009 = vpack.c.b16 %v1932, %v1931
        %v2010 = vpack.c.b16 %v1934, %v1933
        %v2011 = vpack.c.b16 %v1936, %v1935
        %v2012 = vpack.c.b16 %v1938, %v1937
        %v2013 = vpack.c.b16 %v1940, %v1939
        %v2014 = vpack.c.b16 %v1942, %v1941
        %2087 = vmatprep.subr.bf16.mxu0 0
        %2088 = vmatpush1.bf16.msra.mxu0 %v1943
        %2089 = vmatprep.subr.bf16.mxu0 0
        %2090 = vmatpush1.bf16.msra.mxu0 %v1944
        %2091 = vmatprep.subr.bf16.mxu0 0
        %2092 = vmatpush1.bf16.msra.mxu0 %v1945
        %2093 = vmatprep.subr.bf16.mxu0 0
        %2094 = vmatpush1.bf16.msra.mxu0 %v1946
        %2095 = vmatprep.subr.bf16.mxu0 0
        %2096 = vmatpush1.bf16.msra.mxu0 %v1947
        %2097 = vmatprep.subr.bf16.mxu0 0
        %2098 = vmatpush1.bf16.msra.mxu0 %v1948
        %2099 = vmatprep.subr.bf16.mxu0 0
        %2100 = vmatpush1.bf16.msra.mxu0 %v1949
        %2101 = vmatprep.subr.bf16.mxu0 0
        %2102 = vmatpush1.bf16.msra.mxu0 %v1950
        %2103 = vmatprep.subr.bf16.mxu0 0
        %2104 = vmatpush1.bf16.msra.mxu0 %v1951
        %2105 = vmatprep.subr.bf16.mxu0 0
        %2106 = vmatpush1.bf16.msra.mxu0 %v1952
        %2107 = vmatprep.subr.bf16.mxu0 0
        %2108 = vmatpush1.bf16.msra.mxu0 %v1953
        %2109 = vmatprep.subr.bf16.mxu0 0
        %2110 = vmatpush1.bf16.msra.mxu0 %v1954
        %2111 = vmatprep.subr.bf16.mxu0 0
        %2112 = vmatpush1.bf16.msra.mxu0 %v1955
        %2113 = vmatprep.subr.bf16.mxu0 0
        %2114 = vmatpush1.bf16.msra.mxu0 %v1956
        %2115 = vmatprep.subr.bf16.mxu0 0
        %2116 = vmatpush1.bf16.msra.mxu0 %v1957
        %2117 = vmatprep.subr.bf16.mxu0 0
        %2118 = vmatpush1.bf16.msra.mxu0 %v1958
        %2119 = vmatprep.mubr.bf16.mxu0 %v1440
        %2120 = vmatmul.mubr.bf16.gmra.mrb[0].mxu0 %v1439
        %v2121 = vpop.f32.mrb[0].mxu0
        %v2122 = vadd.f32 0.0, %v2121
        %v2123 = vpop.f32.mrb[0].mxu0
        %v2124 = vpop.f32.mrb[0].mxu0
        %v2125 = vadd.f32 0.0, %v2124
        %v2126 = vpop.f32.mrb[0].mxu0
        %2127 = vmatprep.mubr.bf16.mxu0 %v1449
        %2128 = vmatmul.mubr.bf16.gmra.mrb[0].mxu0 %v1448
        %v2129 = vpop.f32.mrb[0].mxu0
        %v2130 = vadd.f32 0.0, %v2129
        %v2131 = vpop.f32.mrb[0].mxu0
        %v2132 = vpop.f32.mrb[0].mxu0
        %v2133 = vadd.f32 0.0, %v2132
        %v2134 = vpop.f32.mrb[0].mxu0
        %2135 = vmatprep.mubr.bf16.mxu0 %v1458
        %2136 = vmatmul.mubr.bf16.gmra.mrb[0].mxu0 %v1457
        %v2137 = vpop.f32.mrb[0].mxu0
        %v2138 = vadd.f32 0.0, %v2137
        %v2139 = vpop.f32.mrb[0].mxu0
        %v2140 = vpop.f32.mrb[0].mxu0
        %v2141 = vadd.f32 0.0, %v2140
        %v2142 = vpop.f32.mrb[0].mxu0
        %2143 = vmatprep.mubr.bf16.mxu0 %v1467
        %2144 = vmatmul.mubr.bf16.gmra.mrb[0].mxu0 %v1466
        %v2145 = vpop.f32.mrb[0].mxu0
        %v2146 = vadd.f32 0.0, %v2145
        %v2147 = vpop.f32.mrb[0].mxu0
        %v2148 = vpop.f32.mrb[0].mxu0
        %v2149 = vadd.f32 0.0, %v2148
        %v2150 = vpop.f32.mrb[0].mxu0
        %2151 = vmatprep.mubr.bf16.mxu0 %v1476
        %2152 = vmatmul.mubr.bf16.gmra.mrb[0].mxu0 %v1475
        %v2153 = vpop.f32.mrb[0].mxu0
        %v2154 = vadd.f32 0.0, %v2153
        %v2155 = vpop.f32.mrb[0].mxu0
        %v2156 = vpop.f32.mrb[0].mxu0
        %v2157 = vadd.f32 0.0, %v2156
        %v2158 = vpop.f32.mrb[0].mxu0
        %2159 = vmatprep.mubr.bf16.mxu0 %v1485
        %2160 = vmatmul.mubr.bf16.gmra.mrb[0].mxu0 %v1484
        %v2161 = vpop.f32.mrb[0].mxu0
        %v2162 = vadd.f32 0.0, %v2161
        %v2163 = vpop.f32.mrb[0].mxu0
        %v2164 = vpop.f32.mrb[0].mxu0
        %v2165 = vadd.f32 0.0, %v2164
        %v2166 = vpop.f32.mrb[0].mxu0
        %2167 = vmatprep.mubr.bf16.mxu0 %v1494
        %2168 = vmatmul.mubr.bf16.gmra.mrb[0].mxu0 %v1493
        %v2169 = vpop.f32.mrb[0].mxu0
        %v2170 = vadd.f32 0.0, %v2169
        %v2171 = vpop.f32.mrb[0].mxu0
        %v2172 = vpop.f32.mrb[0].mxu0
        %v2173 = vadd.f32 0.0, %v2172
        %v2174 = vpop.f32.mrb[0].mxu0
        %2175 = vmatprep.mubr.bf16.mxu0 %v1503
        %2176 = vmatmul.mubr.bf16.gmra.mrb[0].mxu0 %v1502
        %v2177 = vpop.f32.mrb[0].mxu0
        %v2178 = vadd.f32 0.0, %v2177
        %v2179 = vpop.f32.mrb[0].mxu0
        %v2180 = vpop.f32.mrb[0].mxu0
        %v2181 = vadd.f32 0.0, %v2180
        %v2182 = vpop.f32.mrb[0].mxu0
        %2183 = vdwg.mxu0
        %2184 = vmatprep.subr.bf16.mxu0 0
        %2185 = vmatpush1.bf16.msra.mxu0 %v1959
        %2186 = vmatprep.subr.bf16.mxu0 0
        %2187 = vmatpush1.bf16.msra.mxu0 %v1960
        %2188 = vmatprep.subr.bf16.mxu0 0
        %2189 = vmatpush1.bf16.msra.mxu0 %v1961
        %2190 = vmatprep.subr.bf16.mxu0 0
        %2191 = vmatpush1.bf16.msra.mxu0 %v1962
        %2192 = vmatprep.subr.bf16.mxu0 0
        %2193 = vmatpush1.bf16.msra.mxu0 %v1963
        %2194 = vmatprep.subr.bf16.mxu0 0
        %2195 = vmatpush1.bf16.msra.mxu0 %v1964
        %2196 = vmatprep.subr.bf16.mxu0 0
        %2197 = vmatpush1.bf16.msra.mxu0 %v1965
        %2198 = vmatprep.subr.bf16.mxu0 0
        %2199 = vmatpush1.bf16.msra.mxu0 %v1966
        %2200 = vmatprep.subr.bf16.mxu0 0
        %2201 = vmatpush1.bf16.msra.mxu0 %v1967
        %2202 = vmatprep.subr.bf16.mxu0 0
        %2203 = vmatpush1.bf16.msra.mxu0 %v1968
        %2204 = vmatprep.subr.bf16.mxu0 0
        %2205 = vmatpush1.bf16.msra.mxu0 %v1969
        %2206 = vmatprep.subr.bf16.mxu0 0
        %2207 = vmatpush1.bf16.msra.mxu0 %v1970
        %2208 = vmatprep.subr.bf16.mxu0 0
        %2209 = vmatpush1.bf16.msra.mxu0 %v1971
        %2210 = vmatprep.subr.bf16.mxu0 0
        %2211 = vmatpush1.bf16.msra.mxu0 %v1972
        %2212 = vmatprep.subr.bf16.mxu0 0
        %2213 = vmatpush1.bf16.msra.mxu0 %v1973
        %2214 = vmatprep.subr.bf16.mxu0 0
        %2215 = vmatpush1.bf16.msra.mxu0 %v1974
        %2216 = vmatprep.mubr.bf16.mxu0 %v1442
        %2217 = vmatmul.mubr.bf16.gmra.mrb[0].mxu0 %v1441
        %v2218 = vpop.f32.mrb[0].mxu0
        %v2219 = vadd.f32 %v2122, %v2218
        %v2220 = vpop.f32.mrb[0].mxu0
        %v2221 = vpop.f32.mrb[0].mxu0
        %v2222 = vadd.f32 %v2125, %v2221
        %v2223 = vpop.f32.mrb[0].mxu0
        %2224 = vmatprep.mubr.bf16.mxu0 %v1451
        %2225 = vmatmul.mubr.bf16.gmra.mrb[0].mxu0 %v1450
        %v2226 = vpop.f32.mrb[0].mxu0
        %v2227 = vadd.f32 %v2130, %v2226
        %v2228 = vpop.f32.mrb[0].mxu0
        %v2229 = vpop.f32.mrb[0].mxu0
        %v2230 = vadd.f32 %v2133, %v2229
        %v2231 = vpop.f32.mrb[0].mxu0
        %2232 = vmatprep.mubr.bf16.mxu0 %v1460
        %2233 = vmatmul.mubr.bf16.gmra.mrb[0].mxu0 %v1459
        %v2234 = vpop.f32.mrb[0].mxu0
        %v2235 = vadd.f32 %v2138, %v2234
        %v2236 = vpop.f32.mrb[0].mxu0
        %v2237 = vpop.f32.mrb[0].mxu0
        %v2238 = vadd.f32 %v2141, %v2237
        %v2239 = vpop.f32.mrb[0].mxu0
        %2240 = vmatprep.mubr.bf16.mxu0 %v1469
        %2241 = vmatmul.mubr.bf16.gmra.mrb[0].mxu0 %v1468
        %v2242 = vpop.f32.mrb[0].mxu0
        %v2243 = vadd.f32 %v2146, %v2242
        %v2244 = vpop.f32.mrb[0].mxu0
        %v2245 = vpop.f32.mrb[0].mxu0
        %v2246 = vadd.f32 %v2149, %v2245
        %v2247 = vpop.f32.mrb[0].mxu0
        %2248 = vmatprep.mubr.bf16.mxu0 %v1478
        %2249 = vmatmul.mubr.bf16.gmra.mrb[0].mxu0 %v1477
        %v2250 = vpop.f32.mrb[0].mxu0
        %v2251 = vadd.f32 %v2154, %v2250
        %v2252 = vpop.f32.mrb[0].mxu0
        %v2253 = vpop.f32.mrb[0].mxu0
        %v2254 = vadd.f32 %v2157, %v2253
        %v2255 = vpop.f32.mrb[0].mxu0
        %2256 = vmatprep.mubr.bf16.mxu0 %v1487
        %2257 = vmatmul.mubr.bf16.gmra.mrb[0].mxu0 %v1486
        %v2258 = vpop.f32.mrb[0].mxu0
        %v2259 = vadd.f32 %v2162, %v2258
        %v2260 = vpop.f32.mrb[0].mxu0
        %v2261 = vpop.f32.mrb[0].mxu0
        %v2262 = vadd.f32 %v2165, %v2261
        %v2263 = vpop.f32.mrb[0].mxu0
        %2264 = vmatprep.mubr.bf16.mxu0 %v1496
        %2265 = vmatmul.mubr.bf16.gmra.mrb[0].mxu0 %v1495
        %v2266 = vpop.f32.mrb[0].mxu0
        %v2267 = vadd.f32 %v2170, %v2266
        %v2268 = vpop.f32.mrb[0].mxu0
        %v2269 = vpop.f32.mrb[0].mxu0
        %v2270 = vadd.f32 %v2173, %v2269
        %v2271 = vpop.f32.mrb[0].mxu0
        %2272 = vmatprep.mubr.bf16.mxu0 %v1505
        %2273 = vmatmul.mubr.bf16.gmra.mrb[0].mxu0 %v1504
        %v2274 = vpop.f32.mrb[0].mxu0
        %v2275 = vadd.f32 %v2178, %v2274
        %v2276 = vpop.f32.mrb[0].mxu0
        %v2277 = vpop.f32.mrb[0].mxu0
        %v2278 = vadd.f32 %v2181, %v2277
        %v2279 = vpop.f32.mrb[0].mxu0
        %2280 = vdwg.mxu0
        %2281 = vmatprep.subr.bf16.mxu0 0
        %2282 = vmatpush1.bf16.msra.mxu0 %v1975
        %2283 = vmatprep.subr.bf16.mxu0 0
        %2284 = vmatpush1.bf16.msra.mxu0 %v1976
        %2285 = vmatprep.subr.bf16.mxu0 0
        %2286 = vmatpush1.bf16.msra.mxu0 %v1977
        %2287 = vmatprep.subr.bf16.mxu0 0
        %2288 = vmatpush1.bf16.msra.mxu0 %v1978
        %2289 = vmatprep.subr.bf16.mxu0 0
        %2290 = vmatpush1.bf16.msra.mxu0 %v1979
        %2291 = vmatprep.subr.bf16.mxu0 0
        %2292 = vmatpush1.bf16.msra.mxu0 %v1980
        %2293 = vmatprep.subr.bf16.mxu0 0
        %2294 = vmatpush1.bf16.msra.mxu0 %v1981
        %2295 = vmatprep.subr.bf16.mxu0 0
        %2296 = vmatpush1.bf16.msra.mxu0 %v1982
        %2297 = vmatprep.subr.bf16.mxu0 0
        %2298 = vmatpush1.bf16.msra.mxu0 %v1983
        %2299 = vmatprep.subr.bf16.mxu0 0
        %2300 = vmatpush1.bf16.msra.mxu0 %v1984
        %2301 = vmatprep.subr.bf16.mxu0 0
        %2302 = vmatpush1.bf16.msra.mxu0 %v1985
        %2303 = vmatprep.subr.bf16.mxu0 0
        %2304 = vmatpush1.bf16.msra.mxu0 %v1986
        %2305 = vmatprep.subr.bf16.mxu0 0
        %2306 = vmatpush1.bf16.msra.mxu0 %v1987
        %2307 = vmatprep.subr.bf16.mxu0 0
        %2308 = vmatpush1.bf16.msra.mxu0 %v1988
        %2309 = vmatprep.subr.bf16.mxu0 0
        %2310 = vmatpush1.bf16.msra.mxu0 %v1989
        %2311 = vmatprep.subr.bf16.mxu0 0
        %2312 = vmatpush1.bf16.msra.mxu0 %v1990
        %2313 = vmatprep.mubr.bf16.mxu0 %v1444
        %2314 = vmatmul.mubr.bf16.gmra.mrb[0].mxu0 %v1443
        %v2315 = vpop.f32.mrb[0].mxu0
        %v2316 = vadd.f32 %v2219, %v2315
        %v2317 = vpop.f32.mrb[0].mxu0
        %v2318 = vpop.f32.mrb[0].mxu0
        %v2319 = vadd.f32 %v2222, %v2318
        %v2320 = vpop.f32.mrb[0].mxu0
        %2321 = vmatprep.mubr.bf16.mxu0 %v1453
        %2322 = vmatmul.mubr.bf16.gmra.mrb[0].mxu0 %v1452
        %v2323 = vpop.f32.mrb[0].mxu0
        %v2324 = vadd.f32 %v2227, %v2323
        %v2325 = vpop.f32.mrb[0].mxu0
        %v2326 = vpop.f32.mrb[0].mxu0
        %v2327 = vadd.f32 %v2230, %v2326
        %v2328 = vpop.f32.mrb[0].mxu0
        %2329 = vmatprep.mubr.bf16.mxu0 %v1462
        %2330 = vmatmul.mubr.bf16.gmra.mrb[0].mxu0 %v1461
        %v2331 = vpop.f32.mrb[0].mxu0
        %v2332 = vadd.f32 %v2235, %v2331
        %v2333 = vpop.f32.mrb[0].mxu0
        %v2334 = vpop.f32.mrb[0].mxu0
        %v2335 = vadd.f32 %v2238, %v2334
        %v2336 = vpop.f32.mrb[0].mxu0
        %2337 = vmatprep.mubr.bf16.mxu0 %v1471
        %2338 = vmatmul.mubr.bf16.gmra.mrb[0].mxu0 %v1470
        %v2339 = vpop.f32.mrb[0].mxu0
        %v2340 = vadd.f32 %v2243, %v2339
        %v2341 = vpop.f32.mrb[0].mxu0
        %v2342 = vpop.f32.mrb[0].mxu0
        %v2343 = vadd.f32 %v2246, %v2342
        %v2344 = vpop.f32.mrb[0].mxu0
        %2345 = vmatprep.mubr.bf16.mxu0 %v1480
        %2346 = vmatmul.mubr.bf16.gmra.mrb[0].mxu0 %v1479
        %v2347 = vpop.f32.mrb[0].mxu0
        %v2348 = vadd.f32 %v2251, %v2347
        %v2349 = vpop.f32.mrb[0].mxu0
        %v2350 = vpop.f32.mrb[0].mxu0
        %v2351 = vadd.f32 %v2254, %v2350
        %v2352 = vpop.f32.mrb[0].mxu0
        %2353 = vmatprep.mubr.bf16.mxu0 %v1489
        %2354 = vmatmul.mubr.bf16.gmra.mrb[0].mxu0 %v1488
        %v2355 = vpop.f32.mrb[0].mxu0
        %v2356 = vadd.f32 %v2259, %v2355
        %v2357 = vpop.f32.mrb[0].mxu0
        %v2358 = vpop.f32.mrb[0].mxu0
        %v2359 = vadd.f32 %v2262, %v2358
        %v2360 = vpop.f32.mrb[0].mxu0
        %2361 = vmatprep.mubr.bf16.mxu0 %v1498
        %2362 = vmatmul.mubr.bf16.gmra.mrb[0].mxu0 %v1497
        %v2363 = vpop.f32.mrb[0].mxu0
        %v2364 = vadd.f32 %v2267, %v2363
        %v2365 = vpop.f32.mrb[0].mxu0
        %v2366 = vpop.f32.mrb[0].mxu0
        %v2367 = vadd.f32 %v2270, %v2366
        %v2368 = vpop.f32.mrb[0].mxu0
        %2369 = vmatprep.mubr.bf16.mxu0 %v1507
        %2370 = vmatmul.mubr.bf16.gmra.mrb[0].mxu0 %v1506
        %v2371 = vpop.f32.mrb[0].mxu0
        %v2372 = vadd.f32 %v2275, %v2371
        %v2373 = vpop.f32.mrb[0].mxu0
        %v2374 = vpop.f32.mrb[0].mxu0
        %v2375 = vadd.f32 %v2278, %v2374
        %v2376 = vpop.f32.mrb[0].mxu0
        %2377 = vdwg.mxu0
        %2378 = vmatprep.subr.bf16.mxu0 0
        %2379 = vmatpush1.bf16.msra.mxu0 %v1991
        %2380 = vmatprep.subr.bf16.mxu0 0
        %2381 = vmatpush1.bf16.msra.mxu0 %v1992
        %2382 = vmatprep.subr.bf16.mxu0 0
        %2383 = vmatpush1.bf16.msra.mxu0 %v1993
        %2384 = vmatprep.subr.bf16.mxu0 0
        %2385 = vmatpush1.bf16.msra.mxu0 %v1994
        %2386 = vmatprep.subr.bf16.mxu0 0
        %2387 = vmatpush1.bf16.msra.mxu0 %v1995
        %2388 = vmatprep.subr.bf16.mxu0 0
        %2389 = vmatpush1.bf16.msra.mxu0 %v1996
        %2390 = vmatprep.subr.bf16.mxu0 0
        %2391 = vmatpush1.bf16.msra.mxu0 %v1997
        %2392 = vmatprep.subr.bf16.mxu0 0
        %2393 = vmatpush1.bf16.msra.mxu0 %v1998
        %2394 = vmatprep.subr.bf16.mxu0 0
        %2395 = vmatpush1.bf16.msra.mxu0 %v1999
        %2396 = vmatprep.subr.bf16.mxu0 0
        %2397 = vmatpush1.bf16.msra.mxu0 %v2000
        %2398 = vmatprep.subr.bf16.mxu0 0
        %2399 = vmatpush1.bf16.msra.mxu0 %v2001
        %2400 = vmatprep.subr.bf16.mxu0 0
        %2401 = vmatpush1.bf16.msra.mxu0 %v2002
        %2402 = vmatprep.subr.bf16.mxu0 0
        %2403 = vmatpush1.bf16.msra.mxu0 %v2003
        %2404 = vmatprep.subr.bf16.mxu0 0
        %2405 = vmatpush1.bf16.msra.mxu0 %v2004
        %2406 = vmatprep.subr.bf16.mxu0 0
        %2407 = vmatpush1.bf16.msra.mxu0 %v2005
        %2408 = vmatprep.subr.bf16.mxu0 0
        %2409 = vmatpush1.bf16.msra.mxu0 %v2006
        %2410 = vmatprep.mubr.bf16.mxu0 %v1446
        %2411 = vmatmul.mubr.bf16.gmra.mrb[0].mxu0 %v1445
        %v2412 = vpop.f32.mrb[0].mxu0
        %v2413 = vadd.f32 %v2316, %v2412
        %v2414 = vpop.f32.mrb[0].mxu0
        %v2415 = vpop.f32.mrb[0].mxu0
        %v2416 = vadd.f32 %v2319, %v2415
        %v2417 = vpop.f32.mrb[0].mxu0
        %2418 = vmatprep.mubr.bf16.mxu0 %v1455
        %2419 = vmatmul.mubr.bf16.gmra.mrb[0].mxu0 %v1454
        %v2420 = vpop.f32.mrb[0].mxu0
        %v2421 = vadd.f32 %v2324, %v2420
        %v2422 = vpop.f32.mrb[0].mxu0
        %v2423 = vpop.f32.mrb[0].mxu0
        %v2424 = vadd.f32 %v2327, %v2423
        %v2425 = vpop.f32.mrb[0].mxu0
        %2426 = vmatprep.mubr.bf16.mxu0 %v1464
        %2427 = vmatmul.mubr.bf16.gmra.mrb[0].mxu0 %v1463
        %v2428 = vpop.f32.mrb[0].mxu0
        %v2429 = vadd.f32 %v2332, %v2428
        %v2430 = vpop.f32.mrb[0].mxu0
        %v2431 = vpop.f32.mrb[0].mxu0
        %v2432 = vadd.f32 %v2335, %v2431
        %v2433 = vpop.f32.mrb[0].mxu0
        %2434 = vmatprep.mubr.bf16.mxu0 %v1473
        %2435 = vmatmul.mubr.bf16.gmra.mrb[0].mxu0 %v1472
        %v2436 = vpop.f32.mrb[0].mxu0
        %v2437 = vadd.f32 %v2340, %v2436
        %v2438 = vpop.f32.mrb[0].mxu0
        %v2439 = vpop.f32.mrb[0].mxu0
        %v2440 = vadd.f32 %v2343, %v2439
        %v2441 = vpop.f32.mrb[0].mxu0
        %2442 = vmatprep.mubr.bf16.mxu0 %v1482
        %2443 = vmatmul.mubr.bf16.gmra.mrb[0].mxu0 %v1481
        %v2444 = vpop.f32.mrb[0].mxu0
        %v2445 = vadd.f32 %v2348, %v2444
        %v2446 = vpop.f32.mrb[0].mxu0
        %v2447 = vpop.f32.mrb[0].mxu0
        %v2448 = vadd.f32 %v2351, %v2447
        %v2449 = vpop.f32.mrb[0].mxu0
        %2450 = vmatprep.mubr.bf16.mxu0 %v1491
        %2451 = vmatmul.mubr.bf16.gmra.mrb[0].mxu0 %v1490
        %v2452 = vpop.f32.mrb[0].mxu0
        %v2453 = vadd.f32 %v2356, %v2452
        %v2454 = vpop.f32.mrb[0].mxu0
        %v2455 = vpop.f32.mrb[0].mxu0
        %v2456 = vadd.f32 %v2359, %v2455
        %v2457 = vpop.f32.mrb[0].mxu0
        %2458 = vmatprep.mubr.bf16.mxu0 %v1500
        %2459 = vmatmul.mubr.bf16.gmra.mrb[0].mxu0 %v1499
        %v2460 = vpop.f32.mrb[0].mxu0
        %v2461 = vadd.f32 %v2364, %v2460
        %v2462 = vpop.f32.mrb[0].mxu0
        %v2463 = vpop.f32.mrb[0].mxu0
        %v2464 = vadd.f32 %v2367, %v2463
        %v2465 = vpop.f32.mrb[0].mxu0
        %2466 = vmatprep.mubr.bf16.mxu0 %v1509
        %2467 = vmatmul.mubr.bf16.gmra.mrb[0].mxu0 %v1508
        %v2468 = vpop.f32.mrb[0].mxu0
        %v2469 = vadd.f32 %v2372, %v2468
        %v2470 = vpop.f32.mrb[0].mxu0
        %v2471 = vpop.f32.mrb[0].mxu0
        %v2472 = vadd.f32 %v2375, %v2471
        %v2473 = vpop.f32.mrb[0].mxu0
        %2474 = vdwg.mxu0
        %2475 = vmatprep.subr.bf16.mxu0 0
        %2476 = vmatpush1.bf16.msra.mxu0 %v2007
        %2477 = vmatprep.subr.bf16.mxu0 0
        %2478 = vmatpush1.bf16.msra.mxu0 %v2008
        %2479 = vmatprep.subr.bf16.mxu0 0
        %2480 = vmatpush1.bf16.msra.mxu0 %v2009
        %2481 = vmatprep.subr.bf16.mxu0 0
        %2482 = vmatpush1.bf16.msra.mxu0 %v2010
        %2483 = vmatprep.subr.bf16.mxu0 0
        %2484 = vmatpush1.bf16.msra.mxu0 %v2011
        %2485 = vmatprep.subr.bf16.mxu0 0
        %2486 = vmatpush1.bf16.msra.mxu0 %v2012
        %2487 = vmatprep.subr.bf16.mxu0 0
        %2488 = vmatpush1.bf16.msra.mxu0 %v2013
        %2489 = vmatprep.subr.bf16.mxu0 0
        %2490 = vmatpush1.bf16.msra.mxu0 %v2014
        %2491 = vmatprep.subr.bf16.mxu0 0
        %2492 = vmatpush1.bf16.msra.mxu0 0
        %2493 = vmatprep.subr.bf16.mxu0 0
        %2494 = vmatpush1.bf16.msra.mxu0 0
        %2495 = vmatprep.subr.bf16.mxu0 0
        %2496 = vmatpush1.bf16.msra.mxu0 0
        %2497 = vmatprep.subr.bf16.mxu0 0
        %2498 = vmatpush1.bf16.msra.mxu0 0
        %2499 = vmatprep.subr.bf16.mxu0 0
        %2500 = vmatpush1.bf16.msra.mxu0 0
        %2501 = vmatprep.subr.bf16.mxu0 0
        %2502 = vmatpush1.bf16.msra.mxu0 0
        %2503 = vmatprep.subr.bf16.mxu0 0
        %2504 = vmatpush1.bf16.msra.mxu0 0
        %2505 = vmatprep.subr.bf16.mxu0 0
        %2506 = vmatpush1.bf16.msra.mxu0 0
        %2507 = vmatprep.mubr.bf16.mxu0 0
        %2508 = vmatmul.mubr.bf16.gmra.mrb[0].mxu0 %v1447
        %v2509 = vpop.f32.mrb[0].mxu0
        %v2510 = vadd.f32 %v2413, %v2509
        %v2511 = vpop.f32.mrb[0].mxu0
        %v2512 = vpop.f32.mrb[0].mxu0
        %v2513 = vadd.f32 %v2416, %v2512
        %v2514 = vpop.f32.mrb[0].mxu0
        %2515 = vmatprep.mubr.bf16.mxu0 0
        %2516 = vmatmul.mubr.bf16.gmra.mrb[0].mxu0 %v1456
        %v2517 = vpop.f32.mrb[0].mxu0
        %v2518 = vadd.f32 %v2421, %v2517
        %v2519 = vpop.f32.mrb[0].mxu0
        %v2520 = vpop.f32.mrb[0].mxu0
        %v2521 = vadd.f32 %v2424, %v2520
        %v2522 = vpop.f32.mrb[0].mxu0
        %2523 = vmatprep.mubr.bf16.mxu0 0
        %2524 = vmatmul.mubr.bf16.gmra.mrb[0].mxu0 %v1465
        %v2525 = vpop.f32.mrb[0].mxu0
        %v2526 = vadd.f32 %v2429, %v2525
        %v2527 = vpop.f32.mrb[0].mxu0
        %v2528 = vpop.f32.mrb[0].mxu0
        %v2529 = vadd.f32 %v2432, %v2528
        %v2530 = vpop.f32.mrb[0].mxu0
        %2531 = vmatprep.mubr.bf16.mxu0 0
        %2532 = vmatmul.mubr.bf16.gmra.mrb[0].mxu0 %v1474
        %v2533 = vpop.f32.mrb[0].mxu0
        %v2534 = vadd.f32 %v2437, %v2533
        %v2535 = vpop.f32.mrb[0].mxu0
        %v2536 = vpop.f32.mrb[0].mxu0
        %v2537 = vadd.f32 %v2440, %v2536
        %v2538 = vpop.f32.mrb[0].mxu0
        %2539 = vmatprep.mubr.bf16.mxu0 0
        %2540 = vmatmul.mubr.bf16.gmra.mrb[0].mxu0 %v1483
        %v2541 = vpop.f32.mrb[0].mxu0
        %v2542 = vadd.f32 %v2445, %v2541
        %v2543 = vpop.f32.mrb[0].mxu0
        %v2544 = vpop.f32.mrb[0].mxu0
        %v2545 = vadd.f32 %v2448, %v2544
        %v2546 = vpop.f32.mrb[0].mxu0
        %2547 = vmatprep.mubr.bf16.mxu0 0
        %2548 = vmatmul.mubr.bf16.gmra.mrb[0].mxu0 %v1492
        %v2549 = vpop.f32.mrb[0].mxu0
        %v2550 = vadd.f32 %v2453, %v2549
        %v2551 = vpop.f32.mrb[0].mxu0
        %v2552 = vpop.f32.mrb[0].mxu0
        %v2553 = vadd.f32 %v2456, %v2552
        %v2554 = vpop.f32.mrb[0].mxu0
        %2555 = vmatprep.mubr.bf16.mxu0 0
        %2556 = vmatmul.mubr.bf16.gmra.mrb[0].mxu0 %v1501
        %v2557 = vpop.f32.mrb[0].mxu0
        %v2558 = vadd.f32 %v2461, %v2557
        %v2559 = vpop.f32.mrb[0].mxu0
        %v2560 = vpop.f32.mrb[0].mxu0
        %v2561 = vadd.f32 %v2464, %v2560
        %v2562 = vpop.f32.mrb[0].mxu0
        %2563 = vmatprep.mubr.bf16.mxu0 0
        %2564 = vmatmul.mubr.bf16.gmra.mrb[0].mxu0 %v1510
        %v2565 = vpop.f32.mrb[0].mxu0
        %v2566 = vadd.f32 %v2469, %v2565
        %v2567 = vpop.f32.mrb[0].mxu0
        %v2568 = vpop.f32.mrb[0].mxu0
        %v2569 = vadd.f32 %v2472, %v2568
        %v2570 = vpop.f32.mrb[0].mxu0
        %2571 = vdwg.mxu0
        %v2572 = vld [vmem:[%s5] sm:$0x1]
        %v2574 = vlaneseq
        %v2575 = vshrl.u32 %v2574, 7
        %v2576 = vsub.s32 0, %v2575
        %v2577 = vrot.slane %v2572, %v2576
        %v2579 = vmul.f32 %v2510, %v2577
        %v2580 = vmul.f32 %v2513, %v2577
        %v2581 = vmul.f32 %v2518, %v2577
        %v2582 = vmul.f32 %v2521, %v2577
        %v2583 = vmul.f32 %v2526, %v2577
        %v2584 = vmul.f32 %v2529, %v2577
        %v2585 = vmul.f32 %v2534, %v2577
        %v2586 = vmul.f32 %v2537, %v2577
        %v2587 = vmul.f32 %v2542, %v2577
        %v2588 = vmul.f32 %v2545, %v2577
        %v2589 = vmul.f32 %v2550, %v2577
        %v2590 = vmul.f32 %v2553, %v2577
        %v2591 = vmul.f32 %v2558, %v2577
        %v2592 = vmul.f32 %v2561, %v2577
        %v2593 = vmul.f32 %v2566, %v2577
        %v2594 = vmul.f32 %v2569, %v2577
        %v2595 = vld [vmem:[%s6] sm:$0x1]
        %v2597 = vlaneseq
        %v2598 = vshrl.u32 %v2597, 7
        %v2599 = vsub.s32 0, %v2598
        %v2600 = vrot.slane %v2595, %v2599
        %v2602 = vadd.f32 %v2579, %v2600
        %v2603 = vadd.f32 %v2580, %v2600
        %v2604 = vadd.f32 %v2581, %v2600
        %v2605 = vadd.f32 %v2582, %v2600
        %v2606 = vadd.f32 %v2583, %v2600
        %v2607 = vadd.f32 %v2584, %v2600
        %v2608 = vadd.f32 %v2585, %v2600
        %v2609 = vadd.f32 %v2586, %v2600
        %v2610 = vadd.f32 %v2587, %v2600
        %v2611 = vadd.f32 %v2588, %v2600
        %v2612 = vadd.f32 %v2589, %v2600
        %v2613 = vadd.f32 %v2590, %v2600
        %v2614 = vadd.f32 %v2591, %v2600
        %v2615 = vadd.f32 %v2592, %v2600
        %v2616 = vadd.f32 %v2593, %v2600
        %v2617 = vadd.f32 %v2594, %v2600
        %v2618 = vmax.f32 %v2602, 0.0
        %v2619 = vmax.f32 %v2603, 0.0
        %v2620 = vmax.f32 %v2604, 0.0
        %v2621 = vmax.f32 %v2605, 0.0
        %v2622 = vmax.f32 %v2606, 0.0
        %v2623 = vmax.f32 %v2607, 0.0
        %v2624 = vmax.f32 %v2608, 0.0
        %v2625 = vmax.f32 %v2609, 0.0
        %v2626 = vmax.f32 %v2610, 0.0
        %v2627 = vmax.f32 %v2611, 0.0
        %v2628 = vmax.f32 %v2612, 0.0
        %v2629 = vmax.f32 %v2613, 0.0
        %v2630 = vmax.f32 %v2614, 0.0
        %v2631 = vmax.f32 %v2615, 0.0
        %v2632 = vmax.f32 %v2616, 0.0
        %v2633 = vmax.f32 %v2617, 0.0
        %v2634 = vpack.c.bf16 %v2619, %v2618
        %v2635 = vpack.c.bf16 %v2621, %v2620
        %v2636 = vpack.c.bf16 %v2623, %v2622
        %v2637 = vpack.c.bf16 %v2625, %v2624
        %v2638 = vpack.c.bf16 %v2627, %v2626
        %v2639 = vpack.c.bf16 %v2629, %v2628
        %v2640 = vpack.c.bf16 %v2631, %v2630
        %v2641 = vpack.c.bf16 %v2633, %v2632
        %v2642 = vld [vmem:[#allocation10] sm:$0xf]
        %v2643 = vld [vmem:[#allocation10 + $0x4] sm:$0xf]
        %v2644 = vld [vmem:[#allocation10 + $0x8] sm:$0xf]
        %v2645 = vld [vmem:[#allocation10 + $0xc] sm:$0xf]
        %v2646 = vld [vmem:[#allocation10 + $0x10] sm:$0xf]
        %v2647 = vld [vmem:[#allocation10 + $0x14] sm:$0xf]
        %v2648 = vld [vmem:[#allocation10 + $0x18] sm:$0xf]
        %v2649 = vld [vmem:[#allocation10 + $0x1c] sm:$0xf]
        %v2650 = vld [vmem:[#allocation10 + $0x20] sm:$0xf]
        %v2651 = vld [vmem:[#allocation10 + $0x24] sm:$0xf]
        %v2652 = vld [vmem:[#allocation10 + $0x28] sm:$0xf]
        %v2653 = vld [vmem:[#allocation10 + $0x2c] sm:$0xf]
        %v2654 = vld [vmem:[#allocation10 + $0x30] sm:$0xf]
        %v2655 = vld [vmem:[#allocation10 + $0x34] sm:$0xf]
        %v2656 = vld [vmem:[#allocation10 + $0x38] sm:$0xf]
        %v2657 = vld [vmem:[#allocation10 + $0x3c] sm:$0xf]
        %v2674 = vunpack.c.l.b16 %v2642
        %v2675 = vunpack.c.l.b16 %v2643
        %v2676 = vunpack.c.l.b16 %v2644
        %v2677 = vunpack.c.l.b16 %v2645
        %v2678 = vunpack.c.l.b16 %v2646
        %v2679 = vunpack.c.l.b16 %v2647
        %v2680 = vunpack.c.l.b16 %v2648
        %v2681 = vunpack.c.l.b16 %v2649
        %v2682 = vunpack.c.l.b16 %v2650
        %v2683 = vunpack.c.l.b16 %v2651
        %v2684 = vunpack.c.l.b16 %v2652
        %v2685 = vunpack.c.l.b16 %v2653
        %v2686 = vunpack.c.l.b16 %v2654
        %v2687 = vunpack.c.l.b16 %v2655
        %v2688 = vunpack.c.l.b16 %v2656
        %v2689 = vunpack.c.l.b16 %v2657
        %v2690 = vpack.c.b16 %v2675, %v2674
        %v2691 = vpack.c.b16 %v2677, %v2676
        %v2692 = vpack.c.b16 %v2679, %v2678
        %v2693 = vpack.c.b16 %v2681, %v2680
        %v2694 = vpack.c.b16 %v2683, %v2682
        %v2695 = vpack.c.b16 %v2685, %v2684
        %v2696 = vpack.c.b16 %v2687, %v2686
        %v2697 = vpack.c.b16 %v2689, %v2688
        %2706 = vmatprep.subr.bf16.mxu0 0
        %2707 = vmatpush1.bf16.msra.mxu0 %v2690
        %2708 = vmatprep.subr.bf16.mxu0 0
        %2709 = vmatpush1.bf16.msra.mxu0 %v2691
        %2710 = vmatprep.subr.bf16.mxu0 0
        %2711 = vmatpush1.bf16.msra.mxu0 %v2692
        %2712 = vmatprep.subr.bf16.mxu0 0
        %2713 = vmatpush1.bf16.msra.mxu0 %v2693
        %2714 = vmatprep.subr.bf16.mxu0 0
        %2715 = vmatpush1.bf16.msra.mxu0 %v2694
        %2716 = vmatprep.subr.bf16.mxu0 0
        %2717 = vmatpush1.bf16.msra.mxu0 %v2695
        %2718 = vmatprep.subr.bf16.mxu0 0
        %2719 = vmatpush1.bf16.msra.mxu0 %v2696
        %2720 = vmatprep.subr.bf16.mxu0 0
        %2721 = vmatpush1.bf16.msra.mxu0 %v2697
        %2722 = vmatprep.subr.bf16.mxu0 0
        %2723 = vmatpush1.bf16.msra.mxu0 0
        %2724 = vmatprep.subr.bf16.mxu0 0
        %2725 = vmatpush1.bf16.msra.mxu0 0
        %2726 = vmatprep.subr.bf16.mxu0 0
        %2727 = vmatpush1.bf16.msra.mxu0 0
        %2728 = vmatprep.subr.bf16.mxu0 0
        %2729 = vmatpush1.bf16.msra.mxu0 0
        %2730 = vmatprep.subr.bf16.mxu0 0
        %2731 = vmatpush1.bf16.msra.mxu0 0
        %2732 = vmatprep.subr.bf16.mxu0 0
        %2733 = vmatpush1.bf16.msra.mxu0 0
        %2734 = vmatprep.subr.bf16.mxu0 0
        %2735 = vmatpush1.bf16.msra.mxu0 0
        %2736 = vmatprep.subr.bf16.mxu0 0
        %2737 = vmatpush1.bf16.msra.mxu0 0
        %2738 = vmatprep.mubr.bf16.mxu0 0
        %2739 = vmatmul.mubr.bf16.gmra.mrb[0].mxu0 %v2634
        %v2740 = vpop.f32.mrb[0].mxu0
        %v2741 = vadd.f32 0.0, %v2740
        %v2742 = vpop.f32.mrb[0].mxu0
        %v2743 = vpop.f32.mrb[0].mxu0
        %v2744 = vadd.f32 0.0, %v2743
        %v2745 = vpop.f32.mrb[0].mxu0
        %2746 = vmatprep.mubr.bf16.mxu0 0
        %2747 = vmatmul.mubr.bf16.gmra.mrb[0].mxu0 %v2635
        %v2748 = vpop.f32.mrb[0].mxu0
        %v2749 = vadd.f32 0.0, %v2748
        %v2750 = vpop.f32.mrb[0].mxu0
        %v2751 = vpop.f32.mrb[0].mxu0
        %v2752 = vadd.f32 0.0, %v2751
        %v2753 = vpop.f32.mrb[0].mxu0
        %2754 = vmatprep.mubr.bf16.mxu0 0
        %2755 = vmatmul.mubr.bf16.gmra.mrb[0].mxu0 %v2636
        %v2756 = vpop.f32.mrb[0].mxu0
        %v2757 = vadd.f32 0.0, %v2756
        %v2758 = vpop.f32.mrb[0].mxu0
        %v2759 = vpop.f32.mrb[0].mxu0
        %v2760 = vadd.f32 0.0, %v2759
        %v2761 = vpop.f32.mrb[0].mxu0
        %2762 = vmatprep.mubr.bf16.mxu0 0
        %2763 = vmatmul.mubr.bf16.gmra.mrb[0].mxu0 %v2637
        %v2764 = vpop.f32.mrb[0].mxu0
        %v2765 = vadd.f32 0.0, %v2764
        %v2766 = vpop.f32.mrb[0].mxu0
        %v2767 = vpop.f32.mrb[0].mxu0
        %v2768 = vadd.f32 0.0, %v2767
        %v2769 = vpop.f32.mrb[0].mxu0
        %2770 = vmatprep.mubr.bf16.mxu0 0
        %2771 = vmatmul.mubr.bf16.gmra.mrb[0].mxu0 %v2638
        %v2772 = vpop.f32.mrb[0].mxu0
        %v2773 = vadd.f32 0.0, %v2772
        %v2774 = vpop.f32.mrb[0].mxu0
        %v2775 = vpop.f32.mrb[0].mxu0
        %v2776 = vadd.f32 0.0, %v2775
        %v2777 = vpop.f32.mrb[0].mxu0
        %2778 = vmatprep.mubr.bf16.mxu0 0
        %2779 = vmatmul.mubr.bf16.gmra.mrb[0].mxu0 %v2639
        %v2780 = vpop.f32.mrb[0].mxu0
        %v2781 = vadd.f32 0.0, %v2780
        %v2782 = vpop.f32.mrb[0].mxu0
        %v2783 = vpop.f32.mrb[0].mxu0
        %v2784 = vadd.f32 0.0, %v2783
        %v2785 = vpop.f32.mrb[0].mxu0
        %2786 = vmatprep.mubr.bf16.mxu0 0
        %2787 = vmatmul.mubr.bf16.gmra.mrb[0].mxu0 %v2640
        %v2788 = vpop.f32.mrb[0].mxu0
        %v2789 = vadd.f32 0.0, %v2788
        %v2790 = vpop.f32.mrb[0].mxu0
        %v2791 = vpop.f32.mrb[0].mxu0
        %v2792 = vadd.f32 0.0, %v2791
        %v2793 = vpop.f32.mrb[0].mxu0
        %2794 = vmatprep.mubr.bf16.mxu0 0
        %2795 = vmatmul.mubr.bf16.gmra.mrb[0].mxu0 %v2641
        %v2796 = vpop.f32.mrb[0].mxu0
        %v2797 = vadd.f32 0.0, %v2796
        %v2798 = vpop.f32.mrb[0].mxu0
        %v2799 = vpop.f32.mrb[0].mxu0
        %v2800 = vadd.f32 0.0, %v2799
        %v2801 = vpop.f32.mrb[0].mxu0
        %2802 = vdwg.mxu0
        %v2803 = vunpack.c.l.bf16 %v442
        %v2804 = vunpack.c.l.bf16 %v443
        %v2805 = vunpack.c.l.bf16 %v444
        %v2806 = vunpack.c.l.bf16 %v445
        %v2807 = vunpack.c.l.bf16 %v446
        %v2808 = vunpack.c.l.bf16 %v447
        %v2809 = vunpack.c.l.bf16 %v448
        %v2810 = vunpack.c.l.bf16 %v449
        %v2811 = vunpack.c.l.bf16 %v450
        %v2812 = vunpack.c.l.bf16 %v451
        %v2813 = vunpack.c.l.bf16 %v452
        %v2814 = vunpack.c.l.bf16 %v453
        %v2815 = vunpack.c.l.bf16 %v454
        %v2816 = vunpack.c.l.bf16 %v455
        %v2817 = vunpack.c.l.bf16 %v456
        %v2818 = vunpack.c.l.bf16 %v457
        %v2819 = vld [vmem:[%s8] sm:$0x1]
        %v2821 = vlaneseq
        %v2822 = vshrl.u32 %v2821, 7
        %v2823 = vsub.s32 0, %v2822
        %v2824 = vrot.slane %v2819, %v2823
        %v2826 = vmul.f32 %v2741, %v2824
        %v2827 = vmul.f32 %v2744, %v2824
        %v2828 = vmul.f32 %v2749, %v2824
        %v2829 = vmul.f32 %v2752, %v2824
        %v2830 = vmul.f32 %v2757, %v2824
        %v2831 = vmul.f32 %v2760, %v2824
        %v2832 = vmul.f32 %v2765, %v2824
        %v2833 = vmul.f32 %v2768, %v2824
        %v2834 = vmul.f32 %v2773, %v2824
        %v2835 = vmul.f32 %v2776, %v2824
        %v2836 = vmul.f32 %v2781, %v2824
        %v2837 = vmul.f32 %v2784, %v2824
        %v2838 = vmul.f32 %v2789, %v2824
        %v2839 = vmul.f32 %v2792, %v2824
        %v2840 = vmul.f32 %v2797, %v2824
        %v2841 = vmul.f32 %v2800, %v2824
        %v2842 = vld [vmem:[%s9] sm:$0x1]
        %v2844 = vlaneseq
        %v2845 = vshrl.u32 %v2844, 7
        %v2846 = vsub.s32 0, %v2845
        %v2847 = vrot.slane %v2842, %v2846
        %v2849 = vadd.f32 %v2826, %v2847
        %v2850 = vadd.f32 %v2827, %v2847
        %v2851 = vadd.f32 %v2828, %v2847
        %v2852 = vadd.f32 %v2829, %v2847
        %v2853 = vadd.f32 %v2830, %v2847
        %v2854 = vadd.f32 %v2831, %v2847
        %v2855 = vadd.f32 %v2832, %v2847
        %v2856 = vadd.f32 %v2833, %v2847
        %v2857 = vadd.f32 %v2834, %v2847
        %v2858 = vadd.f32 %v2835, %v2847
        %v2859 = vadd.f32 %v2836, %v2847
        %v2860 = vadd.f32 %v2837, %v2847
        %v2861 = vadd.f32 %v2838, %v2847
        %v2862 = vadd.f32 %v2839, %v2847
        %v2863 = vadd.f32 %v2840, %v2847
        %v2864 = vadd.f32 %v2841, %v2847
        %v2865 = vadd.f32 %v2849, %v2803
        %v2866 = vadd.f32 %v2850, %v2804
        %v2867 = vadd.f32 %v2851, %v2805
        %v2868 = vadd.f32 %v2852, %v2806
        %v2869 = vadd.f32 %v2853, %v2807
        %v2870 = vadd.f32 %v2854, %v2808
        %v2871 = vadd.f32 %v2855, %v2809
        %v2872 = vadd.f32 %v2856, %v2810
        %v2873 = vadd.f32 %v2857, %v2811
        %v2874 = vadd.f32 %v2858, %v2812
        %v2875 = vadd.f32 %v2859, %v2813
        %v2876 = vadd.f32 %v2860, %v2814
        %v2877 = vadd.f32 %v2861, %v2815
        %v2878 = vadd.f32 %v2862, %v2816
        %v2879 = vadd.f32 %v2863, %v2817
        %v2880 = vadd.f32 %v2864, %v2818
        %v2881 = vmax.f32 %v2865, 0.0
        %v2882 = vmax.f32 %v2866, 0.0
        %v2883 = vmax.f32 %v2867, 0.0
        %v2884 = vmax.f32 %v2868, 0.0
        %v2885 = vmax.f32 %v2869, 0.0
        %v2886 = vmax.f32 %v2870, 0.0
        %v2887 = vmax.f32 %v2871, 0.0
        %v2888 = vmax.f32 %v2872, 0.0
        %v2889 = vmax.f32 %v2873, 0.0
        %v2890 = vmax.f32 %v2874, 0.0
        %v2891 = vmax.f32 %v2875, 0.0
        %v2892 = vmax.f32 %v2876, 0.0
        %v2893 = vmax.f32 %v2877, 0.0
        %v2894 = vmax.f32 %v2878, 0.0
        %v2895 = vmax.f32 %v2879, 0.0
        %v2896 = vmax.f32 %v2880, 0.0
        %2897 = vst [vmem:[%s435] sm:$0xff] %v2881
        %2898 = vst [vmem:[%s435 + $0x8] sm:$0xff] %v2882
        %2899 = vst [vmem:[%s435 + $0x10] sm:$0xff] %v2883
        %2900 = vst [vmem:[%s435 + $0x18] sm:$0xff] %v2884
        %2901 = vst [vmem:[%s435 + $0x20] sm:$0xff] %v2885
        %2902 = vst [vmem:[%s435 + $0x28] sm:$0xff] %v2886
        %2903 = vst [vmem:[%s435 + $0x30] sm:$0xff] %v2887
        %2904 = vst [vmem:[%s435 + $0x38] sm:$0xff] %v2888
        %2905 = vst [vmem:[%s435 + $0x40] sm:$0xff] %v2889
        %2906 = vst [vmem:[%s435 + $0x48] sm:$0xff] %v2890
        %2907 = vst [vmem:[%s435 + $0x50] sm:$0xff] %v2891
        %2908 = vst [vmem:[%s435 + $0x58] sm:$0xff] %v2892
        %2909 = vst [vmem:[%s435 + $0x60] sm:$0xff] %v2893
        %2910 = vst [vmem:[%s435 + $0x68] sm:$0xff] %v2894
        %2911 = vst [vmem:[%s435 + $0x70] sm:$0xff] %v2895
        %2912 = vst [vmem:[%s435 + $0x78] sm:$0xff] %v2896
        %s2913 = sand.u32 %s266, 1
        %s2914 = scalar_lea.sflag [#allocation6], %s2913
        %s2915 = sand.u32 %s266, 1
        %s2916 = smul.addr %s2915, 128
        %s2917 = scalar_lea.vmem [#allocation12], %s2916
        // Predicated region
        $region85: #{tpu_custom_call.1} parent=59 // pred_check
          %p2918 = pneg %p276
        $region86: #{tpu_custom_call.1} parent=59 // pred_check_branch
          %2920 = sbr.rel (%p2918) target = $region88
        $region87: #{tpu_custom_call.1} parent=59 // pred_region
          %s2921 = smul.u32 8, %s34
          %s2923 = ssub.s32 2048, 2048
          %2924 = vsyncadd %s2914, %s2923
          %s2925 = smul.addr %s2921, 2
          %s2926 = smul.addr %s33, 32
          %s2927 = sadd.s32 %s2925, %s2926
          %s2928 = smul.addr %s2927, 128
          %s2929 = scalar_lea.hbm %s10, %s2928
          %s2930 = sshll.u32 %s2917, 4
          %s2931 = int_to_ptr.vmem [resolvable:$true] %s2930
          %2936 = dma.vmem_to_hbm [thread:$0]  %s2931, 2048, %s2929, %s2914, 128, 128, 8
        $region88: #{tpu_custom_call.1} parent=59 // pred_fallthru
          _
      $region60: #{tpu_custom_call.1} parent=5 // pred_fallthru
        _
      %p2937 = scmp.le.s32.totalorder 2, %s24
      // Predicated region
      $region89: #{tpu_custom_call.1} parent=5 // pred_check
        %p2938 = pneg %p2937
      $region90: #{tpu_custom_call.1} parent=5 // pred_check_branch
        %2940 = sbr.rel (%p2938) target = $region92
      $region91: #{tpu_custom_call.1} parent=5 // pred_region
        %s2941 = ssub.s32 %s24, 2
        // Predicated region
        $region93: #{tpu_custom_call.1} parent=91 // pred_check
          %p2942 = pneg %p282
        $region94: #{tpu_custom_call.1} parent=91 // pred_check_branch
          %2944 = sbr.rel (%p2942) target = $region96
        $region95: #{tpu_custom_call.1} parent=91 // pred_region
          %s2945 = sand.u32 %s267, 1
          %s2946 = scalar_lea.sflag [#allocation6], %s2945
          %s2947 = sand.u32 %s267, 1
          %s2948 = smul.addr %s2947, 128
          %s2949 = scalar_lea.vmem [#allocation12], %s2948
          %2950 = dma.done %s2946, 2048
        $region96: #{tpu_custom_call.1} parent=91 // pred_fallthru
          _
      $region92: #{tpu_custom_call.1} parent=5 // pred_fallthru
        _
    $region6: #{tpu_custom_call.1} parent=1 // loop_footer
      %s28 = sadd.s32 1, %s24
    $region7: #{tpu_custom_call.1} parent=1 // loop_footer_branch
      %23 = sbr.rel target = $region3
    $region8: #{tpu_custom_call.1} parent=1 // loop_exit
      _
    %2951 = vsyncpa [#allocation5], 1
    %s2952 = scalar_lea.sflag [#allocation5], 1
    %2953 = vsyncpa %s2952, 1
    %2954 = vsyncpa [#allocation8], 1
    %2955 = vsyncpa [#allocation11], 1
    %2956 = vsyncpa [#allocation6], 1
    %s2957 = scalar_lea.sflag [#allocation6], 1
    %2958 = vsyncpa %s2957, 1

</llo_original>
